<compile_context>
chip_gen: v7x
topology: tpu7x:2x2x1
jax: 0.10.0
libtpu: 0.0.40
codegen_flags: <defaults>
</compile_context>

<pallas_src>
import jax
import jax.numpy as jnp
from jax import lax
from jax.experimental import pallas as pl
from jax.experimental.pallas import tpu as pltpu

PREC = lax.Precision.HIGHEST  # pinned MXU precision (f32-accurate pass count)


def _ln_relu(h, g, be):
    # LayerNorm over the hidden (sublane) axis, eps=1e-5, biased variance.
    # Single-pass statistics: var = E[h^2] - mu^2 (no (h - mu) materialization
    # before the second reduction).
    mu = jnp.mean(h, axis=0, keepdims=True)
    ms = jnp.mean(h * h, axis=0, keepdims=True)
    var = ms - mu * mu
    hn = (h - mu) * lax.rsqrt(var + 1e-5)
    return jnp.maximum(hn * g + be, 0.0)


def _make_kernel(C, Cc, H, TT, T_valid, needs_mask):
    C1 = C // 2
    C2 = C - C1
    C2x2 = 2 * C2

    def kernel(x_ref, cond_ref, wp_ref, vec_ref, w1_ref, w2_ref, w3_ref,
               z_ref, ld_ref):
        t = pl.program_id(1)

        xp = x_ref[0].astype(jnp.float32)      # (2C, TT)  sublane-dense pair
        cp = cond_ref[0].astype(jnp.float32)   # (2Cc, TT)

        # Packed column-vector params (single coalesced (R, 8) input).
        bp = vec_ref[0:2 * C, 0:1]
        b1 = vec_ref[0:H, 1:2]
        g1 = vec_ref[0:H, 2:3]
        be1 = vec_ref[0:H, 3:4]
        b2 = vec_ref[0:H, 4:5]
        g2 = vec_ref[0:H, 5:6]
        be2 = vec_ref[0:H, 6:7]
        b3 = vec_ref[0:C2x2, 7:8]

        # ---- ActNorm (folded) + InvertibleConv1x1, both batch rows at once:
        # z = blockdiag(W', W') @ x + [b'; b'].  K = 2C is tiny, so unrolled
        # VPU broadcast-MACs keep the MXU free for the coupling net.
        z = bp + wp_ref[:, 0:1] * xp[0:1, :]
        for j in range(1, 2 * C):
            z = z + wp_ref[:, j:j + 1] * xp[j:j + 1, :]

        if needs_mask:
            lane = lax.broadcasted_iota(jnp.int32, (C2, TT), 1)
            valid = (lane + t * TT) < T_valid

        outs = []
        lds = []
        for b in range(2):                      # the two packed batch rows
            z1 = z[b * C: b * C + C1, :]
            z2 = z[b * C + C1: (b + 1) * C, :]
            cnd = cp[b * Cc: (b + 1) * Cc, :]

            # ---- FF coupling net: (Linear -> LN -> ReLU) x2 -> fused Linear
            zc = jnp.concatenate([z1, cnd], axis=0)          # (C1+Cc, TT)
            h = jnp.dot(w1_ref[...], zc, precision=PREC,
                        preferred_element_type=jnp.float32) + b1
            h = _ln_relu(h, g1, be1)
            h = jnp.dot(w2_ref[...], h, precision=PREC,
                        preferred_element_type=jnp.float32) + b2
            h = _ln_relu(h, g2, be2)
            # Fused last Linear: rows [0:C2) shift, rows [C2:) raw scale
            # (+2.0 sigmoid bias already folded into b3).
            h3 = jnp.dot(w3_ref[...], h, precision=PREC,
                         preferred_element_type=jnp.float32) + b3
            shift = h3[:C2, :]
            scale = jax.nn.sigmoid(h3[C2:, :]) + 1e-6

            outs.append(z1)
            outs.append((z2 + shift) * scale)

            ls = jnp.log(scale)
            if needs_mask:
                ls = jnp.where(valid, ls, 0.0)   # padded lanes must not leak
            lds.append(jnp.broadcast_to(jnp.sum(ls), (1, 128)))

        # One unmasked, full-sublane store of the whole (2C, TT) slab.
        z_ref[...] = jnp.concatenate(outs, axis=0).reshape(
            1, 2 * C, TT).astype(z_ref.dtype)
        # De-accumulated per-(pair, tile) coupling-logdet partials (both grid
        # axes stay "parallel"); reduced over tiles in the wrapper.
        ld_ref[...] = jnp.concatenate(lds, axis=0).reshape(1, 1, 2, 128)

    return kernel


def _round_up(v, m):
    return (v + m - 1) // m * m


def _pick_time_tile(Tp, cap=2048):
    # Tp is a multiple of 128, so this always succeeds.
    for tt in (2048, 1024, 512, 256, 128):
        if tt <= cap and Tp % tt == 0:
            return tt
    return 128


def flowstep_forward(params, x_nct, cond_nct, logdet, *, max_time_tile=2048):
    """x_nct: (B, C, T), cond_nct: (B, Cc, T), logdet: (B,).
    Returns (z_nct, cond_nct, logdet) matching FlowStep.normal_flow."""
    B, C, T = x_nct.shape
    _, Cc, _ = cond_nct.shape
    C1, C2 = C // 2, C - C // 2
    H = params["W1"].shape[1]
    f32 = jnp.float32

    # ---- fold ActNorm into the invconv (once per call, in the wrapper) ----
    logs = params["an_logs"].reshape(C).astype(f32)
    bias = params["an_bias"].reshape(C).astype(f32)
    exps = jnp.exp(logs)
    W = params["W"].astype(f32)
    Wp = W * exps[None, :]                            # (C, C)
    bp = (W @ (bias * exps)).reshape(C, 1)            # (C, 1)

    # ActNorm + invconv logdet constants (per *actual* timestep).
    ld_const = (jnp.sum(logs) + jnp.linalg.slogdet(W)[1]) * f32(T)

    # Block-diagonal invconv for the 2-batch-rows-per-block packing.
    Wbd = jnp.zeros((2 * C, 2 * C), f32).at[:C, :C].set(Wp).at[C:, C:].set(Wp)
    bp2 = jnp.concatenate([bp, bp], axis=0)           # (2C, 1)

    # ---- FF weights, transposed for channels-on-sublanes / time-on-lanes ----
    W1T = params["W1"].T.astype(f32)                                   # (H, C1+Cc)
    W2T = params["W2"].T.astype(f32)                                   # (H, H)
    W3rT = jnp.concatenate([params["W3s"], params["W3c"]],
                           axis=1).T.astype(f32)                       # (2C2, H)
    # Fused bias rows [shift | scale], with the +2.0 sigmoid bias folded in.
    b3r = jnp.concatenate([params["b3s"], params["b3c"] + 2.0],
                          axis=1).reshape(2 * C2, 1).astype(f32)

    # ---- coalesce the eight column-vector params into one (R, 8) array ----
    R = max(H, 2 * C, 2 * C2)

    def col(v):
        v = v.reshape(-1, 1).astype(f32)
        return jnp.pad(v, ((0, R - v.shape[0]), (0, 0)))

    vecs = jnp.concatenate(
        [col(bp2), col(params["b1"]), col(params["g1"]), col(params["be1"]),
         col(params["b2"]), col(params["g2"]), col(params["be2"]), col(b3r)],
        axis=1)                                                        # (R, 8)

    # ---- pad batch to even and time to a multiple of the lane tile ----
    Bp = _round_up(B, 2)
    Tp = _round_up(T, 128)
    TT = _pick_time_tile(Tp, max_time_tile)
    nT = Tp // TT
    needs_mask = (Tp != T)

    x_p = jnp.pad(x_nct, ((0, Bp - B), (0, 0), (0, Tp - T)))
    c_p = jnp.pad(cond_nct, ((0, Bp - B), (0, 0), (0, Tp - T)))
    # Free metadata reshape: pack 2 consecutive batch rows onto the sublanes.
    x_p = x_p.reshape(Bp // 2, 2 * C, Tp)
    c_p = c_p.reshape(Bp // 2, 2 * Cc, Tp)

    kernel = _make_kernel(C, Cc, H, TT, T, needs_mask)

    grid = (Bp // 2, nT)
    rep2 = lambda a: pl.BlockSpec(a.shape, lambda p, t: (0, 0))
    x_spec = pl.BlockSpec((1, 2 * C, TT), lambda p, t: (p, 0, t))
    c_spec = pl.BlockSpec((1, 2 * Cc, TT), lambda p, t: (p, 0, t))
    z_spec = pl.BlockSpec((1, 2 * C, TT), lambda p, t: (p, 0, t))
    ld_spec = pl.BlockSpec((1, 1, 2, 128), lambda p, t: (p, t, 0, 0))

    weights = (Wbd, vecs, W1T, W2T, W3rT)

    z_pk, ld_pk = pl.pallas_call(
        kernel,
        out_shape=(
            jax.ShapeDtypeStruct((Bp // 2, 2 * C, Tp), x_nct.dtype),
            jax.ShapeDtypeStruct((Bp // 2, nT, 2, 128), jnp.float32),
        ),
        grid=grid,
        in_specs=[x_spec, c_spec] + [rep2(w) for w in weights],
        out_specs=(z_spec, ld_spec),
        compiler_params=pltpu.CompilerParams(
            dimension_semantics=("parallel", "parallel"),
            vmem_limit_bytes=32 * 1024 * 1024,
        ),
    )(x_p, c_p, *weights)

    z_nct = z_pk.reshape(Bp, C, Tp)[:B, :, :T]
    ld_coupling = jnp.sum(ld_pk[:, :, :, 0], axis=1).reshape(Bp)[:B]
    logdet_out = logdet.astype(f32) + ld_const + ld_coupling
    return z_nct, cond_nct, logdet_out


def flowstep_reference(params, x_nct, cond_nct, logdet):
    """Pure-JAX mirror of FlowStep.normal_flow (invconv + affine + FF)."""
    B, C, T = x_nct.shape
    C1, C2 = C // 2, C - C // 2
    x = jnp.transpose(x_nct, (0, 2, 1))                       # (B,T,C)
    z = (x + params["an_bias"]) * jnp.exp(params["an_logs"])
    logdet = logdet + jnp.sum(params["an_logs"]) * T
    z = jnp.einsum("btc,dc->btd", z, params["W"], precision=PREC)
    logdet = logdet + jnp.linalg.slogdet(params["W"])[1] * T
    z1, z2 = z[:, :, :C1], z[:, :, C1:]
    h = jnp.concatenate([z1, jnp.transpose(cond_nct, (0, 2, 1))], axis=-1)

    def lin_ln_relu(h, w, b, g, be):
        h = jnp.dot(h, w, precision=PREC) + b
        mu = jnp.mean(h, -1, keepdims=True)
        var = jnp.mean((h - mu) ** 2, -1, keepdims=True)
        return jnp.maximum((h - mu) / jnp.sqrt(var + 1e-5) * g + be, 0.0)

    h = lin_ln_relu(h, params["W1"], params["b1"], params["g1"], params["be1"])
    h = lin_ln_relu(h, params["W2"], params["b2"], params["g2"], params["be2"])
    shift = jnp.dot(h, params["W3s"], precision=PREC) + params["b3s"]
    scale = jax.nn.sigmoid(jnp.dot(h, params["W3c"], precision=PREC)
                           + params["b3c"] + 2.0) + 1e-6
    z2 = (z2 + shift) * scale
    logdet = logdet + jnp.sum(jnp.log(scale), axis=(1, 2))
    z = jnp.concatenate([z1, z2], axis=-1)
    return jnp.transpose(z, (0, 2, 1)), cond_nct, logdet


def make_params(key, C, Ccond, H):
    C1, C2 = C // 2, C - C // 2
    Cin = C1 + Ccond
    ks = jax.random.split(key, 10)
    # Random orthogonal init for the invertible 1x1 conv weight (as in Glow).
    W = jnp.linalg.qr(jax.random.normal(ks[0], (C, C), jnp.float32))[0]
    p = {
        "an_bias": 0.1 * jax.random.normal(ks[1], (1, C), jnp.float32),
        "an_logs": 0.1 * jax.random.normal(ks[2], (1, C), jnp.float32),
        "W": W,
        "W1": jax.random.normal(ks[3], (Cin, H), jnp.float32) / jnp.sqrt(Cin),
        "b1": 0.1 * jax.random.normal(ks[4], (1, H), jnp.float32),
        "g1": jnp.ones((1, H), jnp.float32),
        "be1": jnp.zeros((1, H), jnp.float32),
        "W2": jax.random.normal(ks[5], (H, H), jnp.float32) / jnp.sqrt(H),
        "b2": 0.1 * jax.random.normal(ks[6], (1, H), jnp.float32),
        "g2": jnp.ones((1, H), jnp.float32),
        "be2": jnp.zeros((1, H), jnp.float32),
    }
    # Last layer is LinearZeroInit (zeros) in the module; use small nonzero
    # deterministic values so the affine path is actually exercised.
    W3 = 0.05 * jax.random.normal(ks[7], (H, 2 * C2), jnp.float32)
    b3 = 0.05 * jax.random.normal(ks[8], (1, 2 * C2), jnp.float32)
    # thops.split_feature "cross": even columns = shift, odd columns = scale.
    p["W3s"], p["W3c"] = W3[:, 0::2], W3[:, 1::2]
    p["b3s"], p["b3c"] = b3[:, 0::2], b3[:, 1::2]
    return p


if __name__ == "__main__":
    B, C, T = 2, 4, 16          # batch, in_channels, time
    Ccond, H = 4, 32            # cond_channels, hidden_channels

    key = jax.random.PRNGKey(0)
    kx, kc, kp = jax.random.split(key, 3)
    x = jax.random.normal(kx, (B, C, T), jnp.float32)         # NCT, like PyTorch
    cond = jax.random.normal(kc, (B, Ccond, T), jnp.float32)
    logdet0 = jnp.zeros((B,), jnp.float32)
    params = make_params(kp, C, Ccond, H)

    z, cond_out, logdet = flowstep_forward(params, x, cond, logdet0)
    jax.block_until_ready((z, logdet))

    z_ref, _, logdet_ref = flowstep_reference(params, x, cond, logdet0)
    assert jnp.allclose(z, z_ref, rtol=1e-4, atol=1e-4)
    assert jnp.allclose(logdet, logdet_ref, rtol=1e-4, atol=1e-4)

    # TODO(synk): LSTM/GRU coupling nets, 'additive' coupling, 'shuffle'/'reverse'
    # permutations and the reverse_flow direction are not implemented (this
    # kernel covers the invconv + affine + FF normal_flow configuration).

    print("KERNEL_OK")
</pallas_src>

<mosaic_0001>
module attributes {stable_mosaic.version = 11 : i64} {
  func.func @kernel(%arg0: i32, %arg1: i32, %arg2: memref<1x8x128xf32, #tpu.memory_space<vmem>>, %arg3: memref<1x8x128xf32, #tpu.memory_space<vmem>>, %arg4: memref<8x8xf32, #tpu.memory_space<vmem>>, %arg5: memref<32x8xf32, #tpu.memory_space<vmem>>, %arg6: memref<32x6xf32, #tpu.memory_space<vmem>>, %arg7: memref<32x32xf32, #tpu.memory_space<vmem>>, %arg8: memref<4x32xf32, #tpu.memory_space<vmem>>, %arg9: memref<1x8x128xf32, #tpu.memory_space<vmem>>, %arg10: memref<1x1x2x128xf32, #tpu.memory_space<vmem>>) attributes {dimension_semantics = [#tpu.dimension_semantics<parallel>, #tpu.dimension_semantics<parallel>], iteration_bounds = array<i64: 1, 1>, scalar_prefetch = 0 : i64, scratch_operands = 0 : i64, tpu.core_type = #tpu.core_type<tc>, window_params = [{transform_indices = @transform_0, window_bounds = array<i64: 1, 8, 128>}, {transform_indices = @transform_1, window_bounds = array<i64: 1, 8, 128>}, {pipeline_mode = #tpu.pipeline_mode<synchronous>, transform_indices = @transform_2, window_bounds = array<i64: 8, 8>}, {pipeline_mode = #tpu.pipeline_mode<synchronous>, transform_indices = @transform_3, window_bounds = array<i64: 32, 8>}, {pipeline_mode = #tpu.pipeline_mode<synchronous>, transform_indices = @transform_4, window_bounds = array<i64: 32, 6>}, {pipeline_mode = #tpu.pipeline_mode<synchronous>, transform_indices = @transform_5, window_bounds = array<i64: 32, 32>}, {pipeline_mode = #tpu.pipeline_mode<synchronous>, transform_indices = @transform_6, window_bounds = array<i64: 4, 32>}, {transform_indices = @transform_7, window_bounds = array<i64: 1, 8, 128>}, {transform_indices = @transform_8, window_bounds = array<i64: 1, 1, 2, 128>}]} {
    %c0 = arith.constant 0 : index
    %c0_0 = arith.constant 0 : index
    %c0_1 = arith.constant 0 : index
    %0 = vector.load %arg2[%c0, %c0_0, %c0_1] : memref<1x8x128xf32, #tpu.memory_space<vmem>>, vector<1x8x128xf32>
    %1 = vector.shape_cast %0 : vector<1x8x128xf32> to vector<8x128xf32>
    %c0_2 = arith.constant 0 : index
    %c0_3 = arith.constant 0 : index
    %c0_4 = arith.constant 0 : index
    %2 = vector.load %arg3[%c0_2, %c0_3, %c0_4] : memref<1x8x128xf32, #tpu.memory_space<vmem>>, vector<1x8x128xf32>
    %3 = vector.shape_cast %2 : vector<1x8x128xf32> to vector<8x128xf32>
    %c0_5 = arith.constant 0 : index
    %c0_6 = arith.constant 0 : index
    %4 = vector.load %arg5[%c0_5, %c0_6] : memref<32x8xf32, #tpu.memory_space<vmem>>, vector<8x1xf32>
    %c0_7 = arith.constant 0 : index
    %c1 = arith.constant 1 : index
    %5 = vector.load %arg5[%c0_7, %c1] : memref<32x8xf32, #tpu.memory_space<vmem>>, vector<32x1xf32>
    %c0_8 = arith.constant 0 : index
    %c2 = arith.constant 2 : index
    %6 = vector.load %arg5[%c0_8, %c2] : memref<32x8xf32, #tpu.memory_space<vmem>>, vector<32x1xf32>
    %c0_9 = arith.constant 0 : index
    %c3 = arith.constant 3 : index
    %7 = vector.load %arg5[%c0_9, %c3] : memref<32x8xf32, #tpu.memory_space<vmem>>, vector<32x1xf32>
    %c0_10 = arith.constant 0 : index
    %c4 = arith.constant 4 : index
    %8 = vector.load %arg5[%c0_10, %c4] : memref<32x8xf32, #tpu.memory_space<vmem>>, vector<32x1xf32>
    %c0_11 = arith.constant 0 : index
    %c5 = arith.constant 5 : index
    %9 = vector.load %arg5[%c0_11, %c5] : memref<32x8xf32, #tpu.memory_space<vmem>>, vector<32x1xf32>
    %c0_12 = arith.constant 0 : index
    %c6 = arith.constant 6 : index
    %10 = vector.load %arg5[%c0_12, %c6] : memref<32x8xf32, #tpu.memory_space<vmem>>, vector<32x1xf32>
    %c0_13 = arith.constant 0 : index
    %c7 = arith.constant 7 : index
    %11 = vector.load %arg5[%c0_13, %c7] : memref<32x8xf32, #tpu.memory_space<vmem>>, vector<4x1xf32>
    %c0_14 = arith.constant 0 : index
    %c0_15 = arith.constant 0 : index
    %12 = vector.load %arg4[%c0_14, %c0_15] : memref<8x8xf32, #tpu.memory_space<vmem>>, vector<8x1xf32>
    %13 = vector.extract_strided_slice %1 {offsets = [0, 0], sizes = [1, 128], strides = [1, 1]} : vector<8x128xf32> to vector<1x128xf32>
    %14 = vector.broadcast %12 : vector<8x1xf32> to vector<8x128xf32>
    %15 = vector.broadcast %13 : vector<1x128xf32> to vector<8x128xf32>
    %16 = arith.mulf %14, %15 : vector<8x128xf32>
    %17 = vector.broadcast %4 : vector<8x1xf32> to vector<8x128xf32>
    %18 = arith.addf %17, %16 : vector<8x128xf32>
    %c0_16 = arith.constant 0 : index
    %c1_17 = arith.constant 1 : index
    %19 = vector.load %arg4[%c0_16, %c1_17] : memref<8x8xf32, #tpu.memory_space<vmem>>, vector<8x1xf32>
    %20 = vector.extract_strided_slice %1 {offsets = [1, 0], sizes = [1, 128], strides = [1, 1]} : vector<8x128xf32> to vector<1x128xf32>
    %21 = vector.broadcast %19 : vector<8x1xf32> to vector<8x128xf32>
    %22 = vector.broadcast %20 : vector<1x128xf32> to vector<8x128xf32>
    %23 = arith.mulf %21, %22 : vector<8x128xf32>
    %24 = arith.addf %18, %23 : vector<8x128xf32>
    %c0_18 = arith.constant 0 : index
    %c2_19 = arith.constant 2 : index
    %25 = vector.load %arg4[%c0_18, %c2_19] : memref<8x8xf32, #tpu.memory_space<vmem>>, vector<8x1xf32>
    %26 = vector.extract_strided_slice %1 {offsets = [2, 0], sizes = [1, 128], strides = [1, 1]} : vector<8x128xf32> to vector<1x128xf32>
    %27 = vector.broadcast %25 : vector<8x1xf32> to vector<8x128xf32>
    %28 = vector.broadcast %26 : vector<1x128xf32> to vector<8x128xf32>
    %29 = arith.mulf %27, %28 : vector<8x128xf32>
    %30 = arith.addf %24, %29 : vector<8x128xf32>
    %c0_20 = arith.constant 0 : index
    %c3_21 = arith.constant 3 : index
    %31 = vector.load %arg4[%c0_20, %c3_21] : memref<8x8xf32, #tpu.memory_space<vmem>>, vector<8x1xf32>
    %32 = vector.extract_strided_slice %1 {offsets = [3, 0], sizes = [1, 128], strides = [1, 1]} : vector<8x128xf32> to vector<1x128xf32>
    %33 = vector.broadcast %31 : vector<8x1xf32> to vector<8x128xf32>
    %34 = vector.broadcast %32 : vector<1x128xf32> to vector<8x128xf32>
    %35 = arith.mulf %33, %34 : vector<8x128xf32>
    %36 = arith.addf %30, %35 : vector<8x128xf32>
    %c0_22 = arith.constant 0 : index
    %c4_23 = arith.constant 4 : index
    %37 = vector.load %arg4[%c0_22, %c4_23] : memref<8x8xf32, #tpu.memory_space<vmem>>, vector<8x1xf32>
    %38 = vector.extract_strided_slice %1 {offsets = [4, 0], sizes = [1, 128], strides = [1, 1]} : vector<8x128xf32> to vector<1x128xf32>
    %39 = vector.broadcast %37 : vector<8x1xf32> to vector<8x128xf32>
    %40 = vector.broadcast %38 : vector<1x128xf32> to vector<8x128xf32>
    %41 = arith.mulf %39, %40 : vector<8x128xf32>
    %42 = arith.addf %36, %41 : vector<8x128xf32>
    %c0_24 = arith.constant 0 : index
    %c5_25 = arith.constant 5 : index
    %43 = vector.load %arg4[%c0_24, %c5_25] : memref<8x8xf32, #tpu.memory_space<vmem>>, vector<8x1xf32>
    %44 = vector.extract_strided_slice %1 {offsets = [5, 0], sizes = [1, 128], strides = [1, 1]} : vector<8x128xf32> to vector<1x128xf32>
    %45 = vector.broadcast %43 : vector<8x1xf32> to vector<8x128xf32>
    %46 = vector.broadcast %44 : vector<1x128xf32> to vector<8x128xf32>
    %47 = arith.mulf %45, %46 : vector<8x128xf32>
    %48 = arith.addf %42, %47 : vector<8x128xf32>
    %c0_26 = arith.constant 0 : index
    %c6_27 = arith.constant 6 : index
    %49 = vector.load %arg4[%c0_26, %c6_27] : memref<8x8xf32, #tpu.memory_space<vmem>>, vector<8x1xf32>
    %50 = vector.extract_strided_slice %1 {offsets = [6, 0], sizes = [1, 128], strides = [1, 1]} : vector<8x128xf32> to vector<1x128xf32>
    %51 = vector.broadcast %49 : vector<8x1xf32> to vector<8x128xf32>
    %52 = vector.broadcast %50 : vector<1x128xf32> to vector<8x128xf32>
    %53 = arith.mulf %51, %52 : vector<8x128xf32>
    %54 = arith.addf %48, %53 : vector<8x128xf32>
    %c0_28 = arith.constant 0 : index
    %c7_29 = arith.constant 7 : index
    %55 = vector.load %arg4[%c0_28, %c7_29] : memref<8x8xf32, #tpu.memory_space<vmem>>, vector<8x1xf32>
    %56 = vector.extract_strided_slice %1 {offsets = [7, 0], sizes = [1, 128], strides = [1, 1]} : vector<8x128xf32> to vector<1x128xf32>
    %57 = vector.broadcast %55 : vector<8x1xf32> to vector<8x128xf32>
    %58 = vector.broadcast %56 : vector<1x128xf32> to vector<8x128xf32>
    %59 = arith.mulf %57, %58 : vector<8x128xf32>
    %60 = arith.addf %54, %59 : vector<8x128xf32>
    %61 = tpu.iota {dimensions = array<i32: 1>} : vector<2x128xi32>
    %c128_i32 = arith.constant 128 : i32
    %62 = arith.muli %arg1, %c128_i32 : i32
    %63 = vector.broadcast %62 : i32 to vector<2x128xi32>
    %64 = arith.addi %61, %63 : vector<2x128xi32>
    %c16_i32 = arith.constant 16 : i32
    %65 = vector.broadcast %c16_i32 : i32 to vector<2x128xi32>
    %66 = arith.cmpi slt, %64, %65 : vector<2x128xi32>
    %67 = vector.extract_strided_slice %60 {offsets = [0, 0], sizes = [2, 128], strides = [1, 1]} : vector<8x128xf32> to vector<2x128xf32>
    %68 = vector.extract_strided_slice %60 {offsets = [2, 0], sizes = [2, 128], strides = [1, 1]} : vector<8x128xf32> to vector<2x128xf32>
    %69 = vector.extract_strided_slice %3 {offsets = [0, 0], sizes = [4, 128], strides = [1, 1]} : vector<8x128xf32> to vector<4x128xf32>
    %70 = tpu.concatenate %67, %69 in 0 : vector<2x128xf32>, vector<4x128xf32> -> vector<6x128xf32>
    %c0_30 = arith.constant 0 : index
    %c0_31 = arith.constant 0 : index
    %71 = vector.load %arg6[%c0_30, %c0_31] : memref<32x6xf32, #tpu.memory_space<vmem>>, vector<32x6xf32>
    %cst = arith.constant dense<0.000000e+00> : vector<32x128xf32>
    %72 = tpu.matmul %71, %70, %cst {dimension_numbers = #tpu.dot_dimension_numbers<[1], [0], [0], [1], [0, 0, 1, 1], [], []>, precision = #tpu.contract_precision<fp32>} : vector<32x6xf32>, vector<6x128xf32>, vector<32x128xf32> -> vector<32x128xf32>
    %73 = vector.broadcast %5 : vector<32x1xf32> to vector<32x128xf32>
    %74 = arith.addf %72, %73 : vector<32x128xf32>
    %cst_32 = arith.constant dense<0.000000e+00> : vector<128xf32>
    %75 = vector.multi_reduction <add>, %74, %cst_32 [0] : vector<32x128xf32> to vector<128xf32>
    %76 = vector.shape_cast %75 : vector<128xf32> to vector<1x128xf32>
    %cst_33 = arith.constant 3.200000e+01 : f32
    %77 = vector.broadcast %cst_33 : f32 to vector<1x128xf32>
    %78 = arith.divf %76, %77 : vector<1x128xf32>
    %79 = arith.mulf %74, %74 : vector<32x128xf32>
    %cst_34 = arith.constant dense<0.000000e+00> : vector<128xf32>
    %80 = vector.multi_reduction <add>, %79, %cst_34 [0] : vector<32x128xf32> to vector<128xf32>
    %81 = vector.shape_cast %80 : vector<128xf32> to vector<1x128xf32>
    %cst_35 = arith.constant 3.200000e+01 : f32
    %82 = vector.broadcast %cst_35 : f32 to vector<1x128xf32>
    %83 = arith.divf %81, %82 : vector<1x128xf32>
    %84 = arith.mulf %78, %78 : vector<1x128xf32>
    %85 = arith.subf %83, %84 : vector<1x128xf32>
    %86 = vector.broadcast %78 : vector<1x128xf32> to vector<32x128xf32>
    %87 = arith.subf %74, %86 : vector<32x128xf32>
    %cst_36 = arith.constant 9.99999974E-6 : f32
    %88 = vector.broadcast %cst_36 : f32 to vector<1x128xf32>
    %89 = arith.addf %85, %88 : vector<1x128xf32>
    %90 = math.rsqrt %89 : vector<1x128xf32>
    %91 = vector.broadcast %90 : vector<1x128xf32> to vector<32x128xf32>
    %92 = arith.mulf %87, %91 : vector<32x128xf32>
    %93 = vector.broadcast %6 : vector<32x1xf32> to vector<32x128xf32>
    %94 = arith.mulf %92, %93 : vector<32x128xf32>
    %95 = vector.broadcast %7 : vector<32x1xf32> to vector<32x128xf32>
    %96 = arith.addf %94, %95 : vector<32x128xf32>
    %cst_37 = arith.constant 0.000000e+00 : f32
    %97 = vector.broadcast %cst_37 : f32 to vector<32x128xf32>
    %98 = arith.maximumf %96, %97 : vector<32x128xf32>
    %c0_38 = arith.constant 0 : index
    %c0_39 = arith.constant 0 : index
    %99 = vector.load %arg7[%c0_38, %c0_39] : memref<32x32xf32, #tpu.memory_space<vmem>>, vector<32x32xf32>
    %cst_40 = arith.constant dense<0.000000e+00> : vector<32x128xf32>
    %100 = tpu.matmul %99, %98, %cst_40 {dimension_numbers = #tpu.dot_dimension_numbers<[1], [0], [0], [1], [0, 0, 1, 1], [], []>, precision = #tpu.contract_precision<fp32>} : vector<32x32xf32>, vector<32x128xf32>, vector<32x128xf32> -> vector<32x128xf32>
    %101 = vector.broadcast %8 : vector<32x1xf32> to vector<32x128xf32>
    %102 = arith.addf %100, %101 : vector<32x128xf32>
    %cst_41 = arith.constant dense<0.000000e+00> : vector<128xf32>
    %103 = vector.multi_reduction <add>, %102, %cst_41 [0] : vector<32x128xf32> to vector<128xf32>
    %104 = vector.shape_cast %103 : vector<128xf32> to vector<1x128xf32>
    %cst_42 = arith.constant 3.200000e+01 : f32
    %105 = vector.broadcast %cst_42 : f32 to vector<1x128xf32>
    %106 = arith.divf %104, %105 : vector<1x128xf32>
    %107 = arith.mulf %102, %102 : vector<32x128xf32>
    %cst_43 = arith.constant dense<0.000000e+00> : vector<128xf32>
    %108 = vector.multi_reduction <add>, %107, %cst_43 [0] : vector<32x128xf32> to vector<128xf32>
    %109 = vector.shape_cast %108 : vector<128xf32> to vector<1x128xf32>
    %cst_44 = arith.constant 3.200000e+01 : f32
    %110 = vector.broadcast %cst_44 : f32 to vector<1x128xf32>
    %111 = arith.divf %109, %110 : vector<1x128xf32>
    %112 = arith.mulf %106, %106 : vector<1x128xf32>
    %113 = arith.subf %111, %112 : vector<1x128xf32>
    %114 = vector.broadcast %106 : vector<1x128xf32> to vector<32x128xf32>
    %115 = arith.subf %102, %114 : vector<32x128xf32>
    %cst_45 = arith.constant 9.99999974E-6 : f32
    %116 = vector.broadcast %cst_45 : f32 to vector<1x128xf32>
    %117 = arith.addf %113, %116 : vector<1x128xf32>
    %118 = math.rsqrt %117 : vector<1x128xf32>
    %119 = vector.broadcast %118 : vector<1x128xf32> to vector<32x128xf32>
    %120 = arith.mulf %115, %119 : vector<32x128xf32>
    %121 = vector.broadcast %9 : vector<32x1xf32> to vector<32x128xf32>
    %122 = arith.mulf %120, %121 : vector<32x128xf32>
    %123 = vector.broadcast %10 : vector<32x1xf32> to vector<32x128xf32>
    %124 = arith.addf %122, %123 : vector<32x128xf32>
    %cst_46 = arith.constant 0.000000e+00 : f32
    %125 = vector.broadcast %cst_46 : f32 to vector<32x128xf32>
    %126 = arith.maximumf %124, %125 : vector<32x128xf32>
    %c0_47 = arith.constant 0 : index
    %c0_48 = arith.constant 0 : index
    %127 = vector.load %arg8[%c0_47, %c0_48] : memref<4x32xf32, #tpu.memory_space<vmem>>, vector<4x32xf32>
    %cst_49 = arith.constant dense<0.000000e+00> : vector<4x128xf32>
    %128 = tpu.matmul %127, %126, %cst_49 {dimension_numbers = #tpu.dot_dimension_numbers<[1], [0], [0], [1], [0, 0, 1, 1], [], []>, precision = #tpu.contract_precision<fp32>} : vector<4x32xf32>, vector<32x128xf32>, vector<4x128xf32> -> vector<4x128xf32>
    %129 = vector.broadcast %11 : vector<4x1xf32> to vector<4x128xf32>
    %130 = arith.addf %128, %129 : vector<4x128xf32>
    %131 = vector.extract_strided_slice %130 {offsets = [0, 0], sizes = [2, 128], strides = [1, 1]} : vector<4x128xf32> to vector<2x128xf32>
    %132 = vector.extract_strided_slice %130 {offsets = [2, 0], sizes = [2, 128], strides = [1, 1]} : vector<4x128xf32> to vector<2x128xf32>
    %133 = arith.negf %132 : vector<2x128xf32>
    %134 = math.exp %133 : vector<2x128xf32>
    %cst_50 = arith.constant 1.000000e+00 : f32
    %135 = vector.broadcast %cst_50 : f32 to vector<2x128xf32>
    %136 = arith.addf %135, %134 : vector<2x128xf32>
    %137 = arith.divf %135, %136 : vector<2x128xf32>
    %cst_51 = arith.constant 9.99999997E-7 : f32
    %138 = vector.broadcast %cst_51 : f32 to vector<2x128xf32>
    %139 = arith.addf %137, %138 : vector<2x128xf32>
    %140 = arith.addf %68, %131 : vector<2x128xf32>
    %141 = arith.mulf %140, %139 : vector<2x128xf32>
    %142 = math.log %139 : vector<2x128xf32>
    %cst_52 = arith.constant 0.000000e+00 : f32
    %143 = vector.broadcast %cst_52 : f32 to vector<2x128xf32>
    %144 = arith.select %66, %142, %143 : vector<2x128xi1>, vector<2x128xf32>
    %145 = vector.shape_cast %144 : vector<2x128xf32> to vector<1x2x128xf32>
    %cst_53 = arith.constant dense<0.000000e+00> : vector<1xf32>
    %146 = vector.multi_reduction <add>, %145, %cst_53 [1, 2] : vector<1x2x128xf32> to vector<1xf32>
    %147 = vector.shape_cast %146 : vector<1xf32> to vector<1x1x1xf32>
    %148 = vector.extract %147[0, 0, 0] : f32 from vector<1x1x1xf32>
    %149 = vector.broadcast %148 : f32 to vector<1x128xf32>
    %150 = vector.extract_strided_slice %60 {offsets = [4, 0], sizes = [2, 128], strides = [1, 1]} : vector<8x128xf32> to vector<2x128xf32>
    %151 = vector.extract_strided_slice %60 {offsets = [6, 0], sizes = [2, 128], strides = [1, 1]} : vector<8x128xf32> to vector<2x128xf32>
    %152 = vector.extract_strided_slice %3 {offsets = [4, 0], sizes = [4, 128], strides = [1, 1]} : vector<8x128xf32> to vector<4x128xf32>
    %153 = tpu.concatenate %150, %152 in 0 : vector<2x128xf32>, vector<4x128xf32> -> vector<6x128xf32>
    %c0_54 = arith.constant 0 : index
    %c0_55 = arith.constant 0 : index
    %154 = vector.load %arg6[%c0_54, %c0_55] : memref<32x6xf32, #tpu.memory_space<vmem>>, vector<32x6xf32>
    %cst_56 = arith.constant dense<0.000000e+00> : vector<32x128xf32>
    %155 = tpu.matmul %154, %153, %cst_56 {dimension_numbers = #tpu.dot_dimension_numbers<[1], [0], [0], [1], [0, 0, 1, 1], [], []>, precision = #tpu.contract_precision<fp32>} : vector<32x6xf32>, vector<6x128xf32>, vector<32x128xf32> -> vector<32x128xf32>
    %156 = vector.broadcast %5 : vector<32x1xf32> to vector<32x128xf32>
    %157 = arith.addf %155, %156 : vector<32x128xf32>
    %cst_57 = arith.constant dense<0.000000e+00> : vector<128xf32>
    %158 = vector.multi_reduction <add>, %157, %cst_57 [0] : vector<32x128xf32> to vector<128xf32>
    %159 = vector.shape_cast %158 : vector<128xf32> to vector<1x128xf32>
    %cst_58 = arith.constant 3.200000e+01 : f32
    %160 = vector.broadcast %cst_58 : f32 to vector<1x128xf32>
    %161 = arith.divf %159, %160 : vector<1x128xf32>
    %162 = arith.mulf %157, %157 : vector<32x128xf32>
    %cst_59 = arith.constant dense<0.000000e+00> : vector<128xf32>
    %163 = vector.multi_reduction <add>, %162, %cst_59 [0] : vector<32x128xf32> to vector<128xf32>
    %164 = vector.shape_cast %163 : vector<128xf32> to vector<1x128xf32>
    %cst_60 = arith.constant 3.200000e+01 : f32
    %165 = vector.broadcast %cst_60 : f32 to vector<1x128xf32>
    %166 = arith.divf %164, %165 : vector<1x128xf32>
    %167 = arith.mulf %161, %161 : vector<1x128xf32>
    %168 = arith.subf %166, %167 : vector<1x128xf32>
    %169 = vector.broadcast %161 : vector<1x128xf32> to vector<32x128xf32>
    %170 = arith.subf %157, %169 : vector<32x128xf32>
    %cst_61 = arith.constant 9.99999974E-6 : f32
    %171 = vector.broadcast %cst_61 : f32 to vector<1x128xf32>
    %172 = arith.addf %168, %171 : vector<1x128xf32>
    %173 = math.rsqrt %172 : vector<1x128xf32>
    %174 = vector.broadcast %173 : vector<1x128xf32> to vector<32x128xf32>
    %175 = arith.mulf %170, %174 : vector<32x128xf32>
    %176 = vector.broadcast %6 : vector<32x1xf32> to vector<32x128xf32>
    %177 = arith.mulf %175, %176 : vector<32x128xf32>
    %178 = vector.broadcast %7 : vector<32x1xf32> to vector<32x128xf32>
    %179 = arith.addf %177, %178 : vector<32x128xf32>
    %cst_62 = arith.constant 0.000000e+00 : f32
    %180 = vector.broadcast %cst_62 : f32 to vector<32x128xf32>
    %181 = arith.maximumf %179, %180 : vector<32x128xf32>
    %c0_63 = arith.constant 0 : index
    %c0_64 = arith.constant 0 : index
    %182 = vector.load %arg7[%c0_63, %c0_64] : memref<32x32xf32, #tpu.memory_space<vmem>>, vector<32x32xf32>
    %cst_65 = arith.constant dense<0.000000e+00> : vector<32x128xf32>
    %183 = tpu.matmul %182, %181, %cst_65 {dimension_numbers = #tpu.dot_dimension_numbers<[1], [0], [0], [1], [0, 0, 1, 1], [], []>, precision = #tpu.contract_precision<fp32>} : vector<32x32xf32>, vector<32x128xf32>, vector<32x128xf32> -> vector<32x128xf32>
    %184 = vector.broadcast %8 : vector<32x1xf32> to vector<32x128xf32>
    %185 = arith.addf %183, %184 : vector<32x128xf32>
    %cst_66 = arith.constant dense<0.000000e+00> : vector<128xf32>
    %186 = vector.multi_reduction <add>, %185, %cst_66 [0] : vector<32x128xf32> to vector<128xf32>
    %187 = vector.shape_cast %186 : vector<128xf32> to vector<1x128xf32>
    %cst_67 = arith.constant 3.200000e+01 : f32
    %188 = vector.broadcast %cst_67 : f32 to vector<1x128xf32>
    %189 = arith.divf %187, %188 : vector<1x128xf32>
    %190 = arith.mulf %185, %185 : vector<32x128xf32>
    %cst_68 = arith.constant dense<0.000000e+00> : vector<128xf32>
    %191 = vector.multi_reduction <add>, %190, %cst_68 [0] : vector<32x128xf32> to vector<128xf32>
    %192 = vector.shape_cast %191 : vector<128xf32> to vector<1x128xf32>
    %cst_69 = arith.constant 3.200000e+01 : f32
    %193 = vector.broadcast %cst_69 : f32 to vector<1x128xf32>
    %194 = arith.divf %192, %193 : vector<1x128xf32>
    %195 = arith.mulf %189, %189 : vector<1x128xf32>
    %196 = arith.subf %194, %195 : vector<1x128xf32>
    %197 = vector.broadcast %189 : vector<1x128xf32> to vector<32x128xf32>
    %198 = arith.subf %185, %197 : vector<32x128xf32>
    %cst_70 = arith.constant 9.99999974E-6 : f32
    %199 = vector.broadcast %cst_70 : f32 to vector<1x128xf32>
    %200 = arith.addf %196, %199 : vector<1x128xf32>
    %201 = math.rsqrt %200 : vector<1x128xf32>
    %202 = vector.broadcast %201 : vector<1x128xf32> to vector<32x128xf32>
    %203 = arith.mulf %198, %202 : vector<32x128xf32>
    %204 = vector.broadcast %9 : vector<32x1xf32> to vector<32x128xf32>
    %205 = arith.mulf %203, %204 : vector<32x128xf32>
    %206 = vector.broadcast %10 : vector<32x1xf32> to vector<32x128xf32>
    %207 = arith.addf %205, %206 : vector<32x128xf32>
    %cst_71 = arith.constant 0.000000e+00 : f32
    %208 = vector.broadcast %cst_71 : f32 to vector<32x128xf32>
    %209 = arith.maximumf %207, %208 : vector<32x128xf32>
    %c0_72 = arith.constant 0 : index
    %c0_73 = arith.constant 0 : index
    %210 = vector.load %arg8[%c0_72, %c0_73] : memref<4x32xf32, #tpu.memory_space<vmem>>, vector<4x32xf32>
    %cst_74 = arith.constant dense<0.000000e+00> : vector<4x128xf32>
    %211 = tpu.matmul %210, %209, %cst_74 {dimension_numbers = #tpu.dot_dimension_numbers<[1], [0], [0], [1], [0, 0, 1, 1], [], []>, precision = #tpu.contract_precision<fp32>} : vector<4x32xf32>, vector<32x128xf32>, vector<4x128xf32> -> vector<4x128xf32>
    %212 = vector.broadcast %11 : vector<4x1xf32> to vector<4x128xf32>
    %213 = arith.addf %211, %212 : vector<4x128xf32>
    %214 = vector.extract_strided_slice %213 {offsets = [0, 0], sizes = [2, 128], strides = [1, 1]} : vector<4x128xf32> to vector<2x128xf32>
    %215 = vector.extract_strided_slice %213 {offsets = [2, 0], sizes = [2, 128], strides = [1, 1]} : vector<4x128xf32> to vector<2x128xf32>
    %216 = arith.negf %215 : vector<2x128xf32>
    %217 = math.exp %216 : vector<2x128xf32>
    %cst_75 = arith.constant 1.000000e+00 : f32
    %218 = vector.broadcast %cst_75 : f32 to vector<2x128xf32>
    %219 = arith.addf %218, %217 : vector<2x128xf32>
    %220 = arith.divf %218, %219 : vector<2x128xf32>
    %cst_76 = arith.constant 9.99999997E-7 : f32
    %221 = vector.broadcast %cst_76 : f32 to vector<2x128xf32>
    %222 = arith.addf %220, %221 : vector<2x128xf32>
    %223 = arith.addf %151, %214 : vector<2x128xf32>
    %224 = arith.mulf %223, %222 : vector<2x128xf32>
    %225 = math.log %222 : vector<2x128xf32>
    %cst_77 = arith.constant 0.000000e+00 : f32
    %226 = vector.broadcast %cst_77 : f32 to vector<2x128xf32>
    %227 = arith.select %66, %225, %226 : vector<2x128xi1>, vector<2x128xf32>
    %228 = vector.shape_cast %227 : vector<2x128xf32> to vector<1x2x128xf32>
    %cst_78 = arith.constant dense<0.000000e+00> : vector<1xf32>
    %229 = vector.multi_reduction <add>, %228, %cst_78 [1, 2] : vector<1x2x128xf32> to vector<1xf32>
    %230 = vector.shape_cast %229 : vector<1xf32> to vector<1x1x1xf32>
    %231 = vector.extract %230[0, 0, 0] : f32 from vector<1x1x1xf32>
    %232 = vector.broadcast %231 : f32 to vector<1x128xf32>
    %233 = tpu.concatenate %67, %141, %150, %224 in 0 : vector<2x128xf32>, vector<2x128xf32>, vector<2x128xf32>, vector<2x128xf32> -> vector<8x128xf32>
    %234 = vector.shape_cast %233 : vector<8x128xf32> to vector<1x8x128xf32>
    %c0_79 = arith.constant 0 : index
    %c0_80 = arith.constant 0 : index
    %c0_81 = arith.constant 0 : index
    %235 = vector.load %arg9[%c0_79, %c0_80, %c0_81] : memref<1x8x128xf32, #tpu.memory_space<vmem>>, vector<1x8x128xf32>
    tpu.vector_store %arg9[%c0_79, %c0_80, %c0_81], %234 {strides = array<i32>} : memref<1x8x128xf32, #tpu.memory_space<vmem>>, vector<1x8x128xf32>,
    %236 = tpu.concatenate %149, %232 in 0 : vector<1x128xf32>, vector<1x128xf32> -> vector<2x128xf32>
    %237 = vector.shape_cast %236 : vector<2x128xf32> to vector<1x1x2x128xf32>
    %c0_82 = arith.constant 0 : index
    %c0_83 = arith.constant 0 : index
    %c0_84 = arith.constant 0 : index
    %c0_85 = arith.constant 0 : index
    %238 = vector.load %arg10[%c0_82, %c0_83, %c0_84, %c0_85] : memref<1x1x2x128xf32, #tpu.memory_space<vmem>>, vector<1x1x2x128xf32>
    tpu.vector_store %arg10[%c0_82, %c0_83, %c0_84, %c0_85], %237 {strides = array<i32>} : memref<1x1x2x128xf32, #tpu.memory_space<vmem>>, vector<1x1x2x128xf32>,
    return
  }
  func.func @transform_0(%arg0: i32, %arg1: i32) -> (i32, i32, i32) {
    %c0_i32 = arith.constant 0 : i32
    %c0_i32_0 = arith.constant 0 : i32
    return %arg0, %c0_i32, %arg1 : i32, i32, i32
  }
  func.func @transform_1(%arg0: i32, %arg1: i32) -> (i32, i32, i32) {
    %c0_i32 = arith.constant 0 : i32
    %c0_i32_0 = arith.constant 0 : i32
    return %arg0, %c0_i32, %arg1 : i32, i32, i32
  }
  func.func @transform_2(%arg0: i32, %arg1: i32) -> (i32, i32) {
    %c0_i32 = arith.constant 0 : i32
    %c0_i32_0 = arith.constant 0 : i32
    %c0_i32_1 = arith.constant 0 : i32
    return %c0_i32, %c0_i32_0 : i32, i32
  }
  func.func @transform_3(%arg0: i32, %arg1: i32) -> (i32, i32) {
    %c0_i32 = arith.constant 0 : i32
    %c0_i32_0 = arith.constant 0 : i32
    %c0_i32_1 = arith.constant 0 : i32
    return %c0_i32, %c0_i32_0 : i32, i32
  }
  func.func @transform_4(%arg0: i32, %arg1: i32) -> (i32, i32) {
    %c0_i32 = arith.constant 0 : i32
    %c0_i32_0 = arith.constant 0 : i32
    %c0_i32_1 = arith.constant 0 : i32
    return %c0_i32, %c0_i32_0 : i32, i32
  }
  func.func @transform_5(%arg0: i32, %arg1: i32) -> (i32, i32) {
    %c0_i32 = arith.constant 0 : i32
    %c0_i32_0 = arith.constant 0 : i32
    %c0_i32_1 = arith.constant 0 : i32
    return %c0_i32, %c0_i32_0 : i32, i32
  }
  func.func @transform_6(%arg0: i32, %arg1: i32) -> (i32, i32) {
    %c0_i32 = arith.constant 0 : i32
    %c0_i32_0 = arith.constant 0 : i32
    %c0_i32_1 = arith.constant 0 : i32
    return %c0_i32, %c0_i32_0 : i32, i32
  }
  func.func @transform_7(%arg0: i32, %arg1: i32) -> (i32, i32, i32) {
    %c0_i32 = arith.constant 0 : i32
    %c0_i32_0 = arith.constant 0 : i32
    return %arg0, %c0_i32, %arg1 : i32, i32, i32
  }
  func.func @transform_8(%arg0: i32, %arg1: i32) -> (i32, i32, i32, i32) {
    %c0_i32 = arith.constant 0 : i32
    %c0_i32_0 = arith.constant 0 : i32
    %c0_i32_1 = arith.constant 0 : i32
    return %arg0, %arg1, %c0_i32, %c0_i32_0 : i32, i32, i32, i32
  }
}

</mosaic_0001>

<llo_original>
// kernel: tpu_custom_call.1
$region0: #{tpu_custom_call.1}
  #allocation0 [shape = 'u32[]', space=smem, size = 0x4, offset = 0x4, fixed_abs, tag = 'smem constant byte address 0x4 - core index']
  #allocation1 [shape = 'u32[144,128]{1,0:T(1,128)}', space=vmem, size = 0x12000, scoped, tag = 'internal scratch']
  %s0 = inlined_call_operand.vmem [shape: f32[1,8,128], index: 0, kind: input, shape index: {}]
  %s1 = inlined_call_operand.vmem [shape: f32[1,8,128], index: 1, kind: input, shape index: {}]
  %s2 = inlined_call_operand.vmem [shape: f32[8,8], index: 2, kind: input, shape index: {}]
  %s3 = inlined_call_operand.vmem [shape: f32[32,8], index: 3, kind: input, shape index: {}]
  %s4 = inlined_call_operand.vmem [shape: f32[32,6], index: 4, kind: input, shape index: {}]
  %s5 = inlined_call_operand.vmem [shape: f32[32,32], index: 5, kind: input, shape index: {}]
  %s6 = inlined_call_operand.vmem [shape: f32[4,32], index: 6, kind: input, shape index: {}]
  %s7 = inlined_call_operand.hbm [shape: f32[1,8,128], index: 7, kind: output, shape index: {0}]
  %s8 = inlined_call_operand.hbm [shape: f32[1,1,2,128], index: 8, kind: output, shape index: {1}]
  %9 = xla_tuple %s7, %s8
  %s10 = sld [smem:[#allocation0]]
  $region46: #{tpu_custom_call.1} parent=0
    _
  %s12 = ssub.s32 1, %s10
  %s13 = scalar_select 0, %s12, %s10
  $region1: #{tpu_custom_call.1} parent=0
    #allocation2 [shape = 'u8[4096]{0}', space=vmem, size = 0x1000, scoped, tag = 'output window, operand 0, single buffered']
    #allocation3 [shape = 's32[1]{0}', space=sflag, size = 0x4, scoped, tag = 'scoped memory for tpu_custom_call.1']
    #allocation4 [shape = 'u8[1024]{0}', space=vmem, size = 0x400, scoped, tag = 'output window, operand 1, single buffered']
    #allocation5 [shape = 's32[1]{0}', space=sflag, size = 0x4, scoped, tag = 'scoped memory for tpu_custom_call.1']
    %14 = vsyncpa [#allocation3], 0
    %15 = vsyncpa [#allocation5], 0
    // Predicated region
    $region2: #{tpu_custom_call.1} parent=1 // pred_check
      _
    $region3: #{tpu_custom_call.1} parent=1 // pred_check_branch
      %17 = sbr.rel (0) target = $region5
    $region4: #{tpu_custom_call.1} parent=1 // pred_region
      _
    $region5: #{tpu_custom_call.1} parent=1 // pred_fallthru
      _
    // Predicated region
    $region6: #{tpu_custom_call.1} parent=1 // pred_check
      _
    $region7: #{tpu_custom_call.1} parent=1 // pred_check_branch
      %19 = sbr.rel (0) target = $region9
    $region8: #{tpu_custom_call.1} parent=1 // pred_region
      _
    $region9: #{tpu_custom_call.1} parent=1 // pred_fallthru
      _
    // Predicated region
    $region10: #{tpu_custom_call.1} parent=1 // pred_check
      _
    $region11: #{tpu_custom_call.1} parent=1 // pred_check_branch
      %21 = sbr.rel (0) target = $region13
    $region12: #{tpu_custom_call.1} parent=1 // pred_region
      _
    $region13: #{tpu_custom_call.1} parent=1 // pred_fallthru
      _
    // Predicated region
    $region14: #{tpu_custom_call.1} parent=1 // pred_check
      _
    $region15: #{tpu_custom_call.1} parent=1 // pred_check_branch
      %23 = sbr.rel (0) target = $region17
    $region16: #{tpu_custom_call.1} parent=1 // pred_region
      _
    $region17: #{tpu_custom_call.1} parent=1 // pred_fallthru
      _
    // Predicated region
    $region18: #{tpu_custom_call.1} parent=1 // pred_check
      _
    $region19: #{tpu_custom_call.1} parent=1 // pred_check_branch
      %25 = sbr.rel (0) target = $region21
    $region20: #{tpu_custom_call.1} parent=1 // pred_region
      _
    $region21: #{tpu_custom_call.1} parent=1 // pred_fallthru
      _
    // Predicated region
    $region22: #{tpu_custom_call.1} parent=1 // pred_check
      _
    $region23: #{tpu_custom_call.1} parent=1 // pred_check_branch
      %27 = sbr.rel (0) target = $region25
    $region24: #{tpu_custom_call.1} parent=1 // pred_region
      _
    $region25: #{tpu_custom_call.1} parent=1 // pred_fallthru
      _
    // Predicated region
    $region26: #{tpu_custom_call.1} parent=1 // pred_check
      _
    $region27: #{tpu_custom_call.1} parent=1 // pred_check_branch
      %29 = sbr.rel (0) target = $region29
    $region28: #{tpu_custom_call.1} parent=1 // pred_region
      _
    $region29: #{tpu_custom_call.1} parent=1 // pred_fallthru
      _
    %v30 = vld [vmem:[%s0] sm:$0xff]
    %v31 = vld [vmem:[%s1] sm:$0xff]
    %v32 = vld [vmem:[%s3] sm:$0xff]
    %v33 = vld [vmem:[%s3 + $0x8] sm:$0xff]
    %v34 = vld [vmem:[%s3 + $0x10] sm:$0xff]
    %v35 = vld [vmem:[%s3 + $0x18] sm:$0xff]
    %v36 = vld [vmem:[%s3] sm:$0xf]
    %v37 = vld [vmem:[%s2] sm:$0xff]
    %39 = vset.pattern.permute.xlu0 0
    %40 = vperm.xlu0 %39, %v37
    %v41 = vpop.permute.xlu0 %40
    %v43 = vlaneseq
    %v44 = vshrl.u32 %v43, 7
    %v45 = vsub.s32 0, %v44
    %v46 = vrot.slane %v30, %v45
    %v47 = vmul.f32 %v41, %v46
    %49 = vset.pattern.permute.xlu0 0
    %50 = vperm.xlu0 %49, %v32
    %v51 = vpop.permute.xlu0 %50
    %v53 = vadd.f32 %v51, %v47
    %54 = vset.pattern.permute.xlu0 1
    %55 = vperm.xlu0 %54, %v37
    %v56 = vpop.permute.xlu0 %55
    %v58 = vlaneseq
    %v59 = vshrl.u32 %v58, 7
    %v60 = vsub.s32 1, %v59
    %v61 = vrot.slane %v30, %v60
    %v62 = vmul.f32 %v56, %v61
    %v63 = vadd.f32 %v53, %v62
    %64 = vset.pattern.permute.xlu0 2
    %65 = vperm.xlu0 %64, %v37
    %v66 = vpop.permute.xlu0 %65
    %v68 = vlaneseq
    %v69 = vshrl.u32 %v68, 7
    %v70 = vsub.s32 2, %v69
    %v71 = vrot.slane %v30, %v70
    %v72 = vmul.f32 %v66, %v71
    %v73 = vadd.f32 %v63, %v72
    %74 = vset.pattern.permute.xlu0 3
    %75 = vperm.xlu0 %74, %v37
    %v76 = vpop.permute.xlu0 %75
    %v78 = vlaneseq
    %v79 = vshrl.u32 %v78, 7
    %v80 = vsub.s32 3, %v79
    %v81 = vrot.slane %v30, %v80
    %v82 = vmul.f32 %v76, %v81
    %v83 = vadd.f32 %v73, %v82
    %84 = vset.pattern.permute.xlu0 4
    %85 = vperm.xlu0 %84, %v37
    %v86 = vpop.permute.xlu0 %85
    %v88 = vlaneseq
    %v89 = vshrl.u32 %v88, 7
    %v90 = vsub.s32 4, %v89
    %v91 = vrot.slane %v30, %v90
    %v92 = vmul.f32 %v86, %v91
    %v93 = vadd.f32 %v83, %v92
    %94 = vset.pattern.permute.xlu0 5
    %95 = vperm.xlu0 %94, %v37
    %v96 = vpop.permute.xlu0 %95
    %v98 = vlaneseq
    %v99 = vshrl.u32 %v98, 7
    %v100 = vsub.s32 5, %v99
    %v101 = vrot.slane %v30, %v100
    %v102 = vmul.f32 %v96, %v101
    %v103 = vadd.f32 %v93, %v102
    %104 = vset.pattern.permute.xlu0 6
    %105 = vperm.xlu0 %104, %v37
    %v106 = vpop.permute.xlu0 %105
    %v108 = vlaneseq
    %v109 = vshrl.u32 %v108, 7
    %v110 = vsub.s32 6, %v109
    %v111 = vrot.slane %v30, %v110
    %v112 = vmul.f32 %v106, %v111
    %v113 = vadd.f32 %v103, %v112
    %114 = vset.pattern.permute.xlu0 7
    %115 = vperm.xlu0 %114, %v37
    %v116 = vpop.permute.xlu0 %115
    %v118 = vlaneseq
    %v119 = vshrl.u32 %v118, 7
    %v120 = vsub.s32 7, %v119
    %v121 = vrot.slane %v30, %v120
    %v122 = vmul.f32 %v116, %v121
    %v123 = vadd.f32 %v113, %v122
    %v124 = vlaneseq
    %v125 = vand.u32 %v124, 127
    %s126 = smul.u32 0, 128
    %v127 = vstv %s126
    %v128 = vadd.s32 %v125, %v127
    %vm129 = vcmp.lt.s32.totalorder %v128, 16
    %v131 = vrot.slane %v31, 6
    %vm133 = vcmask 1041408
    %v134 = vsel %vm133, %v123, %v131
    %v135 = vld [vmem:[%s4] sm:$0xff]
    %v136 = vld [vmem:[%s4 + $0x8] sm:$0xff]
    %v137 = vld [vmem:[%s4 + $0x10] sm:$0xff]
    %v138 = vld [vmem:[%s4 + $0x18] sm:$0xff]
    %139 = vset.pattern.permute.xlu0 1
    %140 = vperm.xlu0 %139, %v32
    %v141 = vpop.permute.xlu0 %140
    %144 = vset.pattern.permute.xlu0 1
    %145 = vperm.xlu0 %144, %v33
    %v146 = vpop.permute.xlu0 %145
    %149 = vset.pattern.permute.xlu0 1
    %150 = vperm.xlu0 %149, %v34
    %v151 = vpop.permute.xlu0 %150
    %154 = vset.pattern.permute.xlu0 1
    %155 = vperm.xlu0 %154, %v35
    %v156 = vpop.permute.xlu0 %155
    %vm158 = vcmask 48128
    %v160 = vsel %vm158, %v135, 0
    %v163 = vsel %vm158, %v136, 0
    %v166 = vsel %vm158, %v137, 0
    %v169 = vsel %vm158, %v138, 0
    %vm171 = vcmask 1045504
    %v173 = vsel %vm171, %v134, 0
    %175 = vmatprep.subr.mxu0 0.0
    %v176 = vand.u32 %v173, 4294901760
    %177 = vmatpush1.msra.mxu0 %v176
    %178 = vmatprep.subr.mxu0 0.0
    %179 = vmatpush1.msra.mxu0 0.0
    %180 = vmatprep.subr.mxu0 0.0
    %181 = vmatpush1.msra.mxu0 0.0
    %182 = vmatprep.subr.mxu0 0.0
    %183 = vmatpush1.msra.mxu0 0.0
    %184 = vmatprep.subr.mxu0 0.0
    %185 = vmatpush1.msra.mxu0 0.0
    %186 = vmatprep.subr.mxu0 0.0
    %187 = vmatpush1.msra.mxu0 0.0
    %188 = vmatprep.subr.mxu0 0.0
    %189 = vmatpush1.msra.mxu0 0.0
    %190 = vmatprep.subr.mxu0 0.0
    %191 = vmatpush1.msra.mxu0 0.0
    %192 = vmatprep.subr.mxu0 0.0
    %193 = vmatpush1.msra.mxu0 0.0
    %194 = vmatprep.subr.mxu0 0.0
    %195 = vmatpush1.msra.mxu0 0.0
    %196 = vmatprep.subr.mxu0 0.0
    %197 = vmatpush1.msra.mxu0 0.0
    %198 = vmatprep.subr.mxu0 0.0
    %199 = vmatpush1.msra.mxu0 0.0
    %200 = vmatprep.subr.mxu0 0.0
    %201 = vmatpush1.msra.mxu0 0.0
    %202 = vmatprep.subr.mxu0 0.0
    %203 = vmatpush1.msra.mxu0 0.0
    %204 = vmatprep.subr.mxu0 0.0
    %205 = vmatpush1.msra.mxu0 0.0
    %206 = vmatprep.subr.mxu0 0.0
    %207 = vmatpush1.msra.mxu0 0.0
    %208 = vmatprep.subr.mxu0 0.0
    %209 = vmatpush1.msra.mxu0 0.0
    %210 = vmatprep.subr.mxu0 0.0
    %211 = vmatpush1.msra.mxu0 0.0
    %212 = vmatprep.subr.mxu0 0.0
    %213 = vmatpush1.msra.mxu0 0.0
    %214 = vmatprep.subr.mxu0 0.0
    %215 = vmatpush1.msra.mxu0 0.0
    %216 = vmatprep.subr.mxu0 0.0
    %217 = vmatpush1.msra.mxu0 0.0
    %218 = vmatprep.subr.mxu0 0.0
    %219 = vmatpush1.msra.mxu0 0.0
    %220 = vmatprep.subr.mxu0 0.0
    %221 = vmatpush1.msra.mxu0 0.0
    %222 = vmatprep.subr.mxu0 0.0
    %223 = vmatpush1.msra.mxu0 0.0
    %224 = vmatprep.subr.mxu0 0.0
    %225 = vmatpush1.msra.mxu0 0.0
    %226 = vmatprep.subr.mxu0 0.0
    %227 = vmatpush1.msra.mxu0 0.0
    %228 = vmatprep.subr.mxu0 0.0
    %229 = vmatpush1.msra.mxu0 0.0
    %230 = vmatprep.subr.mxu0 0.0
    %231 = vmatpush1.msra.mxu0 0.0
    %232 = vmatprep.subr.mxu0 0.0
    %233 = vmatpush1.msra.mxu0 0.0
    %234 = vmatprep.subr.mxu0 0.0
    %235 = vmatpush1.msra.mxu0 0.0
    %236 = vmatprep.subr.mxu0 0.0
    %237 = vmatpush1.msra.mxu0 0.0
    %238 = vmatprep.subr.mxu0 0.0
    %239 = vmatpush1.msra.mxu0 0.0
    %240 = vmatprep.mubr.f32.mxu0 0.0
    %v241 = vand.u32 %v160, 4294901760
    %v242 = vsub.f32 %v160, %v241
    %v243 = vand.u32 %v242, 4294901760
    %v244 = vsub.f32 %v242, %v243
    %v245 = vand.u32 %v244, 4294901760
    %246 = vmatmul.mubr.f32.gmra.mrb[0].mxu0 %v245
    %v247 = vpop.f32.mrb[0].mxu0
    %v248 = vadd.f32 %v141, %v247
    %v249 = vpop.f32.mrb[0].mxu0
    %250 = vmatprep.mubr.f32.mxu0 0.0
    %v251 = vand.u32 %v163, 4294901760
    %v252 = vsub.f32 %v163, %v251
    %v253 = vand.u32 %v252, 4294901760
    %v254 = vsub.f32 %v252, %v253
    %v255 = vand.u32 %v254, 4294901760
    %256 = vmatmul.mubr.f32.gmra.mrb[0].mxu0 %v255
    %v257 = vpop.f32.mrb[0].mxu0
    %v258 = vadd.f32 %v146, %v257
    %v259 = vpop.f32.mrb[0].mxu0
    %260 = vmatprep.mubr.f32.mxu0 0.0
    %v261 = vand.u32 %v166, 4294901760
    %v262 = vsub.f32 %v166, %v261
    %v263 = vand.u32 %v262, 4294901760
    %v264 = vsub.f32 %v262, %v263
    %v265 = vand.u32 %v264, 4294901760
    %266 = vmatmul.mubr.f32.gmra.mrb[0].mxu0 %v265
    %v267 = vpop.f32.mrb[0].mxu0
    %v268 = vadd.f32 %v151, %v267
    %v269 = vpop.f32.mrb[0].mxu0
    %270 = vmatprep.mubr.f32.mxu0 0.0
    %v271 = vand.u32 %v169, 4294901760
    %v272 = vsub.f32 %v169, %v271
    %v273 = vand.u32 %v272, 4294901760
    %v274 = vsub.f32 %v272, %v273
    %v275 = vand.u32 %v274, 4294901760
    %276 = vmatmul.mubr.f32.gmra.mrb[0].mxu0 %v275
    %v277 = vpop.f32.mrb[0].mxu0
    %v278 = vadd.f32 %v156, %v277
    %v279 = vpop.f32.mrb[0].mxu0
    %280 = vdwg.mxu0
    %281 = vmatprep.subr.mxu0 0.0
    %v282 = vand.u32 %v173, 4294901760
    %v283 = vsub.f32 %v173, %v282
    %v284 = vand.u32 %v283, 4294901760
    %v285 = vsub.f32 %v283, %v284
    %v286 = vand.u32 %v285, 4294901760
    %287 = vmatpush1.msra.mxu0 %v286
    %288 = vmatprep.subr.mxu0 0.0
    %289 = vmatpush1.msra.mxu0 0.0
    %290 = vmatprep.subr.mxu0 0.0
    %291 = vmatpush1.msra.mxu0 0.0
    %292 = vmatprep.subr.mxu0 0.0
    %293 = vmatpush1.msra.mxu0 0.0
    %294 = vmatprep.subr.mxu0 0.0
    %295 = vmatpush1.msra.mxu0 0.0
    %296 = vmatprep.subr.mxu0 0.0
    %297 = vmatpush1.msra.mxu0 0.0
    %298 = vmatprep.subr.mxu0 0.0
    %299 = vmatpush1.msra.mxu0 0.0
    %300 = vmatprep.subr.mxu0 0.0
    %301 = vmatpush1.msra.mxu0 0.0
    %302 = vmatprep.subr.mxu0 0.0
    %303 = vmatpush1.msra.mxu0 0.0
    %304 = vmatprep.subr.mxu0 0.0
    %305 = vmatpush1.msra.mxu0 0.0
    %306 = vmatprep.subr.mxu0 0.0
    %307 = vmatpush1.msra.mxu0 0.0
    %308 = vmatprep.subr.mxu0 0.0
    %309 = vmatpush1.msra.mxu0 0.0
    %310 = vmatprep.subr.mxu0 0.0
    %311 = vmatpush1.msra.mxu0 0.0
    %312 = vmatprep.subr.mxu0 0.0
    %313 = vmatpush1.msra.mxu0 0.0
    %314 = vmatprep.subr.mxu0 0.0
    %315 = vmatpush1.msra.mxu0 0.0
    %316 = vmatprep.subr.mxu0 0.0
    %317 = vmatpush1.msra.mxu0 0.0
    %318 = vmatprep.subr.mxu0 0.0
    %319 = vmatpush1.msra.mxu0 0.0
    %320 = vmatprep.subr.mxu0 0.0
    %321 = vmatpush1.msra.mxu0 0.0
    %322 = vmatprep.subr.mxu0 0.0
    %323 = vmatpush1.msra.mxu0 0.0
    %324 = vmatprep.subr.mxu0 0.0
    %325 = vmatpush1.msra.mxu0 0.0
    %326 = vmatprep.subr.mxu0 0.0
    %327 = vmatpush1.msra.mxu0 0.0
    %328 = vmatprep.subr.mxu0 0.0
    %329 = vmatpush1.msra.mxu0 0.0
    %330 = vmatprep.subr.mxu0 0.0
    %331 = vmatpush1.msra.mxu0 0.0
    %332 = vmatprep.subr.mxu0 0.0
    %333 = vmatpush1.msra.mxu0 0.0
    %334 = vmatprep.subr.mxu0 0.0
    %335 = vmatpush1.msra.mxu0 0.0
    %336 = vmatprep.subr.mxu0 0.0
    %337 = vmatpush1.msra.mxu0 0.0
    %338 = vmatprep.subr.mxu0 0.0
    %339 = vmatpush1.msra.mxu0 0.0
    %340 = vmatprep.subr.mxu0 0.0
    %341 = vmatpush1.msra.mxu0 0.0
    %342 = vmatprep.subr.mxu0 0.0
    %343 = vmatpush1.msra.mxu0 0.0
    %344 = vmatprep.subr.mxu0 0.0
    %345 = vmatpush1.msra.mxu0 0.0
    %346 = vmatprep.subr.mxu0 0.0
    %347 = vmatpush1.msra.mxu0 0.0
    %348 = vmatprep.subr.mxu0 0.0
    %349 = vmatpush1.msra.mxu0 0.0
    %350 = vmatprep.mubr.f32.mxu0 0.0
    %v351 = vand.u32 %v160, 4294901760
    %352 = vmatmul.mubr.f32.gmra.mrb[0].mxu0 %v351
    %v353 = vpop.f32.mrb[0].mxu0
    %v354 = vadd.f32 %v248, %v353
    %v355 = vpop.f32.mrb[0].mxu0
    %356 = vmatprep.mubr.f32.mxu0 0.0
    %v357 = vand.u32 %v163, 4294901760
    %358 = vmatmul.mubr.f32.gmra.mrb[0].mxu0 %v357
    %v359 = vpop.f32.mrb[0].mxu0
    %v360 = vadd.f32 %v258, %v359
    %v361 = vpop.f32.mrb[0].mxu0
    %362 = vmatprep.mubr.f32.mxu0 0.0
    %v363 = vand.u32 %v166, 4294901760
    %364 = vmatmul.mubr.f32.gmra.mrb[0].mxu0 %v363
    %v365 = vpop.f32.mrb[0].mxu0
    %v366 = vadd.f32 %v268, %v365
    %v367 = vpop.f32.mrb[0].mxu0
    %368 = vmatprep.mubr.f32.mxu0 0.0
    %v369 = vand.u32 %v169, 4294901760
    %370 = vmatmul.mubr.f32.gmra.mrb[0].mxu0 %v369
    %v371 = vpop.f32.mrb[0].mxu0
    %v372 = vadd.f32 %v278, %v371
    %v373 = vpop.f32.mrb[0].mxu0
    %374 = vdwg.mxu0
    %375 = vmatprep.subr.mxu0 0.0
    %v376 = vand.u32 %v173, 4294901760
    %v377 = vsub.f32 %v173, %v376
    %378 = vmatpush1.msra.mxu0 %v377
    %379 = vmatprep.subr.mxu0 0.0
    %380 = vmatpush1.msra.mxu0 0.0
    %381 = vmatprep.subr.mxu0 0.0
    %382 = vmatpush1.msra.mxu0 0.0
    %383 = vmatprep.subr.mxu0 0.0
    %384 = vmatpush1.msra.mxu0 0.0
    %385 = vmatprep.subr.mxu0 0.0
    %386 = vmatpush1.msra.mxu0 0.0
    %387 = vmatprep.subr.mxu0 0.0
    %388 = vmatpush1.msra.mxu0 0.0
    %389 = vmatprep.subr.mxu0 0.0
    %390 = vmatpush1.msra.mxu0 0.0
    %391 = vmatprep.subr.mxu0 0.0
    %392 = vmatpush1.msra.mxu0 0.0
    %393 = vmatprep.subr.mxu0 0.0
    %394 = vmatpush1.msra.mxu0 0.0
    %395 = vmatprep.subr.mxu0 0.0
    %396 = vmatpush1.msra.mxu0 0.0
    %397 = vmatprep.subr.mxu0 0.0
    %398 = vmatpush1.msra.mxu0 0.0
    %399 = vmatprep.subr.mxu0 0.0
    %400 = vmatpush1.msra.mxu0 0.0
    %401 = vmatprep.subr.mxu0 0.0
    %402 = vmatpush1.msra.mxu0 0.0
    %403 = vmatprep.subr.mxu0 0.0
    %404 = vmatpush1.msra.mxu0 0.0
    %405 = vmatprep.subr.mxu0 0.0
    %406 = vmatpush1.msra.mxu0 0.0
    %407 = vmatprep.subr.mxu0 0.0
    %408 = vmatpush1.msra.mxu0 0.0
    %409 = vmatprep.subr.mxu0 0.0
    %410 = vmatpush1.msra.mxu0 0.0
    %411 = vmatprep.subr.mxu0 0.0
    %412 = vmatpush1.msra.mxu0 0.0
    %413 = vmatprep.subr.mxu0 0.0
    %414 = vmatpush1.msra.mxu0 0.0
    %415 = vmatprep.subr.mxu0 0.0
    %416 = vmatpush1.msra.mxu0 0.0
    %417 = vmatprep.subr.mxu0 0.0
    %418 = vmatpush1.msra.mxu0 0.0
    %419 = vmatprep.subr.mxu0 0.0
    %420 = vmatpush1.msra.mxu0 0.0
    %421 = vmatprep.subr.mxu0 0.0
    %422 = vmatpush1.msra.mxu0 0.0
    %423 = vmatprep.subr.mxu0 0.0
    %424 = vmatpush1.msra.mxu0 0.0
    %425 = vmatprep.subr.mxu0 0.0
    %426 = vmatpush1.msra.mxu0 0.0
    %427 = vmatprep.subr.mxu0 0.0
    %428 = vmatpush1.msra.mxu0 0.0
    %429 = vmatprep.subr.mxu0 0.0
    %430 = vmatpush1.msra.mxu0 0.0
    %431 = vmatprep.subr.mxu0 0.0
    %432 = vmatpush1.msra.mxu0 0.0
    %433 = vmatprep.subr.mxu0 0.0
    %434 = vmatpush1.msra.mxu0 0.0
    %435 = vmatprep.subr.mxu0 0.0
    %436 = vmatpush1.msra.mxu0 0.0
    %437 = vmatprep.subr.mxu0 0.0
    %438 = vmatpush1.msra.mxu0 0.0
    %439 = vmatprep.subr.mxu0 0.0
    %440 = vmatpush1.msra.mxu0 0.0
    %441 = vmatprep.mubr.f32.mxu0 0.0
    %v442 = vand.u32 %v160, 4294901760
    %v443 = vsub.f32 %v160, %v442
    %444 = vmatmul.mubr.f32.gmra.mrb[0].mxu0 %v443
    %v445 = vpop.f32.mrb[0].mxu0
    %v446 = vadd.f32 %v354, %v445
    %v447 = vpop.f32.mrb[0].mxu0
    %448 = vmatprep.mubr.f32.mxu0 0.0
    %v449 = vand.u32 %v163, 4294901760
    %v450 = vsub.f32 %v163, %v449
    %451 = vmatmul.mubr.f32.gmra.mrb[0].mxu0 %v450
    %v452 = vpop.f32.mrb[0].mxu0
    %v453 = vadd.f32 %v360, %v452
    %v454 = vpop.f32.mrb[0].mxu0
    %455 = vmatprep.mubr.f32.mxu0 0.0
    %v456 = vand.u32 %v166, 4294901760
    %v457 = vsub.f32 %v166, %v456
    %458 = vmatmul.mubr.f32.gmra.mrb[0].mxu0 %v457
    %v459 = vpop.f32.mrb[0].mxu0
    %v460 = vadd.f32 %v366, %v459
    %v461 = vpop.f32.mrb[0].mxu0
    %462 = vmatprep.mubr.f32.mxu0 0.0
    %v463 = vand.u32 %v169, 4294901760
    %v464 = vsub.f32 %v169, %v463
    %465 = vmatmul.mubr.f32.gmra.mrb[0].mxu0 %v464
    %v466 = vpop.f32.mrb[0].mxu0
    %v467 = vadd.f32 %v372, %v466
    %v468 = vpop.f32.mrb[0].mxu0
    %469 = vdwg.mxu0
    %470 = vmatprep.subr.mxu0 0.0
    %v471 = vand.u32 %v173, 4294901760
    %472 = vmatpush1.msra.mxu0 %v471
    %473 = vmatprep.subr.mxu0 0.0
    %474 = vmatpush1.msra.mxu0 0.0
    %475 = vmatprep.subr.mxu0 0.0
    %476 = vmatpush1.msra.mxu0 0.0
    %477 = vmatprep.subr.mxu0 0.0
    %478 = vmatpush1.msra.mxu0 0.0
    %479 = vmatprep.subr.mxu0 0.0
    %480 = vmatpush1.msra.mxu0 0.0
    %481 = vmatprep.subr.mxu0 0.0
    %482 = vmatpush1.msra.mxu0 0.0
    %483 = vmatprep.subr.mxu0 0.0
    %484 = vmatpush1.msra.mxu0 0.0
    %485 = vmatprep.subr.mxu0 0.0
    %486 = vmatpush1.msra.mxu0 0.0
    %487 = vmatprep.subr.mxu0 0.0
    %488 = vmatpush1.msra.mxu0 0.0
    %489 = vmatprep.subr.mxu0 0.0
    %490 = vmatpush1.msra.mxu0 0.0
    %491 = vmatprep.subr.mxu0 0.0
    %492 = vmatpush1.msra.mxu0 0.0
    %493 = vmatprep.subr.mxu0 0.0
    %494 = vmatpush1.msra.mxu0 0.0
    %495 = vmatprep.subr.mxu0 0.0
    %496 = vmatpush1.msra.mxu0 0.0
    %497 = vmatprep.subr.mxu0 0.0
    %498 = vmatpush1.msra.mxu0 0.0
    %499 = vmatprep.subr.mxu0 0.0
    %500 = vmatpush1.msra.mxu0 0.0
    %501 = vmatprep.subr.mxu0 0.0
    %502 = vmatpush1.msra.mxu0 0.0
    %503 = vmatprep.subr.mxu0 0.0
    %504 = vmatpush1.msra.mxu0 0.0
    %505 = vmatprep.subr.mxu0 0.0
    %506 = vmatpush1.msra.mxu0 0.0
    %507 = vmatprep.subr.mxu0 0.0
    %508 = vmatpush1.msra.mxu0 0.0
    %509 = vmatprep.subr.mxu0 0.0
    %510 = vmatpush1.msra.mxu0 0.0
    %511 = vmatprep.subr.mxu0 0.0
    %512 = vmatpush1.msra.mxu0 0.0
    %513 = vmatprep.subr.mxu0 0.0
    %514 = vmatpush1.msra.mxu0 0.0
    %515 = vmatprep.subr.mxu0 0.0
    %516 = vmatpush1.msra.mxu0 0.0
    %517 = vmatprep.subr.mxu0 0.0
    %518 = vmatpush1.msra.mxu0 0.0
    %519 = vmatprep.subr.mxu0 0.0
    %520 = vmatpush1.msra.mxu0 0.0
    %521 = vmatprep.subr.mxu0 0.0
    %522 = vmatpush1.msra.mxu0 0.0
    %523 = vmatprep.subr.mxu0 0.0
    %524 = vmatpush1.msra.mxu0 0.0
    %525 = vmatprep.subr.mxu0 0.0
    %526 = vmatpush1.msra.mxu0 0.0
    %527 = vmatprep.subr.mxu0 0.0
    %528 = vmatpush1.msra.mxu0 0.0
    %529 = vmatprep.subr.mxu0 0.0
    %530 = vmatpush1.msra.mxu0 0.0
    %531 = vmatprep.subr.mxu0 0.0
    %532 = vmatpush1.msra.mxu0 0.0
    %533 = vmatprep.subr.mxu0 0.0
    %534 = vmatpush1.msra.mxu0 0.0
    %535 = vmatprep.mubr.f32.mxu0 0.0
    %v536 = vand.u32 %v160, 4294901760
    %v537 = vsub.f32 %v160, %v536
    %v538 = vand.u32 %v537, 4294901760
    %539 = vmatmul.mubr.f32.gmra.mrb[0].mxu0 %v538
    %v540 = vpop.f32.mrb[0].mxu0
    %v541 = vadd.f32 %v446, %v540
    %v542 = vpop.f32.mrb[0].mxu0
    %543 = vmatprep.mubr.f32.mxu0 0.0
    %v544 = vand.u32 %v163, 4294901760
    %v545 = vsub.f32 %v163, %v544
    %v546 = vand.u32 %v545, 4294901760
    %547 = vmatmul.mubr.f32.gmra.mrb[0].mxu0 %v546
    %v548 = vpop.f32.mrb[0].mxu0
    %v549 = vadd.f32 %v453, %v548
    %v550 = vpop.f32.mrb[0].mxu0
    %551 = vmatprep.mubr.f32.mxu0 0.0
    %v552 = vand.u32 %v166, 4294901760
    %v553 = vsub.f32 %v166, %v552
    %v554 = vand.u32 %v553, 4294901760
    %555 = vmatmul.mubr.f32.gmra.mrb[0].mxu0 %v554
    %v556 = vpop.f32.mrb[0].mxu0
    %v557 = vadd.f32 %v460, %v556
    %v558 = vpop.f32.mrb[0].mxu0
    %559 = vmatprep.mubr.f32.mxu0 0.0
    %v560 = vand.u32 %v169, 4294901760
    %v561 = vsub.f32 %v169, %v560
    %v562 = vand.u32 %v561, 4294901760
    %563 = vmatmul.mubr.f32.gmra.mrb[0].mxu0 %v562
    %v564 = vpop.f32.mrb[0].mxu0
    %v565 = vadd.f32 %v467, %v564
    %v566 = vpop.f32.mrb[0].mxu0
    %567 = vdwg.mxu0
    %568 = vmatprep.subr.mxu0 0.0
    %v569 = vand.u32 %v173, 4294901760
    %v570 = vsub.f32 %v173, %v569
    %v571 = vand.u32 %v570, 4294901760
    %572 = vmatpush1.msra.mxu0 %v571
    %573 = vmatprep.subr.mxu0 0.0
    %574 = vmatpush1.msra.mxu0 0.0
    %575 = vmatprep.subr.mxu0 0.0
    %576 = vmatpush1.msra.mxu0 0.0
    %577 = vmatprep.subr.mxu0 0.0
    %578 = vmatpush1.msra.mxu0 0.0
    %579 = vmatprep.subr.mxu0 0.0
    %580 = vmatpush1.msra.mxu0 0.0
    %581 = vmatprep.subr.mxu0 0.0
    %582 = vmatpush1.msra.mxu0 0.0
    %583 = vmatprep.subr.mxu0 0.0
    %584 = vmatpush1.msra.mxu0 0.0
    %585 = vmatprep.subr.mxu0 0.0
    %586 = vmatpush1.msra.mxu0 0.0
    %587 = vmatprep.subr.mxu0 0.0
    %588 = vmatpush1.msra.mxu0 0.0
    %589 = vmatprep.subr.mxu0 0.0
    %590 = vmatpush1.msra.mxu0 0.0
    %591 = vmatprep.subr.mxu0 0.0
    %592 = vmatpush1.msra.mxu0 0.0
    %593 = vmatprep.subr.mxu0 0.0
    %594 = vmatpush1.msra.mxu0 0.0
    %595 = vmatprep.subr.mxu0 0.0
    %596 = vmatpush1.msra.mxu0 0.0
    %597 = vmatprep.subr.mxu0 0.0
    %598 = vmatpush1.msra.mxu0 0.0
    %599 = vmatprep.subr.mxu0 0.0
    %600 = vmatpush1.msra.mxu0 0.0
    %601 = vmatprep.subr.mxu0 0.0
    %602 = vmatpush1.msra.mxu0 0.0
    %603 = vmatprep.subr.mxu0 0.0
    %604 = vmatpush1.msra.mxu0 0.0
    %605 = vmatprep.subr.mxu0 0.0
    %606 = vmatpush1.msra.mxu0 0.0
    %607 = vmatprep.subr.mxu0 0.0
    %608 = vmatpush1.msra.mxu0 0.0
    %609 = vmatprep.subr.mxu0 0.0
    %610 = vmatpush1.msra.mxu0 0.0
    %611 = vmatprep.subr.mxu0 0.0
    %612 = vmatpush1.msra.mxu0 0.0
    %613 = vmatprep.subr.mxu0 0.0
    %614 = vmatpush1.msra.mxu0 0.0
    %615 = vmatprep.subr.mxu0 0.0
    %616 = vmatpush1.msra.mxu0 0.0
    %617 = vmatprep.subr.mxu0 0.0
    %618 = vmatpush1.msra.mxu0 0.0
    %619 = vmatprep.subr.mxu0 0.0
    %620 = vmatpush1.msra.mxu0 0.0
    %621 = vmatprep.subr.mxu0 0.0
    %622 = vmatpush1.msra.mxu0 0.0
    %623 = vmatprep.subr.mxu0 0.0
    %624 = vmatpush1.msra.mxu0 0.0
    %625 = vmatprep.subr.mxu0 0.0
    %626 = vmatpush1.msra.mxu0 0.0
    %627 = vmatprep.subr.mxu0 0.0
    %628 = vmatpush1.msra.mxu0 0.0
    %629 = vmatprep.subr.mxu0 0.0
    %630 = vmatpush1.msra.mxu0 0.0
    %631 = vmatprep.subr.mxu0 0.0
    %632 = vmatpush1.msra.mxu0 0.0
    %633 = vmatprep.subr.mxu0 0.0
    %634 = vmatpush1.msra.mxu0 0.0
    %635 = vmatprep.mubr.f32.mxu0 0.0
    %v636 = vand.u32 %v160, 4294901760
    %637 = vmatmul.mubr.f32.gmra.mrb[0].mxu0 %v636
    %v638 = vpop.f32.mrb[0].mxu0
    %v639 = vadd.f32 %v541, %v638
    %v640 = vpop.f32.mrb[0].mxu0
    %641 = vmatprep.mubr.f32.mxu0 0.0
    %v642 = vand.u32 %v163, 4294901760
    %643 = vmatmul.mubr.f32.gmra.mrb[0].mxu0 %v642
    %v644 = vpop.f32.mrb[0].mxu0
    %v645 = vadd.f32 %v549, %v644
    %v646 = vpop.f32.mrb[0].mxu0
    %647 = vmatprep.mubr.f32.mxu0 0.0
    %v648 = vand.u32 %v166, 4294901760
    %649 = vmatmul.mubr.f32.gmra.mrb[0].mxu0 %v648
    %v650 = vpop.f32.mrb[0].mxu0
    %v651 = vadd.f32 %v557, %v650
    %v652 = vpop.f32.mrb[0].mxu0
    %653 = vmatprep.mubr.f32.mxu0 0.0
    %v654 = vand.u32 %v169, 4294901760
    %655 = vmatmul.mubr.f32.gmra.mrb[0].mxu0 %v654
    %v656 = vpop.f32.mrb[0].mxu0
    %v657 = vadd.f32 %v565, %v656
    %v658 = vpop.f32.mrb[0].mxu0
    %659 = vdwg.mxu0
    %660 = vmatprep.subr.mxu0 0.0
    %v661 = vand.u32 %v173, 4294901760
    %662 = vmatpush1.msra.mxu0 %v661
    %663 = vmatprep.subr.mxu0 0.0
    %664 = vmatpush1.msra.mxu0 0.0
    %665 = vmatprep.subr.mxu0 0.0
    %666 = vmatpush1.msra.mxu0 0.0
    %667 = vmatprep.subr.mxu0 0.0
    %668 = vmatpush1.msra.mxu0 0.0
    %669 = vmatprep.subr.mxu0 0.0
    %670 = vmatpush1.msra.mxu0 0.0
    %671 = vmatprep.subr.mxu0 0.0
    %672 = vmatpush1.msra.mxu0 0.0
    %673 = vmatprep.subr.mxu0 0.0
    %674 = vmatpush1.msra.mxu0 0.0
    %675 = vmatprep.subr.mxu0 0.0
    %676 = vmatpush1.msra.mxu0 0.0
    %677 = vmatprep.subr.mxu0 0.0
    %678 = vmatpush1.msra.mxu0 0.0
    %679 = vmatprep.subr.mxu0 0.0
    %680 = vmatpush1.msra.mxu0 0.0
    %681 = vmatprep.subr.mxu0 0.0
    %682 = vmatpush1.msra.mxu0 0.0
    %683 = vmatprep.subr.mxu0 0.0
    %684 = vmatpush1.msra.mxu0 0.0
    %685 = vmatprep.subr.mxu0 0.0
    %686 = vmatpush1.msra.mxu0 0.0
    %687 = vmatprep.subr.mxu0 0.0
    %688 = vmatpush1.msra.mxu0 0.0
    %689 = vmatprep.subr.mxu0 0.0
    %690 = vmatpush1.msra.mxu0 0.0
    %691 = vmatprep.subr.mxu0 0.0
    %692 = vmatpush1.msra.mxu0 0.0
    %693 = vmatprep.subr.mxu0 0.0
    %694 = vmatpush1.msra.mxu0 0.0
    %695 = vmatprep.subr.mxu0 0.0
    %696 = vmatpush1.msra.mxu0 0.0
    %697 = vmatprep.subr.mxu0 0.0
    %698 = vmatpush1.msra.mxu0 0.0
    %699 = vmatprep.subr.mxu0 0.0
    %700 = vmatpush1.msra.mxu0 0.0
    %701 = vmatprep.subr.mxu0 0.0
    %702 = vmatpush1.msra.mxu0 0.0
    %703 = vmatprep.subr.mxu0 0.0
    %704 = vmatpush1.msra.mxu0 0.0
    %705 = vmatprep.subr.mxu0 0.0
    %706 = vmatpush1.msra.mxu0 0.0
    %707 = vmatprep.subr.mxu0 0.0
    %708 = vmatpush1.msra.mxu0 0.0
    %709 = vmatprep.subr.mxu0 0.0
    %710 = vmatpush1.msra.mxu0 0.0
    %711 = vmatprep.subr.mxu0 0.0
    %712 = vmatpush1.msra.mxu0 0.0
    %713 = vmatprep.subr.mxu0 0.0
    %714 = vmatpush1.msra.mxu0 0.0
    %715 = vmatprep.subr.mxu0 0.0
    %716 = vmatpush1.msra.mxu0 0.0
    %717 = vmatprep.subr.mxu0 0.0
    %718 = vmatpush1.msra.mxu0 0.0
    %719 = vmatprep.subr.mxu0 0.0
    %720 = vmatpush1.msra.mxu0 0.0
    %721 = vmatprep.subr.mxu0 0.0
    %722 = vmatpush1.msra.mxu0 0.0
    %723 = vmatprep.subr.mxu0 0.0
    %724 = vmatpush1.msra.mxu0 0.0
    %725 = vmatprep.mubr.f32.mxu0 0.0
    %v726 = vand.u32 %v160, 4294901760
    %727 = vmatmul.mubr.f32.gmra.mrb[0].mxu0 %v726
    %v728 = vpop.f32.mrb[0].mxu0
    %v729 = vadd.f32 %v639, %v728
    %v730 = vpop.f32.mrb[0].mxu0
    %731 = vmatprep.mubr.f32.mxu0 0.0
    %v732 = vand.u32 %v163, 4294901760
    %733 = vmatmul.mubr.f32.gmra.mrb[0].mxu0 %v732
    %v734 = vpop.f32.mrb[0].mxu0
    %v735 = vadd.f32 %v645, %v734
    %v736 = vpop.f32.mrb[0].mxu0
    %737 = vmatprep.mubr.f32.mxu0 0.0
    %v738 = vand.u32 %v166, 4294901760
    %739 = vmatmul.mubr.f32.gmra.mrb[0].mxu0 %v738
    %v740 = vpop.f32.mrb[0].mxu0
    %v741 = vadd.f32 %v651, %v740
    %v742 = vpop.f32.mrb[0].mxu0
    %743 = vmatprep.mubr.f32.mxu0 0.0
    %v744 = vand.u32 %v169, 4294901760
    %745 = vmatmul.mubr.f32.gmra.mrb[0].mxu0 %v744
    %v746 = vpop.f32.mrb[0].mxu0
    %v747 = vadd.f32 %v657, %v746
    %v748 = vpop.f32.mrb[0].mxu0
    %749 = vdwg.mxu0
    %v750 = vadd.f32 %v729, %v735
    %v751 = vadd.f32 %v750, %v741
    %v752 = vadd.f32 %v751, %v747
    %v753 = vrot.slane %v752, 4
    %v754 = vadd.f32 %v752, %v753
    %v755 = vrot.slane %v754, 2
    %v756 = vadd.f32 %v754, %v755
    %v757 = vrot.slane %v756, 1
    %v758 = vadd.f32 %v756, %v757
    %v759 = vrcp.pop 32.0
    %v760 = vmul.f32 %v758, %v759
    %v761 = vmul.f32 %v729, %v729
    %v762 = vmul.f32 %v735, %v735
    %v763 = vmul.f32 %v741, %v741
    %v764 = vmul.f32 %v747, %v747
    %v765 = vadd.f32 %v761, %v762
    %v766 = vadd.f32 %v765, %v763
    %v767 = vadd.f32 %v766, %v764
    %v768 = vrot.slane %v767, 4
    %v769 = vadd.f32 %v767, %v768
    %v770 = vrot.slane %v769, 2
    %v771 = vadd.f32 %v769, %v770
    %v772 = vrot.slane %v771, 1
    %v773 = vadd.f32 %v771, %v772
    %v774 = vmul.f32 %v773, %v759
    %v775 = vmul.f32 %v760, %v760
    %v776 = vsub.f32 %v774, %v775
    %v777 = vsub.f32 %v729, %v760
    %v778 = vsub.f32 %v735, %v760
    %v779 = vsub.f32 %v741, %v760
    %v780 = vsub.f32 %v747, %v760
    %v781 = vadd.f32 %v776, 1e-05
    %v782 = vrsqrt.pop %v781
    %v783 = vmul.f32 %v777, %v782
    %v784 = vmul.f32 %v778, %v782
    %v785 = vmul.f32 %v779, %v782
    %v786 = vmul.f32 %v780, %v782
    %787 = vset.pattern.permute.xlu0 2
    %788 = vperm.xlu0 %787, %v32
    %v789 = vpop.permute.xlu0 %788
    %791 = vset.pattern.permute.xlu0 2
    %792 = vperm.xlu0 %791, %v33
    %v793 = vpop.permute.xlu0 %792
    %795 = vset.pattern.permute.xlu0 2
    %796 = vperm.xlu0 %795, %v34
    %v797 = vpop.permute.xlu0 %796
    %799 = vset.pattern.permute.xlu0 2
    %800 = vperm.xlu0 %799, %v35
    %v801 = vpop.permute.xlu0 %800
    %v803 = vmul.f32 %v783, %v789
    %v804 = vmul.f32 %v784, %v793
    %v805 = vmul.f32 %v785, %v797
    %v806 = vmul.f32 %v786, %v801
    %807 = vset.pattern.permute.xlu0 3
    %808 = vperm.xlu0 %807, %v32
    %v809 = vpop.permute.xlu0 %808
    %811 = vset.pattern.permute.xlu0 3
    %812 = vperm.xlu0 %811, %v33
    %v813 = vpop.permute.xlu0 %812
    %815 = vset.pattern.permute.xlu0 3
    %816 = vperm.xlu0 %815, %v34
    %v817 = vpop.permute.xlu0 %816
    %819 = vset.pattern.permute.xlu0 3
    %820 = vperm.xlu0 %819, %v35
    %v821 = vpop.permute.xlu0 %820
    %v823 = vadd.f32 %v803, %v809
    %v824 = vadd.f32 %v804, %v813
    %v825 = vadd.f32 %v805, %v817
    %v826 = vadd.f32 %v806, %v821
    %v827 = vmax.f32 %v823, 0.0
    %v828 = vmax.f32 %v824, 0.0
    %v829 = vmax.f32 %v825, 0.0
    %v830 = vmax.f32 %v826, 0.0
    %v831 = vld [vmem:[%s5] sm:$0xff]
    %v832 = vld [vmem:[%s5 + $0x8] sm:$0xff]
    %v833 = vld [vmem:[%s5 + $0x10] sm:$0xff]
    %v834 = vld [vmem:[%s5 + $0x18] sm:$0xff]
    %835 = vset.pattern.permute.xlu0 4
    %836 = vperm.xlu0 %835, %v32
    %v837 = vpop.permute.xlu0 %836
    %839 = vset.pattern.permute.xlu0 4
    %840 = vperm.xlu0 %839, %v33
    %v841 = vpop.permute.xlu0 %840
    %843 = vset.pattern.permute.xlu0 4
    %844 = vperm.xlu0 %843, %v34
    %v845 = vpop.permute.xlu0 %844
    %847 = vset.pattern.permute.xlu0 4
    %848 = vperm.xlu0 %847, %v35
    %v849 = vpop.permute.xlu0 %848
    %vm851 = vcmask 261120
    %v853 = vsel %vm851, %v831, 0
    %v856 = vsel %vm851, %v832, 0
    %v859 = vsel %vm851, %v833, 0
    %v862 = vsel %vm851, %v834, 0
    %864 = vmatprep.subr.mxu0 0.0
    %v865 = vand.u32 %v827, 4294901760
    %866 = vmatpush1.msra.mxu0 %v865
    %867 = vmatprep.subr.mxu0 0.0
    %v868 = vand.u32 %v828, 4294901760
    %869 = vmatpush1.msra.mxu0 %v868
    %870 = vmatprep.subr.mxu0 0.0
    %v871 = vand.u32 %v829, 4294901760
    %872 = vmatpush1.msra.mxu0 %v871
    %873 = vmatprep.subr.mxu0 0.0
    %v874 = vand.u32 %v830, 4294901760
    %875 = vmatpush1.msra.mxu0 %v874
    %876 = vmatprep.subr.mxu0 0.0
    %877 = vmatpush1.msra.mxu0 0.0
    %878 = vmatprep.subr.mxu0 0.0
    %879 = vmatpush1.msra.mxu0 0.0
    %880 = vmatprep.subr.mxu0 0.0
    %881 = vmatpush1.msra.mxu0 0.0
    %882 = vmatprep.subr.mxu0 0.0
    %883 = vmatpush1.msra.mxu0 0.0
    %884 = vmatprep.subr.mxu0 0.0
    %885 = vmatpush1.msra.mxu0 0.0
    %886 = vmatprep.subr.mxu0 0.0
    %887 = vmatpush1.msra.mxu0 0.0
    %888 = vmatprep.subr.mxu0 0.0
    %889 = vmatpush1.msra.mxu0 0.0
    %890 = vmatprep.subr.mxu0 0.0
    %891 = vmatpush1.msra.mxu0 0.0
    %892 = vmatprep.subr.mxu0 0.0
    %893 = vmatpush1.msra.mxu0 0.0
    %894 = vmatprep.subr.mxu0 0.0
    %895 = vmatpush1.msra.mxu0 0.0
    %896 = vmatprep.subr.mxu0 0.0
    %897 = vmatpush1.msra.mxu0 0.0
    %898 = vmatprep.subr.mxu0 0.0
    %899 = vmatpush1.msra.mxu0 0.0
    %900 = vmatprep.subr.mxu0 0.0
    %901 = vmatpush1.msra.mxu0 0.0
    %902 = vmatprep.subr.mxu0 0.0
    %903 = vmatpush1.msra.mxu0 0.0
    %904 = vmatprep.subr.mxu0 0.0
    %905 = vmatpush1.msra.mxu0 0.0
    %906 = vmatprep.subr.mxu0 0.0
    %907 = vmatpush1.msra.mxu0 0.0
    %908 = vmatprep.subr.mxu0 0.0
    %909 = vmatpush1.msra.mxu0 0.0
    %910 = vmatprep.subr.mxu0 0.0
    %911 = vmatpush1.msra.mxu0 0.0
    %912 = vmatprep.subr.mxu0 0.0
    %913 = vmatpush1.msra.mxu0 0.0
    %914 = vmatprep.subr.mxu0 0.0
    %915 = vmatpush1.msra.mxu0 0.0
    %916 = vmatprep.subr.mxu0 0.0
    %917 = vmatpush1.msra.mxu0 0.0
    %918 = vmatprep.subr.mxu0 0.0
    %919 = vmatpush1.msra.mxu0 0.0
    %920 = vmatprep.subr.mxu0 0.0
    %921 = vmatpush1.msra.mxu0 0.0
    %922 = vmatprep.subr.mxu0 0.0
    %923 = vmatpush1.msra.mxu0 0.0
    %924 = vmatprep.subr.mxu0 0.0
    %925 = vmatpush1.msra.mxu0 0.0
    %926 = vmatprep.subr.mxu0 0.0
    %927 = vmatpush1.msra.mxu0 0.0
    %928 = vmatprep.subr.mxu0 0.0
    %929 = vmatpush1.msra.mxu0 0.0
    %930 = vmatprep.subr.mxu0 0.0
    %931 = vmatpush1.msra.mxu0 0.0
    %932 = vmatprep.mubr.f32.mxu0 0.0
    %v933 = vand.u32 %v853, 4294901760
    %v934 = vsub.f32 %v853, %v933
    %v935 = vand.u32 %v934, 4294901760
    %v936 = vsub.f32 %v934, %v935
    %v937 = vand.u32 %v936, 4294901760
    %938 = vmatmul.mubr.f32.gmra.mrb[0].mxu0 %v937
    %v939 = vpop.f32.mrb[0].mxu0
    %v940 = vadd.f32 %v837, %v939
    %v941 = vpop.f32.mrb[0].mxu0
    %942 = vmatprep.mubr.f32.mxu0 0.0
    %v943 = vand.u32 %v856, 4294901760
    %v944 = vsub.f32 %v856, %v943
    %v945 = vand.u32 %v944, 4294901760
    %v946 = vsub.f32 %v944, %v945
    %v947 = vand.u32 %v946, 4294901760
    %948 = vmatmul.mubr.f32.gmra.mrb[0].mxu0 %v947
    %v949 = vpop.f32.mrb[0].mxu0
    %v950 = vadd.f32 %v841, %v949
    %v951 = vpop.f32.mrb[0].mxu0
    %952 = vmatprep.mubr.f32.mxu0 0.0
    %v953 = vand.u32 %v859, 4294901760
    %v954 = vsub.f32 %v859, %v953
    %v955 = vand.u32 %v954, 4294901760
    %v956 = vsub.f32 %v954, %v955
    %v957 = vand.u32 %v956, 4294901760
    %958 = vmatmul.mubr.f32.gmra.mrb[0].mxu0 %v957
    %v959 = vpop.f32.mrb[0].mxu0
    %v960 = vadd.f32 %v845, %v959
    %v961 = vpop.f32.mrb[0].mxu0
    %962 = vmatprep.mubr.f32.mxu0 0.0
    %v963 = vand.u32 %v862, 4294901760
    %v964 = vsub.f32 %v862, %v963
    %v965 = vand.u32 %v964, 4294901760
    %v966 = vsub.f32 %v964, %v965
    %v967 = vand.u32 %v966, 4294901760
    %968 = vmatmul.mubr.f32.gmra.mrb[0].mxu0 %v967
    %v969 = vpop.f32.mrb[0].mxu0
    %v970 = vadd.f32 %v849, %v969
    %v971 = vpop.f32.mrb[0].mxu0
    %972 = vdwg.mxu0
    %973 = vmatprep.subr.mxu0 0.0
    %v974 = vand.u32 %v827, 4294901760
    %v975 = vsub.f32 %v827, %v974
    %v976 = vand.u32 %v975, 4294901760
    %v977 = vsub.f32 %v975, %v976
    %v978 = vand.u32 %v977, 4294901760
    %979 = vmatpush1.msra.mxu0 %v978
    %980 = vmatprep.subr.mxu0 0.0
    %v981 = vand.u32 %v828, 4294901760
    %v982 = vsub.f32 %v828, %v981
    %v983 = vand.u32 %v982, 4294901760
    %v984 = vsub.f32 %v982, %v983
    %v985 = vand.u32 %v984, 4294901760
    %986 = vmatpush1.msra.mxu0 %v985
    %987 = vmatprep.subr.mxu0 0.0
    %v988 = vand.u32 %v829, 4294901760
    %v989 = vsub.f32 %v829, %v988
    %v990 = vand.u32 %v989, 4294901760
    %v991 = vsub.f32 %v989, %v990
    %v992 = vand.u32 %v991, 4294901760
    %993 = vmatpush1.msra.mxu0 %v992
    %994 = vmatprep.subr.mxu0 0.0
    %v995 = vand.u32 %v830, 4294901760
    %v996 = vsub.f32 %v830, %v995
    %v997 = vand.u32 %v996, 4294901760
    %v998 = vsub.f32 %v996, %v997
    %v999 = vand.u32 %v998, 4294901760
    %1000 = vmatpush1.msra.mxu0 %v999
    %1001 = vmatprep.subr.mxu0 0.0
    %1002 = vmatpush1.msra.mxu0 0.0
    %1003 = vmatprep.subr.mxu0 0.0
    %1004 = vmatpush1.msra.mxu0 0.0
    %1005 = vmatprep.subr.mxu0 0.0
    %1006 = vmatpush1.msra.mxu0 0.0
    %1007 = vmatprep.subr.mxu0 0.0
    %1008 = vmatpush1.msra.mxu0 0.0
    %1009 = vmatprep.subr.mxu0 0.0
    %1010 = vmatpush1.msra.mxu0 0.0
    %1011 = vmatprep.subr.mxu0 0.0
    %1012 = vmatpush1.msra.mxu0 0.0
    %1013 = vmatprep.subr.mxu0 0.0
    %1014 = vmatpush1.msra.mxu0 0.0
    %1015 = vmatprep.subr.mxu0 0.0
    %1016 = vmatpush1.msra.mxu0 0.0
    %1017 = vmatprep.subr.mxu0 0.0
    %1018 = vmatpush1.msra.mxu0 0.0
    %1019 = vmatprep.subr.mxu0 0.0
    %1020 = vmatpush1.msra.mxu0 0.0
    %1021 = vmatprep.subr.mxu0 0.0
    %1022 = vmatpush1.msra.mxu0 0.0
    %1023 = vmatprep.subr.mxu0 0.0
    %1024 = vmatpush1.msra.mxu0 0.0
    %1025 = vmatprep.subr.mxu0 0.0
    %1026 = vmatpush1.msra.mxu0 0.0
    %1027 = vmatprep.subr.mxu0 0.0
    %1028 = vmatpush1.msra.mxu0 0.0
    %1029 = vmatprep.subr.mxu0 0.0
    %1030 = vmatpush1.msra.mxu0 0.0
    %1031 = vmatprep.subr.mxu0 0.0
    %1032 = vmatpush1.msra.mxu0 0.0
    %1033 = vmatprep.subr.mxu0 0.0
    %1034 = vmatpush1.msra.mxu0 0.0
    %1035 = vmatprep.subr.mxu0 0.0
    %1036 = vmatpush1.msra.mxu0 0.0
    %1037 = vmatprep.subr.mxu0 0.0
    %1038 = vmatpush1.msra.mxu0 0.0
    %1039 = vmatprep.subr.mxu0 0.0
    %1040 = vmatpush1.msra.mxu0 0.0
    %1041 = vmatprep.subr.mxu0 0.0
    %1042 = vmatpush1.msra.mxu0 0.0
    %1043 = vmatprep.subr.mxu0 0.0
    %1044 = vmatpush1.msra.mxu0 0.0
    %1045 = vmatprep.subr.mxu0 0.0
    %1046 = vmatpush1.msra.mxu0 0.0
    %1047 = vmatprep.subr.mxu0 0.0
    %1048 = vmatpush1.msra.mxu0 0.0
    %1049 = vmatprep.subr.mxu0 0.0
    %1050 = vmatpush1.msra.mxu0 0.0
    %1051 = vmatprep.subr.mxu0 0.0
    %1052 = vmatpush1.msra.mxu0 0.0
    %1053 = vmatprep.subr.mxu0 0.0
    %1054 = vmatpush1.msra.mxu0 0.0
    %1055 = vmatprep.subr.mxu0 0.0
    %1056 = vmatpush1.msra.mxu0 0.0
    %1057 = vmatprep.mubr.f32.mxu0 0.0
    %v1058 = vand.u32 %v853, 4294901760
    %1059 = vmatmul.mubr.f32.gmra.mrb[0].mxu0 %v1058
    %v1060 = vpop.f32.mrb[0].mxu0
    %v1061 = vadd.f32 %v940, %v1060
    %v1062 = vpop.f32.mrb[0].mxu0
    %1063 = vmatprep.mubr.f32.mxu0 0.0
    %v1064 = vand.u32 %v856, 4294901760
    %1065 = vmatmul.mubr.f32.gmra.mrb[0].mxu0 %v1064
    %v1066 = vpop.f32.mrb[0].mxu0
    %v1067 = vadd.f32 %v950, %v1066
    %v1068 = vpop.f32.mrb[0].mxu0
    %1069 = vmatprep.mubr.f32.mxu0 0.0
    %v1070 = vand.u32 %v859, 4294901760
    %1071 = vmatmul.mubr.f32.gmra.mrb[0].mxu0 %v1070
    %v1072 = vpop.f32.mrb[0].mxu0
    %v1073 = vadd.f32 %v960, %v1072
    %v1074 = vpop.f32.mrb[0].mxu0
    %1075 = vmatprep.mubr.f32.mxu0 0.0
    %v1076 = vand.u32 %v862, 4294901760
    %1077 = vmatmul.mubr.f32.gmra.mrb[0].mxu0 %v1076
    %v1078 = vpop.f32.mrb[0].mxu0
    %v1079 = vadd.f32 %v970, %v1078
    %v1080 = vpop.f32.mrb[0].mxu0
    %1081 = vdwg.mxu0
    %1082 = vmatprep.subr.mxu0 0.0
    %v1083 = vand.u32 %v827, 4294901760
    %v1084 = vsub.f32 %v827, %v1083
    %1085 = vmatpush1.msra.mxu0 %v1084
    %1086 = vmatprep.subr.mxu0 0.0
    %v1087 = vand.u32 %v828, 4294901760
    %v1088 = vsub.f32 %v828, %v1087
    %1089 = vmatpush1.msra.mxu0 %v1088
    %1090 = vmatprep.subr.mxu0 0.0
    %v1091 = vand.u32 %v829, 4294901760
    %v1092 = vsub.f32 %v829, %v1091
    %1093 = vmatpush1.msra.mxu0 %v1092
    %1094 = vmatprep.subr.mxu0 0.0
    %v1095 = vand.u32 %v830, 4294901760
    %v1096 = vsub.f32 %v830, %v1095
    %1097 = vmatpush1.msra.mxu0 %v1096
    %1098 = vmatprep.subr.mxu0 0.0
    %1099 = vmatpush1.msra.mxu0 0.0
    %1100 = vmatprep.subr.mxu0 0.0
    %1101 = vmatpush1.msra.mxu0 0.0
    %1102 = vmatprep.subr.mxu0 0.0
    %1103 = vmatpush1.msra.mxu0 0.0
    %1104 = vmatprep.subr.mxu0 0.0
    %1105 = vmatpush1.msra.mxu0 0.0
    %1106 = vmatprep.subr.mxu0 0.0
    %1107 = vmatpush1.msra.mxu0 0.0
    %1108 = vmatprep.subr.mxu0 0.0
    %1109 = vmatpush1.msra.mxu0 0.0
    %1110 = vmatprep.subr.mxu0 0.0
    %1111 = vmatpush1.msra.mxu0 0.0
    %1112 = vmatprep.subr.mxu0 0.0
    %1113 = vmatpush1.msra.mxu0 0.0
    %1114 = vmatprep.subr.mxu0 0.0
    %1115 = vmatpush1.msra.mxu0 0.0
    %1116 = vmatprep.subr.mxu0 0.0
    %1117 = vmatpush1.msra.mxu0 0.0
    %1118 = vmatprep.subr.mxu0 0.0
    %1119 = vmatpush1.msra.mxu0 0.0
    %1120 = vmatprep.subr.mxu0 0.0
    %1121 = vmatpush1.msra.mxu0 0.0
    %1122 = vmatprep.subr.mxu0 0.0
    %1123 = vmatpush1.msra.mxu0 0.0
    %1124 = vmatprep.subr.mxu0 0.0
    %1125 = vmatpush1.msra.mxu0 0.0
    %1126 = vmatprep.subr.mxu0 0.0
    %1127 = vmatpush1.msra.mxu0 0.0
    %1128 = vmatprep.subr.mxu0 0.0
    %1129 = vmatpush1.msra.mxu0 0.0
    %1130 = vmatprep.subr.mxu0 0.0
    %1131 = vmatpush1.msra.mxu0 0.0
    %1132 = vmatprep.subr.mxu0 0.0
    %1133 = vmatpush1.msra.mxu0 0.0
    %1134 = vmatprep.subr.mxu0 0.0
    %1135 = vmatpush1.msra.mxu0 0.0
    %1136 = vmatprep.subr.mxu0 0.0
    %1137 = vmatpush1.msra.mxu0 0.0
    %1138 = vmatprep.subr.mxu0 0.0
    %1139 = vmatpush1.msra.mxu0 0.0
    %1140 = vmatprep.subr.mxu0 0.0
    %1141 = vmatpush1.msra.mxu0 0.0
    %1142 = vmatprep.subr.mxu0 0.0
    %1143 = vmatpush1.msra.mxu0 0.0
    %1144 = vmatprep.subr.mxu0 0.0
    %1145 = vmatpush1.msra.mxu0 0.0
    %1146 = vmatprep.subr.mxu0 0.0
    %1147 = vmatpush1.msra.mxu0 0.0
    %1148 = vmatprep.subr.mxu0 0.0
    %1149 = vmatpush1.msra.mxu0 0.0
    %1150 = vmatprep.subr.mxu0 0.0
    %1151 = vmatpush1.msra.mxu0 0.0
    %1152 = vmatprep.subr.mxu0 0.0
    %1153 = vmatpush1.msra.mxu0 0.0
    %1154 = vmatprep.mubr.f32.mxu0 0.0
    %v1155 = vand.u32 %v853, 4294901760
    %v1156 = vsub.f32 %v853, %v1155
    %1157 = vmatmul.mubr.f32.gmra.mrb[0].mxu0 %v1156
    %v1158 = vpop.f32.mrb[0].mxu0
    %v1159 = vadd.f32 %v1061, %v1158
    %v1160 = vpop.f32.mrb[0].mxu0
    %1161 = vmatprep.mubr.f32.mxu0 0.0
    %v1162 = vand.u32 %v856, 4294901760
    %v1163 = vsub.f32 %v856, %v1162
    %1164 = vmatmul.mubr.f32.gmra.mrb[0].mxu0 %v1163
    %v1165 = vpop.f32.mrb[0].mxu0
    %v1166 = vadd.f32 %v1067, %v1165
    %v1167 = vpop.f32.mrb[0].mxu0
    %1168 = vmatprep.mubr.f32.mxu0 0.0
    %v1169 = vand.u32 %v859, 4294901760
    %v1170 = vsub.f32 %v859, %v1169
    %1171 = vmatmul.mubr.f32.gmra.mrb[0].mxu0 %v1170
    %v1172 = vpop.f32.mrb[0].mxu0
    %v1173 = vadd.f32 %v1073, %v1172
    %v1174 = vpop.f32.mrb[0].mxu0
    %1175 = vmatprep.mubr.f32.mxu0 0.0
    %v1176 = vand.u32 %v862, 4294901760
    %v1177 = vsub.f32 %v862, %v1176
    %1178 = vmatmul.mubr.f32.gmra.mrb[0].mxu0 %v1177
    %v1179 = vpop.f32.mrb[0].mxu0
    %v1180 = vadd.f32 %v1079, %v1179
    %v1181 = vpop.f32.mrb[0].mxu0
    %1182 = vdwg.mxu0
    %1183 = vmatprep.subr.mxu0 0.0
    %v1184 = vand.u32 %v827, 4294901760
    %1185 = vmatpush1.msra.mxu0 %v1184
    %1186 = vmatprep.subr.mxu0 0.0
    %v1187 = vand.u32 %v828, 4294901760
    %1188 = vmatpush1.msra.mxu0 %v1187
    %1189 = vmatprep.subr.mxu0 0.0
    %v1190 = vand.u32 %v829, 4294901760
    %1191 = vmatpush1.msra.mxu0 %v1190
    %1192 = vmatprep.subr.mxu0 0.0
    %v1193 = vand.u32 %v830, 4294901760
    %1194 = vmatpush1.msra.mxu0 %v1193
    %1195 = vmatprep.subr.mxu0 0.0
    %1196 = vmatpush1.msra.mxu0 0.0
    %1197 = vmatprep.subr.mxu0 0.0
    %1198 = vmatpush1.msra.mxu0 0.0
    %1199 = vmatprep.subr.mxu0 0.0
    %1200 = vmatpush1.msra.mxu0 0.0
    %1201 = vmatprep.subr.mxu0 0.0
    %1202 = vmatpush1.msra.mxu0 0.0
    %1203 = vmatprep.subr.mxu0 0.0
    %1204 = vmatpush1.msra.mxu0 0.0
    %1205 = vmatprep.subr.mxu0 0.0
    %1206 = vmatpush1.msra.mxu0 0.0
    %1207 = vmatprep.subr.mxu0 0.0
    %1208 = vmatpush1.msra.mxu0 0.0
    %1209 = vmatprep.subr.mxu0 0.0
    %1210 = vmatpush1.msra.mxu0 0.0
    %1211 = vmatprep.subr.mxu0 0.0
    %1212 = vmatpush1.msra.mxu0 0.0
    %1213 = vmatprep.subr.mxu0 0.0
    %1214 = vmatpush1.msra.mxu0 0.0
    %1215 = vmatprep.subr.mxu0 0.0
    %1216 = vmatpush1.msra.mxu0 0.0
    %1217 = vmatprep.subr.mxu0 0.0
    %1218 = vmatpush1.msra.mxu0 0.0
    %1219 = vmatprep.subr.mxu0 0.0
    %1220 = vmatpush1.msra.mxu0 0.0
    %1221 = vmatprep.subr.mxu0 0.0
    %1222 = vmatpush1.msra.mxu0 0.0
    %1223 = vmatprep.subr.mxu0 0.0
    %1224 = vmatpush1.msra.mxu0 0.0
    %1225 = vmatprep.subr.mxu0 0.0
    %1226 = vmatpush1.msra.mxu0 0.0
    %1227 = vmatprep.subr.mxu0 0.0
    %1228 = vmatpush1.msra.mxu0 0.0
    %1229 = vmatprep.subr.mxu0 0.0
    %1230 = vmatpush1.msra.mxu0 0.0
    %1231 = vmatprep.subr.mxu0 0.0
    %1232 = vmatpush1.msra.mxu0 0.0
    %1233 = vmatprep.subr.mxu0 0.0
    %1234 = vmatpush1.msra.mxu0 0.0
    %1235 = vmatprep.subr.mxu0 0.0
    %1236 = vmatpush1.msra.mxu0 0.0
    %1237 = vmatprep.subr.mxu0 0.0
    %1238 = vmatpush1.msra.mxu0 0.0
    %1239 = vmatprep.subr.mxu0 0.0
    %1240 = vmatpush1.msra.mxu0 0.0
    %1241 = vmatprep.subr.mxu0 0.0
    %1242 = vmatpush1.msra.mxu0 0.0
    %1243 = vmatprep.subr.mxu0 0.0
    %1244 = vmatpush1.msra.mxu0 0.0
    %1245 = vmatprep.subr.mxu0 0.0
    %1246 = vmatpush1.msra.mxu0 0.0
    %1247 = vmatprep.subr.mxu0 0.0
    %1248 = vmatpush1.msra.mxu0 0.0
    %1249 = vmatprep.subr.mxu0 0.0
    %1250 = vmatpush1.msra.mxu0 0.0
    %1251 = vmatprep.mubr.f32.mxu0 0.0
    %v1252 = vand.u32 %v853, 4294901760
    %v1253 = vsub.f32 %v853, %v1252
    %v1254 = vand.u32 %v1253, 4294901760
    %1255 = vmatmul.mubr.f32.gmra.mrb[0].mxu0 %v1254
    %v1256 = vpop.f32.mrb[0].mxu0
    %v1257 = vadd.f32 %v1159, %v1256
    %v1258 = vpop.f32.mrb[0].mxu0
    %1259 = vmatprep.mubr.f32.mxu0 0.0
    %v1260 = vand.u32 %v856, 4294901760
    %v1261 = vsub.f32 %v856, %v1260
    %v1262 = vand.u32 %v1261, 4294901760
    %1263 = vmatmul.mubr.f32.gmra.mrb[0].mxu0 %v1262
    %v1264 = vpop.f32.mrb[0].mxu0
    %v1265 = vadd.f32 %v1166, %v1264
    %v1266 = vpop.f32.mrb[0].mxu0
    %1267 = vmatprep.mubr.f32.mxu0 0.0
    %v1268 = vand.u32 %v859, 4294901760
    %v1269 = vsub.f32 %v859, %v1268
    %v1270 = vand.u32 %v1269, 4294901760
    %1271 = vmatmul.mubr.f32.gmra.mrb[0].mxu0 %v1270
    %v1272 = vpop.f32.mrb[0].mxu0
    %v1273 = vadd.f32 %v1173, %v1272
    %v1274 = vpop.f32.mrb[0].mxu0
    %1275 = vmatprep.mubr.f32.mxu0 0.0
    %v1276 = vand.u32 %v862, 4294901760
    %v1277 = vsub.f32 %v862, %v1276
    %v1278 = vand.u32 %v1277, 4294901760
    %1279 = vmatmul.mubr.f32.gmra.mrb[0].mxu0 %v1278
    %v1280 = vpop.f32.mrb[0].mxu0
    %v1281 = vadd.f32 %v1180, %v1280
    %v1282 = vpop.f32.mrb[0].mxu0
    %1283 = vdwg.mxu0
    %1284 = vmatprep.subr.mxu0 0.0
    %v1285 = vand.u32 %v827, 4294901760
    %v1286 = vsub.f32 %v827, %v1285
    %v1287 = vand.u32 %v1286, 4294901760
    %1288 = vmatpush1.msra.mxu0 %v1287
    %1289 = vmatprep.subr.mxu0 0.0
    %v1290 = vand.u32 %v828, 4294901760
    %v1291 = vsub.f32 %v828, %v1290
    %v1292 = vand.u32 %v1291, 4294901760
    %1293 = vmatpush1.msra.mxu0 %v1292
    %1294 = vmatprep.subr.mxu0 0.0
    %v1295 = vand.u32 %v829, 4294901760
    %v1296 = vsub.f32 %v829, %v1295
    %v1297 = vand.u32 %v1296, 4294901760
    %1298 = vmatpush1.msra.mxu0 %v1297
    %1299 = vmatprep.subr.mxu0 0.0
    %v1300 = vand.u32 %v830, 4294901760
    %v1301 = vsub.f32 %v830, %v1300
    %v1302 = vand.u32 %v1301, 4294901760
    %1303 = vmatpush1.msra.mxu0 %v1302
    %1304 = vmatprep.subr.mxu0 0.0
    %1305 = vmatpush1.msra.mxu0 0.0
    %1306 = vmatprep.subr.mxu0 0.0
    %1307 = vmatpush1.msra.mxu0 0.0
    %1308 = vmatprep.subr.mxu0 0.0
    %1309 = vmatpush1.msra.mxu0 0.0
    %1310 = vmatprep.subr.mxu0 0.0
    %1311 = vmatpush1.msra.mxu0 0.0
    %1312 = vmatprep.subr.mxu0 0.0
    %1313 = vmatpush1.msra.mxu0 0.0
    %1314 = vmatprep.subr.mxu0 0.0
    %1315 = vmatpush1.msra.mxu0 0.0
    %1316 = vmatprep.subr.mxu0 0.0
    %1317 = vmatpush1.msra.mxu0 0.0
    %1318 = vmatprep.subr.mxu0 0.0
    %1319 = vmatpush1.msra.mxu0 0.0
    %1320 = vmatprep.subr.mxu0 0.0
    %1321 = vmatpush1.msra.mxu0 0.0
    %1322 = vmatprep.subr.mxu0 0.0
    %1323 = vmatpush1.msra.mxu0 0.0
    %1324 = vmatprep.subr.mxu0 0.0
    %1325 = vmatpush1.msra.mxu0 0.0
    %1326 = vmatprep.subr.mxu0 0.0
    %1327 = vmatpush1.msra.mxu0 0.0
    %1328 = vmatprep.subr.mxu0 0.0
    %1329 = vmatpush1.msra.mxu0 0.0
    %1330 = vmatprep.subr.mxu0 0.0
    %1331 = vmatpush1.msra.mxu0 0.0
    %1332 = vmatprep.subr.mxu0 0.0
    %1333 = vmatpush1.msra.mxu0 0.0
    %1334 = vmatprep.subr.mxu0 0.0
    %1335 = vmatpush1.msra.mxu0 0.0
    %1336 = vmatprep.subr.mxu0 0.0
    %1337 = vmatpush1.msra.mxu0 0.0
    %1338 = vmatprep.subr.mxu0 0.0
    %1339 = vmatpush1.msra.mxu0 0.0
    %1340 = vmatprep.subr.mxu0 0.0
    %1341 = vmatpush1.msra.mxu0 0.0
    %1342 = vmatprep.subr.mxu0 0.0
    %1343 = vmatpush1.msra.mxu0 0.0
    %1344 = vmatprep.subr.mxu0 0.0
    %1345 = vmatpush1.msra.mxu0 0.0
    %1346 = vmatprep.subr.mxu0 0.0
    %1347 = vmatpush1.msra.mxu0 0.0
    %1348 = vmatprep.subr.mxu0 0.0
    %1349 = vmatpush1.msra.mxu0 0.0
    %1350 = vmatprep.subr.mxu0 0.0
    %1351 = vmatpush1.msra.mxu0 0.0
    %1352 = vmatprep.subr.mxu0 0.0
    %1353 = vmatpush1.msra.mxu0 0.0
    %1354 = vmatprep.subr.mxu0 0.0
    %1355 = vmatpush1.msra.mxu0 0.0
    %1356 = vmatprep.subr.mxu0 0.0
    %1357 = vmatpush1.msra.mxu0 0.0
    %1358 = vmatprep.subr.mxu0 0.0
    %1359 = vmatpush1.msra.mxu0 0.0
    %1360 = vmatprep.mubr.f32.mxu0 0.0
    %v1361 = vand.u32 %v853, 4294901760
    %1362 = vmatmul.mubr.f32.gmra.mrb[0].mxu0 %v1361
    %v1363 = vpop.f32.mrb[0].mxu0
    %v1364 = vadd.f32 %v1257, %v1363
    %v1365 = vpop.f32.mrb[0].mxu0
    %1366 = vmatprep.mubr.f32.mxu0 0.0
    %v1367 = vand.u32 %v856, 4294901760
    %1368 = vmatmul.mubr.f32.gmra.mrb[0].mxu0 %v1367
    %v1369 = vpop.f32.mrb[0].mxu0
    %v1370 = vadd.f32 %v1265, %v1369
    %v1371 = vpop.f32.mrb[0].mxu0
    %1372 = vmatprep.mubr.f32.mxu0 0.0
    %v1373 = vand.u32 %v859, 4294901760
    %1374 = vmatmul.mubr.f32.gmra.mrb[0].mxu0 %v1373
    %v1375 = vpop.f32.mrb[0].mxu0
    %v1376 = vadd.f32 %v1273, %v1375
    %v1377 = vpop.f32.mrb[0].mxu0
    %1378 = vmatprep.mubr.f32.mxu0 0.0
    %v1379 = vand.u32 %v862, 4294901760
    %1380 = vmatmul.mubr.f32.gmra.mrb[0].mxu0 %v1379
    %v1381 = vpop.f32.mrb[0].mxu0
    %v1382 = vadd.f32 %v1281, %v1381
    %v1383 = vpop.f32.mrb[0].mxu0
    %1384 = vdwg.mxu0
    %1385 = vmatprep.subr.mxu0 0.0
    %v1386 = vand.u32 %v827, 4294901760
    %1387 = vmatpush1.msra.mxu0 %v1386
    %1388 = vmatprep.subr.mxu0 0.0
    %v1389 = vand.u32 %v828, 4294901760
    %1390 = vmatpush1.msra.mxu0 %v1389
    %1391 = vmatprep.subr.mxu0 0.0
    %v1392 = vand.u32 %v829, 4294901760
    %1393 = vmatpush1.msra.mxu0 %v1392
    %1394 = vmatprep.subr.mxu0 0.0
    %v1395 = vand.u32 %v830, 4294901760
    %1396 = vmatpush1.msra.mxu0 %v1395
    %1397 = vmatprep.subr.mxu0 0.0
    %1398 = vmatpush1.msra.mxu0 0.0
    %1399 = vmatprep.subr.mxu0 0.0
    %1400 = vmatpush1.msra.mxu0 0.0
    %1401 = vmatprep.subr.mxu0 0.0
    %1402 = vmatpush1.msra.mxu0 0.0
    %1403 = vmatprep.subr.mxu0 0.0
    %1404 = vmatpush1.msra.mxu0 0.0
    %1405 = vmatprep.subr.mxu0 0.0
    %1406 = vmatpush1.msra.mxu0 0.0
    %1407 = vmatprep.subr.mxu0 0.0
    %1408 = vmatpush1.msra.mxu0 0.0
    %1409 = vmatprep.subr.mxu0 0.0
    %1410 = vmatpush1.msra.mxu0 0.0
    %1411 = vmatprep.subr.mxu0 0.0
    %1412 = vmatpush1.msra.mxu0 0.0
    %1413 = vmatprep.subr.mxu0 0.0
    %1414 = vmatpush1.msra.mxu0 0.0
    %1415 = vmatprep.subr.mxu0 0.0
    %1416 = vmatpush1.msra.mxu0 0.0
    %1417 = vmatprep.subr.mxu0 0.0
    %1418 = vmatpush1.msra.mxu0 0.0
    %1419 = vmatprep.subr.mxu0 0.0
    %1420 = vmatpush1.msra.mxu0 0.0
    %1421 = vmatprep.subr.mxu0 0.0
    %1422 = vmatpush1.msra.mxu0 0.0
    %1423 = vmatprep.subr.mxu0 0.0
    %1424 = vmatpush1.msra.mxu0 0.0
    %1425 = vmatprep.subr.mxu0 0.0
    %1426 = vmatpush1.msra.mxu0 0.0
    %1427 = vmatprep.subr.mxu0 0.0
    %1428 = vmatpush1.msra.mxu0 0.0
    %1429 = vmatprep.subr.mxu0 0.0
    %1430 = vmatpush1.msra.mxu0 0.0
    %1431 = vmatprep.subr.mxu0 0.0
    %1432 = vmatpush1.msra.mxu0 0.0
    %1433 = vmatprep.subr.mxu0 0.0
    %1434 = vmatpush1.msra.mxu0 0.0
    %1435 = vmatprep.subr.mxu0 0.0
    %1436 = vmatpush1.msra.mxu0 0.0
    %1437 = vmatprep.subr.mxu0 0.0
    %1438 = vmatpush1.msra.mxu0 0.0
    %1439 = vmatprep.subr.mxu0 0.0
    %1440 = vmatpush1.msra.mxu0 0.0
    %1441 = vmatprep.subr.mxu0 0.0
    %1442 = vmatpush1.msra.mxu0 0.0
    %1443 = vmatprep.subr.mxu0 0.0
    %1444 = vmatpush1.msra.mxu0 0.0
    %1445 = vmatprep.subr.mxu0 0.0
    %1446 = vmatpush1.msra.mxu0 0.0
    %1447 = vmatprep.subr.mxu0 0.0
    %1448 = vmatpush1.msra.mxu0 0.0
    %1449 = vmatprep.subr.mxu0 0.0
    %1450 = vmatpush1.msra.mxu0 0.0
    %1451 = vmatprep.subr.mxu0 0.0
    %1452 = vmatpush1.msra.mxu0 0.0
    %1453 = vmatprep.mubr.f32.mxu0 0.0
    %v1454 = vand.u32 %v853, 4294901760
    %1455 = vmatmul.mubr.f32.gmra.mrb[0].mxu0 %v1454
    %v1456 = vpop.f32.mrb[0].mxu0
    %v1457 = vadd.f32 %v1364, %v1456
    %v1458 = vpop.f32.mrb[0].mxu0
    %1459 = vmatprep.mubr.f32.mxu0 0.0
    %v1460 = vand.u32 %v856, 4294901760
    %1461 = vmatmul.mubr.f32.gmra.mrb[0].mxu0 %v1460
    %v1462 = vpop.f32.mrb[0].mxu0
    %v1463 = vadd.f32 %v1370, %v1462
    %v1464 = vpop.f32.mrb[0].mxu0
    %1465 = vmatprep.mubr.f32.mxu0 0.0
    %v1466 = vand.u32 %v859, 4294901760
    %1467 = vmatmul.mubr.f32.gmra.mrb[0].mxu0 %v1466
    %v1468 = vpop.f32.mrb[0].mxu0
    %v1469 = vadd.f32 %v1376, %v1468
    %v1470 = vpop.f32.mrb[0].mxu0
    %1471 = vmatprep.mubr.f32.mxu0 0.0
    %v1472 = vand.u32 %v862, 4294901760
    %1473 = vmatmul.mubr.f32.gmra.mrb[0].mxu0 %v1472
    %v1474 = vpop.f32.mrb[0].mxu0
    %v1475 = vadd.f32 %v1382, %v1474
    %v1476 = vpop.f32.mrb[0].mxu0
    %1477 = vdwg.mxu0
    %v1478 = vadd.f32 %v1457, %v1463
    %v1479 = vadd.f32 %v1478, %v1469
    %v1480 = vadd.f32 %v1479, %v1475
    %v1481 = vrot.slane %v1480, 4
    %v1482 = vadd.f32 %v1480, %v1481
    %v1483 = vrot.slane %v1482, 2
    %v1484 = vadd.f32 %v1482, %v1483
    %v1485 = vrot.slane %v1484, 1
    %v1486 = vadd.f32 %v1484, %v1485
    %v1487 = vmul.f32 %v1486, %v759
    %v1488 = vmul.f32 %v1457, %v1457
    %v1489 = vmul.f32 %v1463, %v1463
    %v1490 = vmul.f32 %v1469, %v1469
    %v1491 = vmul.f32 %v1475, %v1475
    %v1492 = vadd.f32 %v1488, %v1489
    %v1493 = vadd.f32 %v1492, %v1490
    %v1494 = vadd.f32 %v1493, %v1491
    %v1495 = vrot.slane %v1494, 4
    %v1496 = vadd.f32 %v1494, %v1495
    %v1497 = vrot.slane %v1496, 2
    %v1498 = vadd.f32 %v1496, %v1497
    %v1499 = vrot.slane %v1498, 1
    %v1500 = vadd.f32 %v1498, %v1499
    %v1501 = vmul.f32 %v1500, %v759
    %v1502 = vmul.f32 %v1487, %v1487
    %v1503 = vsub.f32 %v1501, %v1502
    %v1504 = vsub.f32 %v1457, %v1487
    %v1505 = vsub.f32 %v1463, %v1487
    %v1506 = vsub.f32 %v1469, %v1487
    %v1507 = vsub.f32 %v1475, %v1487
    %v1508 = vadd.f32 %v1503, 1e-05
    %v1509 = vrsqrt.pop %v1508
    %v1510 = vmul.f32 %v1504, %v1509
    %v1511 = vmul.f32 %v1505, %v1509
    %v1512 = vmul.f32 %v1506, %v1509
    %v1513 = vmul.f32 %v1507, %v1509
    %1514 = vset.pattern.permute.xlu0 5
    %1515 = vperm.xlu0 %1514, %v32
    %v1516 = vpop.permute.xlu0 %1515
    %1518 = vset.pattern.permute.xlu0 5
    %1519 = vperm.xlu0 %1518, %v33
    %v1520 = vpop.permute.xlu0 %1519
    %1522 = vset.pattern.permute.xlu0 5
    %1523 = vperm.xlu0 %1522, %v34
    %v1524 = vpop.permute.xlu0 %1523
    %1526 = vset.pattern.permute.xlu0 5
    %1527 = vperm.xlu0 %1526, %v35
    %v1528 = vpop.permute.xlu0 %1527
    %v1530 = vmul.f32 %v1510, %v1516
    %v1531 = vmul.f32 %v1511, %v1520
    %v1532 = vmul.f32 %v1512, %v1524
    %v1533 = vmul.f32 %v1513, %v1528
    %1534 = vset.pattern.permute.xlu0 6
    %1535 = vperm.xlu0 %1534, %v32
    %v1536 = vpop.permute.xlu0 %1535
    %1538 = vset.pattern.permute.xlu0 6
    %1539 = vperm.xlu0 %1538, %v33
    %v1540 = vpop.permute.xlu0 %1539
    %1542 = vset.pattern.permute.xlu0 6
    %1543 = vperm.xlu0 %1542, %v34
    %v1544 = vpop.permute.xlu0 %1543
    %1546 = vset.pattern.permute.xlu0 6
    %1547 = vperm.xlu0 %1546, %v35
    %v1548 = vpop.permute.xlu0 %1547
    %v1550 = vadd.f32 %v1530, %v1536
    %v1551 = vadd.f32 %v1531, %v1540
    %v1552 = vadd.f32 %v1532, %v1544
    %v1553 = vadd.f32 %v1533, %v1548
    %v1554 = vmax.f32 %v1550, 0.0
    %v1555 = vmax.f32 %v1551, 0.0
    %v1556 = vmax.f32 %v1552, 0.0
    %v1557 = vmax.f32 %v1553, 0.0
    %v1558 = vld [vmem:[%s6] sm:$0xf]
    %1560 = vset.pattern.permute.xlu0 7
    %1561 = vperm.xlu0 %1560, %v36
    %v1562 = vpop.permute.xlu0 %1561
    %v1565 = vsel %vm851, %v1558, 0
    %1567 = vmatprep.subr.mxu0 0.0
    %v1568 = vand.u32 %v1554, 4294901760
    %1569 = vmatpush1.msra.mxu0 %v1568
    %1570 = vmatprep.subr.mxu0 0.0
    %v1571 = vand.u32 %v1555, 4294901760
    %1572 = vmatpush1.msra.mxu0 %v1571
    %1573 = vmatprep.subr.mxu0 0.0
    %v1574 = vand.u32 %v1556, 4294901760
    %1575 = vmatpush1.msra.mxu0 %v1574
    %1576 = vmatprep.subr.mxu0 0.0
    %v1577 = vand.u32 %v1557, 4294901760
    %1578 = vmatpush1.msra.mxu0 %v1577
    %1579 = vmatprep.subr.mxu0 0.0
    %1580 = vmatpush1.msra.mxu0 0.0
    %1581 = vmatprep.subr.mxu0 0.0
    %1582 = vmatpush1.msra.mxu0 0.0
    %1583 = vmatprep.subr.mxu0 0.0
    %1584 = vmatpush1.msra.mxu0 0.0
    %1585 = vmatprep.subr.mxu0 0.0
    %1586 = vmatpush1.msra.mxu0 0.0
    %1587 = vmatprep.subr.mxu0 0.0
    %1588 = vmatpush1.msra.mxu0 0.0
    %1589 = vmatprep.subr.mxu0 0.0
    %1590 = vmatpush1.msra.mxu0 0.0
    %1591 = vmatprep.subr.mxu0 0.0
    %1592 = vmatpush1.msra.mxu0 0.0
    %1593 = vmatprep.subr.mxu0 0.0
    %1594 = vmatpush1.msra.mxu0 0.0
    %1595 = vmatprep.subr.mxu0 0.0
    %1596 = vmatpush1.msra.mxu0 0.0
    %1597 = vmatprep.subr.mxu0 0.0
    %1598 = vmatpush1.msra.mxu0 0.0
    %1599 = vmatprep.subr.mxu0 0.0
    %1600 = vmatpush1.msra.mxu0 0.0
    %1601 = vmatprep.subr.mxu0 0.0
    %1602 = vmatpush1.msra.mxu0 0.0
    %1603 = vmatprep.subr.mxu0 0.0
    %1604 = vmatpush1.msra.mxu0 0.0
    %1605 = vmatprep.subr.mxu0 0.0
    %1606 = vmatpush1.msra.mxu0 0.0
    %1607 = vmatprep.subr.mxu0 0.0
    %1608 = vmatpush1.msra.mxu0 0.0
    %1609 = vmatprep.subr.mxu0 0.0
    %1610 = vmatpush1.msra.mxu0 0.0
    %1611 = vmatprep.subr.mxu0 0.0
    %1612 = vmatpush1.msra.mxu0 0.0
    %1613 = vmatprep.subr.mxu0 0.0
    %1614 = vmatpush1.msra.mxu0 0.0
    %1615 = vmatprep.subr.mxu0 0.0
    %1616 = vmatpush1.msra.mxu0 0.0
    %1617 = vmatprep.subr.mxu0 0.0
    %1618 = vmatpush1.msra.mxu0 0.0
    %1619 = vmatprep.subr.mxu0 0.0
    %1620 = vmatpush1.msra.mxu0 0.0
    %1621 = vmatprep.subr.mxu0 0.0
    %1622 = vmatpush1.msra.mxu0 0.0
    %1623 = vmatprep.subr.mxu0 0.0
    %1624 = vmatpush1.msra.mxu0 0.0
    %1625 = vmatprep.subr.mxu0 0.0
    %1626 = vmatpush1.msra.mxu0 0.0
    %1627 = vmatprep.subr.mxu0 0.0
    %1628 = vmatpush1.msra.mxu0 0.0
    %1629 = vmatprep.subr.mxu0 0.0
    %1630 = vmatpush1.msra.mxu0 0.0
    %1631 = vmatprep.subr.mxu0 0.0
    %1632 = vmatpush1.msra.mxu0 0.0
    %1633 = vmatprep.subr.mxu0 0.0
    %1634 = vmatpush1.msra.mxu0 0.0
    %1635 = vmatprep.mubr.f32.mxu0 0.0
    %v1636 = vand.u32 %v1565, 4294901760
    %v1637 = vsub.f32 %v1565, %v1636
    %v1638 = vand.u32 %v1637, 4294901760
    %v1639 = vsub.f32 %v1637, %v1638
    %v1640 = vand.u32 %v1639, 4294901760
    %1641 = vmatmul.mubr.f32.gmra.mrb[0].mxu0 %v1640
    %v1642 = vpop.f32.mrb[0].mxu0
    %v1643 = vadd.f32 %v1562, %v1642
    %v1644 = vpop.f32.mrb[0].mxu0
    %1645 = vdwg.mxu0
    %1646 = vmatprep.subr.mxu0 0.0
    %v1647 = vand.u32 %v1554, 4294901760
    %v1648 = vsub.f32 %v1554, %v1647
    %v1649 = vand.u32 %v1648, 4294901760
    %v1650 = vsub.f32 %v1648, %v1649
    %v1651 = vand.u32 %v1650, 4294901760
    %1652 = vmatpush1.msra.mxu0 %v1651
    %1653 = vmatprep.subr.mxu0 0.0
    %v1654 = vand.u32 %v1555, 4294901760
    %v1655 = vsub.f32 %v1555, %v1654
    %v1656 = vand.u32 %v1655, 4294901760
    %v1657 = vsub.f32 %v1655, %v1656
    %v1658 = vand.u32 %v1657, 4294901760
    %1659 = vmatpush1.msra.mxu0 %v1658
    %1660 = vmatprep.subr.mxu0 0.0
    %v1661 = vand.u32 %v1556, 4294901760
    %v1662 = vsub.f32 %v1556, %v1661
    %v1663 = vand.u32 %v1662, 4294901760
    %v1664 = vsub.f32 %v1662, %v1663
    %v1665 = vand.u32 %v1664, 4294901760
    %1666 = vmatpush1.msra.mxu0 %v1665
    %1667 = vmatprep.subr.mxu0 0.0
    %v1668 = vand.u32 %v1557, 4294901760
    %v1669 = vsub.f32 %v1557, %v1668
    %v1670 = vand.u32 %v1669, 4294901760
    %v1671 = vsub.f32 %v1669, %v1670
    %v1672 = vand.u32 %v1671, 4294901760
    %1673 = vmatpush1.msra.mxu0 %v1672
    %1674 = vmatprep.subr.mxu0 0.0
    %1675 = vmatpush1.msra.mxu0 0.0
    %1676 = vmatprep.subr.mxu0 0.0
    %1677 = vmatpush1.msra.mxu0 0.0
    %1678 = vmatprep.subr.mxu0 0.0
    %1679 = vmatpush1.msra.mxu0 0.0
    %1680 = vmatprep.subr.mxu0 0.0
    %1681 = vmatpush1.msra.mxu0 0.0
    %1682 = vmatprep.subr.mxu0 0.0
    %1683 = vmatpush1.msra.mxu0 0.0
    %1684 = vmatprep.subr.mxu0 0.0
    %1685 = vmatpush1.msra.mxu0 0.0
    %1686 = vmatprep.subr.mxu0 0.0
    %1687 = vmatpush1.msra.mxu0 0.0
    %1688 = vmatprep.subr.mxu0 0.0
    %1689 = vmatpush1.msra.mxu0 0.0
    %1690 = vmatprep.subr.mxu0 0.0
    %1691 = vmatpush1.msra.mxu0 0.0
    %1692 = vmatprep.subr.mxu0 0.0
    %1693 = vmatpush1.msra.mxu0 0.0
    %1694 = vmatprep.subr.mxu0 0.0
    %1695 = vmatpush1.msra.mxu0 0.0
    %1696 = vmatprep.subr.mxu0 0.0
    %1697 = vmatpush1.msra.mxu0 0.0
    %1698 = vmatprep.subr.mxu0 0.0
    %1699 = vmatpush1.msra.mxu0 0.0
    %1700 = vmatprep.subr.mxu0 0.0
    %1701 = vmatpush1.msra.mxu0 0.0
    %1702 = vmatprep.subr.mxu0 0.0
    %1703 = vmatpush1.msra.mxu0 0.0
    %1704 = vmatprep.subr.mxu0 0.0
    %1705 = vmatpush1.msra.mxu0 0.0
    %1706 = vmatprep.subr.mxu0 0.0
    %1707 = vmatpush1.msra.mxu0 0.0
    %1708 = vmatprep.subr.mxu0 0.0
    %1709 = vmatpush1.msra.mxu0 0.0
    %1710 = vmatprep.subr.mxu0 0.0
    %1711 = vmatpush1.msra.mxu0 0.0
    %1712 = vmatprep.subr.mxu0 0.0
    %1713 = vmatpush1.msra.mxu0 0.0
    %1714 = vmatprep.subr.mxu0 0.0
    %1715 = vmatpush1.msra.mxu0 0.0
    %1716 = vmatprep.subr.mxu0 0.0
    %1717 = vmatpush1.msra.mxu0 0.0
    %1718 = vmatprep.subr.mxu0 0.0
    %1719 = vmatpush1.msra.mxu0 0.0
    %1720 = vmatprep.subr.mxu0 0.0
    %1721 = vmatpush1.msra.mxu0 0.0
    %1722 = vmatprep.subr.mxu0 0.0
    %1723 = vmatpush1.msra.mxu0 0.0
    %1724 = vmatprep.subr.mxu0 0.0
    %1725 = vmatpush1.msra.mxu0 0.0
    %1726 = vmatprep.subr.mxu0 0.0
    %1727 = vmatpush1.msra.mxu0 0.0
    %1728 = vmatprep.subr.mxu0 0.0
    %1729 = vmatpush1.msra.mxu0 0.0
    %1730 = vmatprep.mubr.f32.mxu0 0.0
    %v1731 = vand.u32 %v1565, 4294901760
    %1732 = vmatmul.mubr.f32.gmra.mrb[0].mxu0 %v1731
    %v1733 = vpop.f32.mrb[0].mxu0
    %v1734 = vadd.f32 %v1643, %v1733
    %v1735 = vpop.f32.mrb[0].mxu0
    %1736 = vdwg.mxu0
    %1737 = vmatprep.subr.mxu0 0.0
    %v1738 = vand.u32 %v1554, 4294901760
    %v1739 = vsub.f32 %v1554, %v1738
    %1740 = vmatpush1.msra.mxu0 %v1739
    %1741 = vmatprep.subr.mxu0 0.0
    %v1742 = vand.u32 %v1555, 4294901760
    %v1743 = vsub.f32 %v1555, %v1742
    %1744 = vmatpush1.msra.mxu0 %v1743
    %1745 = vmatprep.subr.mxu0 0.0
    %v1746 = vand.u32 %v1556, 4294901760
    %v1747 = vsub.f32 %v1556, %v1746
    %1748 = vmatpush1.msra.mxu0 %v1747
    %1749 = vmatprep.subr.mxu0 0.0
    %v1750 = vand.u32 %v1557, 4294901760
    %v1751 = vsub.f32 %v1557, %v1750
    %1752 = vmatpush1.msra.mxu0 %v1751
    %1753 = vmatprep.subr.mxu0 0.0
    %1754 = vmatpush1.msra.mxu0 0.0
    %1755 = vmatprep.subr.mxu0 0.0
    %1756 = vmatpush1.msra.mxu0 0.0
    %1757 = vmatprep.subr.mxu0 0.0
    %1758 = vmatpush1.msra.mxu0 0.0
    %1759 = vmatprep.subr.mxu0 0.0
    %1760 = vmatpush1.msra.mxu0 0.0
    %1761 = vmatprep.subr.mxu0 0.0
    %1762 = vmatpush1.msra.mxu0 0.0
    %1763 = vmatprep.subr.mxu0 0.0
    %1764 = vmatpush1.msra.mxu0 0.0
    %1765 = vmatprep.subr.mxu0 0.0
    %1766 = vmatpush1.msra.mxu0 0.0
    %1767 = vmatprep.subr.mxu0 0.0
    %1768 = vmatpush1.msra.mxu0 0.0
    %1769 = vmatprep.subr.mxu0 0.0
    %1770 = vmatpush1.msra.mxu0 0.0
    %1771 = vmatprep.subr.mxu0 0.0
    %1772 = vmatpush1.msra.mxu0 0.0
    %1773 = vmatprep.subr.mxu0 0.0
    %1774 = vmatpush1.msra.mxu0 0.0
    %1775 = vmatprep.subr.mxu0 0.0
    %1776 = vmatpush1.msra.mxu0 0.0
    %1777 = vmatprep.subr.mxu0 0.0
    %1778 = vmatpush1.msra.mxu0 0.0
    %1779 = vmatprep.subr.mxu0 0.0
    %1780 = vmatpush1.msra.mxu0 0.0
    %1781 = vmatprep.subr.mxu0 0.0
    %1782 = vmatpush1.msra.mxu0 0.0
    %1783 = vmatprep.subr.mxu0 0.0
    %1784 = vmatpush1.msra.mxu0 0.0
    %1785 = vmatprep.subr.mxu0 0.0
    %1786 = vmatpush1.msra.mxu0 0.0
    %1787 = vmatprep.subr.mxu0 0.0
    %1788 = vmatpush1.msra.mxu0 0.0
    %1789 = vmatprep.subr.mxu0 0.0
    %1790 = vmatpush1.msra.mxu0 0.0
    %1791 = vmatprep.subr.mxu0 0.0
    %1792 = vmatpush1.msra.mxu0 0.0
    %1793 = vmatprep.subr.mxu0 0.0
    %1794 = vmatpush1.msra.mxu0 0.0
    %1795 = vmatprep.subr.mxu0 0.0
    %1796 = vmatpush1.msra.mxu0 0.0
    %1797 = vmatprep.subr.mxu0 0.0
    %1798 = vmatpush1.msra.mxu0 0.0
    %1799 = vmatprep.subr.mxu0 0.0
    %1800 = vmatpush1.msra.mxu0 0.0
    %1801 = vmatprep.subr.mxu0 0.0
    %1802 = vmatpush1.msra.mxu0 0.0
    %1803 = vmatprep.subr.mxu0 0.0
    %1804 = vmatpush1.msra.mxu0 0.0
    %1805 = vmatprep.subr.mxu0 0.0
    %1806 = vmatpush1.msra.mxu0 0.0
    %1807 = vmatprep.subr.mxu0 0.0
    %1808 = vmatpush1.msra.mxu0 0.0
    %1809 = vmatprep.mubr.f32.mxu0 0.0
    %v1810 = vand.u32 %v1565, 4294901760
    %v1811 = vsub.f32 %v1565, %v1810
    %1812 = vmatmul.mubr.f32.gmra.mrb[0].mxu0 %v1811
    %v1813 = vpop.f32.mrb[0].mxu0
    %v1814 = vadd.f32 %v1734, %v1813
    %v1815 = vpop.f32.mrb[0].mxu0
    %1816 = vdwg.mxu0
    %1817 = vmatprep.subr.mxu0 0.0
    %v1818 = vand.u32 %v1554, 4294901760
    %1819 = vmatpush1.msra.mxu0 %v1818
    %1820 = vmatprep.subr.mxu0 0.0
    %v1821 = vand.u32 %v1555, 4294901760
    %1822 = vmatpush1.msra.mxu0 %v1821
    %1823 = vmatprep.subr.mxu0 0.0
    %v1824 = vand.u32 %v1556, 4294901760
    %1825 = vmatpush1.msra.mxu0 %v1824
    %1826 = vmatprep.subr.mxu0 0.0
    %v1827 = vand.u32 %v1557, 4294901760
    %1828 = vmatpush1.msra.mxu0 %v1827
    %1829 = vmatprep.subr.mxu0 0.0
    %1830 = vmatpush1.msra.mxu0 0.0
    %1831 = vmatprep.subr.mxu0 0.0
    %1832 = vmatpush1.msra.mxu0 0.0
    %1833 = vmatprep.subr.mxu0 0.0
    %1834 = vmatpush1.msra.mxu0 0.0
    %1835 = vmatprep.subr.mxu0 0.0
    %1836 = vmatpush1.msra.mxu0 0.0
    %1837 = vmatprep.subr.mxu0 0.0
    %1838 = vmatpush1.msra.mxu0 0.0
    %1839 = vmatprep.subr.mxu0 0.0
    %1840 = vmatpush1.msra.mxu0 0.0
    %1841 = vmatprep.subr.mxu0 0.0
    %1842 = vmatpush1.msra.mxu0 0.0
    %1843 = vmatprep.subr.mxu0 0.0
    %1844 = vmatpush1.msra.mxu0 0.0
    %1845 = vmatprep.subr.mxu0 0.0
    %1846 = vmatpush1.msra.mxu0 0.0
    %1847 = vmatprep.subr.mxu0 0.0
    %1848 = vmatpush1.msra.mxu0 0.0
    %1849 = vmatprep.subr.mxu0 0.0
    %1850 = vmatpush1.msra.mxu0 0.0
    %1851 = vmatprep.subr.mxu0 0.0
    %1852 = vmatpush1.msra.mxu0 0.0
    %1853 = vmatprep.subr.mxu0 0.0
    %1854 = vmatpush1.msra.mxu0 0.0
    %1855 = vmatprep.subr.mxu0 0.0
    %1856 = vmatpush1.msra.mxu0 0.0
    %1857 = vmatprep.subr.mxu0 0.0
    %1858 = vmatpush1.msra.mxu0 0.0
    %1859 = vmatprep.subr.mxu0 0.0
    %1860 = vmatpush1.msra.mxu0 0.0
    %1861 = vmatprep.subr.mxu0 0.0
    %1862 = vmatpush1.msra.mxu0 0.0
    %1863 = vmatprep.subr.mxu0 0.0
    %1864 = vmatpush1.msra.mxu0 0.0
    %1865 = vmatprep.subr.mxu0 0.0
    %1866 = vmatpush1.msra.mxu0 0.0
    %1867 = vmatprep.subr.mxu0 0.0
    %1868 = vmatpush1.msra.mxu0 0.0
    %1869 = vmatprep.subr.mxu0 0.0
    %1870 = vmatpush1.msra.mxu0 0.0
    %1871 = vmatprep.subr.mxu0 0.0
    %1872 = vmatpush1.msra.mxu0 0.0
    %1873 = vmatprep.subr.mxu0 0.0
    %1874 = vmatpush1.msra.mxu0 0.0
    %1875 = vmatprep.subr.mxu0 0.0
    %1876 = vmatpush1.msra.mxu0 0.0
    %1877 = vmatprep.subr.mxu0 0.0
    %1878 = vmatpush1.msra.mxu0 0.0
    %1879 = vmatprep.subr.mxu0 0.0
    %1880 = vmatpush1.msra.mxu0 0.0
    %1881 = vmatprep.subr.mxu0 0.0
    %1882 = vmatpush1.msra.mxu0 0.0
    %1883 = vmatprep.subr.mxu0 0.0
    %1884 = vmatpush1.msra.mxu0 0.0
    %1885 = vmatprep.mubr.f32.mxu0 0.0
    %v1886 = vand.u32 %v1565, 4294901760
    %v1887 = vsub.f32 %v1565, %v1886
    %v1888 = vand.u32 %v1887, 4294901760
    %1889 = vmatmul.mubr.f32.gmra.mrb[0].mxu0 %v1888
    %v1890 = vpop.f32.mrb[0].mxu0
    %v1891 = vadd.f32 %v1814, %v1890
    %v1892 = vpop.f32.mrb[0].mxu0
    %1893 = vdwg.mxu0
    %1894 = vmatprep.subr.mxu0 0.0
    %v1895 = vand.u32 %v1554, 4294901760
    %v1896 = vsub.f32 %v1554, %v1895
    %v1897 = vand.u32 %v1896, 4294901760
    %1898 = vmatpush1.msra.mxu0 %v1897
    %1899 = vmatprep.subr.mxu0 0.0
    %v1900 = vand.u32 %v1555, 4294901760
    %v1901 = vsub.f32 %v1555, %v1900
    %v1902 = vand.u32 %v1901, 4294901760
    %1903 = vmatpush1.msra.mxu0 %v1902
    %1904 = vmatprep.subr.mxu0 0.0
    %v1905 = vand.u32 %v1556, 4294901760
    %v1906 = vsub.f32 %v1556, %v1905
    %v1907 = vand.u32 %v1906, 4294901760
    %1908 = vmatpush1.msra.mxu0 %v1907
    %1909 = vmatprep.subr.mxu0 0.0
    %v1910 = vand.u32 %v1557, 4294901760
    %v1911 = vsub.f32 %v1557, %v1910
    %v1912 = vand.u32 %v1911, 4294901760
    %1913 = vmatpush1.msra.mxu0 %v1912
    %1914 = vmatprep.subr.mxu0 0.0
    %1915 = vmatpush1.msra.mxu0 0.0
    %1916 = vmatprep.subr.mxu0 0.0
    %1917 = vmatpush1.msra.mxu0 0.0
    %1918 = vmatprep.subr.mxu0 0.0
    %1919 = vmatpush1.msra.mxu0 0.0
    %1920 = vmatprep.subr.mxu0 0.0
    %1921 = vmatpush1.msra.mxu0 0.0
    %1922 = vmatprep.subr.mxu0 0.0
    %1923 = vmatpush1.msra.mxu0 0.0
    %1924 = vmatprep.subr.mxu0 0.0
    %1925 = vmatpush1.msra.mxu0 0.0
    %1926 = vmatprep.subr.mxu0 0.0
    %1927 = vmatpush1.msra.mxu0 0.0
    %1928 = vmatprep.subr.mxu0 0.0
    %1929 = vmatpush1.msra.mxu0 0.0
    %1930 = vmatprep.subr.mxu0 0.0
    %1931 = vmatpush1.msra.mxu0 0.0
    %1932 = vmatprep.subr.mxu0 0.0
    %1933 = vmatpush1.msra.mxu0 0.0
    %1934 = vmatprep.subr.mxu0 0.0
    %1935 = vmatpush1.msra.mxu0 0.0
    %1936 = vmatprep.subr.mxu0 0.0
    %1937 = vmatpush1.msra.mxu0 0.0
    %1938 = vmatprep.subr.mxu0 0.0
    %1939 = vmatpush1.msra.mxu0 0.0
    %1940 = vmatprep.subr.mxu0 0.0
    %1941 = vmatpush1.msra.mxu0 0.0
    %1942 = vmatprep.subr.mxu0 0.0
    %1943 = vmatpush1.msra.mxu0 0.0
    %1944 = vmatprep.subr.mxu0 0.0
    %1945 = vmatpush1.msra.mxu0 0.0
    %1946 = vmatprep.subr.mxu0 0.0
    %1947 = vmatpush1.msra.mxu0 0.0
    %1948 = vmatprep.subr.mxu0 0.0
    %1949 = vmatpush1.msra.mxu0 0.0
    %1950 = vmatprep.subr.mxu0 0.0
    %1951 = vmatpush1.msra.mxu0 0.0
    %1952 = vmatprep.subr.mxu0 0.0
    %1953 = vmatpush1.msra.mxu0 0.0
    %1954 = vmatprep.subr.mxu0 0.0
    %1955 = vmatpush1.msra.mxu0 0.0
    %1956 = vmatprep.subr.mxu0 0.0
    %1957 = vmatpush1.msra.mxu0 0.0
    %1958 = vmatprep.subr.mxu0 0.0
    %1959 = vmatpush1.msra.mxu0 0.0
    %1960 = vmatprep.subr.mxu0 0.0
    %1961 = vmatpush1.msra.mxu0 0.0
    %1962 = vmatprep.subr.mxu0 0.0
    %1963 = vmatpush1.msra.mxu0 0.0
    %1964 = vmatprep.subr.mxu0 0.0
    %1965 = vmatpush1.msra.mxu0 0.0
    %1966 = vmatprep.subr.mxu0 0.0
    %1967 = vmatpush1.msra.mxu0 0.0
    %1968 = vmatprep.subr.mxu0 0.0
    %1969 = vmatpush1.msra.mxu0 0.0
    %1970 = vmatprep.mubr.f32.mxu0 0.0
    %v1971 = vand.u32 %v1565, 4294901760
    %1972 = vmatmul.mubr.f32.gmra.mrb[0].mxu0 %v1971
    %v1973 = vpop.f32.mrb[0].mxu0
    %v1974 = vadd.f32 %v1891, %v1973
    %v1975 = vpop.f32.mrb[0].mxu0
    %1976 = vdwg.mxu0
    %1977 = vmatprep.subr.mxu0 0.0
    %v1978 = vand.u32 %v1554, 4294901760
    %1979 = vmatpush1.msra.mxu0 %v1978
    %1980 = vmatprep.subr.mxu0 0.0
    %v1981 = vand.u32 %v1555, 4294901760
    %1982 = vmatpush1.msra.mxu0 %v1981
    %1983 = vmatprep.subr.mxu0 0.0
    %v1984 = vand.u32 %v1556, 4294901760
    %1985 = vmatpush1.msra.mxu0 %v1984
    %1986 = vmatprep.subr.mxu0 0.0
    %v1987 = vand.u32 %v1557, 4294901760
    %1988 = vmatpush1.msra.mxu0 %v1987
    %1989 = vmatprep.subr.mxu0 0.0
    %1990 = vmatpush1.msra.mxu0 0.0
    %1991 = vmatprep.subr.mxu0 0.0
    %1992 = vmatpush1.msra.mxu0 0.0
    %1993 = vmatprep.subr.mxu0 0.0
    %1994 = vmatpush1.msra.mxu0 0.0
    %1995 = vmatprep.subr.mxu0 0.0
    %1996 = vmatpush1.msra.mxu0 0.0
    %1997 = vmatprep.subr.mxu0 0.0
    %1998 = vmatpush1.msra.mxu0 0.0
    %1999 = vmatprep.subr.mxu0 0.0
    %2000 = vmatpush1.msra.mxu0 0.0
    %2001 = vmatprep.subr.mxu0 0.0
    %2002 = vmatpush1.msra.mxu0 0.0
    %2003 = vmatprep.subr.mxu0 0.0
    %2004 = vmatpush1.msra.mxu0 0.0
    %2005 = vmatprep.subr.mxu0 0.0
    %2006 = vmatpush1.msra.mxu0 0.0
    %2007 = vmatprep.subr.mxu0 0.0
    %2008 = vmatpush1.msra.mxu0 0.0
    %2009 = vmatprep.subr.mxu0 0.0
    %2010 = vmatpush1.msra.mxu0 0.0
    %2011 = vmatprep.subr.mxu0 0.0
    %2012 = vmatpush1.msra.mxu0 0.0
    %2013 = vmatprep.subr.mxu0 0.0
    %2014 = vmatpush1.msra.mxu0 0.0
    %2015 = vmatprep.subr.mxu0 0.0
    %2016 = vmatpush1.msra.mxu0 0.0
    %2017 = vmatprep.subr.mxu0 0.0
    %2018 = vmatpush1.msra.mxu0 0.0
    %2019 = vmatprep.subr.mxu0 0.0
    %2020 = vmatpush1.msra.mxu0 0.0
    %2021 = vmatprep.subr.mxu0 0.0
    %2022 = vmatpush1.msra.mxu0 0.0
    %2023 = vmatprep.subr.mxu0 0.0
    %2024 = vmatpush1.msra.mxu0 0.0
    %2025 = vmatprep.subr.mxu0 0.0
    %2026 = vmatpush1.msra.mxu0 0.0
    %2027 = vmatprep.subr.mxu0 0.0
    %2028 = vmatpush1.msra.mxu0 0.0
    %2029 = vmatprep.subr.mxu0 0.0
    %2030 = vmatpush1.msra.mxu0 0.0
    %2031 = vmatprep.subr.mxu0 0.0
    %2032 = vmatpush1.msra.mxu0 0.0
    %2033 = vmatprep.subr.mxu0 0.0
    %2034 = vmatpush1.msra.mxu0 0.0
    %2035 = vmatprep.subr.mxu0 0.0
    %2036 = vmatpush1.msra.mxu0 0.0
    %2037 = vmatprep.subr.mxu0 0.0
    %2038 = vmatpush1.msra.mxu0 0.0
    %2039 = vmatprep.subr.mxu0 0.0
    %2040 = vmatpush1.msra.mxu0 0.0
    %2041 = vmatprep.subr.mxu0 0.0
    %2042 = vmatpush1.msra.mxu0 0.0
    %2043 = vmatprep.subr.mxu0 0.0
    %2044 = vmatpush1.msra.mxu0 0.0
    %2045 = vmatprep.mubr.f32.mxu0 0.0
    %v2046 = vand.u32 %v1565, 4294901760
    %2047 = vmatmul.mubr.f32.gmra.mrb[0].mxu0 %v2046
    %v2048 = vpop.f32.mrb[0].mxu0
    %v2049 = vadd.f32 %v1974, %v2048
    %v2050 = vpop.f32.mrb[0].mxu0
    %2051 = vdwg.mxu0
    %v2052 = vxor.u32 %v2049, 2147483648
    %v2053 = vmul.f32 %v2052, 1.442695
    %v2054 = vpow.pop %v2053
    %v2055 = vadd.f32 %v2054, 1.0
    %v2056 = vrcp.pop %v2055
    %v2057 = vmul.f32 1.0, %v2056
    %v2058 = vadd.f32 %v2057, 1e-06
    %v2060 = vrot.slane %v2049, 6
    %v2062 = vadd.f32 %v123, %v2060
    %v2063 = vmul.f32 %v2062, %v2058
    %v2064 = vlog2.pop %v2058
    %v2065 = vmul.f32 %v2064, 0.6931472
    %v2066 = vsel %vm129, %v2065, 0.0
    %v2068 = vrot.slane %v2066, 2
    %v2070 = vsel %vm133, %v2068, 0.0
    %2071 = vadd.xlane.f32.xlu0 %v2070
    %v2072 = vpop.xlane.xlu0 %2071
    %v2073 = vrot.slane %v2072, 4
    %v2074 = vadd.f32 %v2072, %v2073
    %v2075 = vrot.slane %v2074, 2
    %v2076 = vadd.f32 %v2074, %v2075
    %v2077 = vrot.slane %v2076, 1
    %v2078 = vadd.f32 %v2076, %v2077
    %s2079 = vtos %v2078
    %v2080 = vstv %s2079
    %v2082 = vrot.slane %v123, 4
    %v2084 = vrot.slane %v31, 2
    %v2086 = vsel %vm133, %v2082, %v2084
    %v2088 = vsel %vm171, %v2086, 0
    %2090 = vmatprep.subr.mxu0 0.0
    %v2091 = vand.u32 %v2088, 4294901760
    %2092 = vmatpush1.msra.mxu0 %v2091
    %2093 = vmatprep.subr.mxu0 0.0
    %2094 = vmatpush1.msra.mxu0 0.0
    %2095 = vmatprep.subr.mxu0 0.0
    %2096 = vmatpush1.msra.mxu0 0.0
    %2097 = vmatprep.subr.mxu0 0.0
    %2098 = vmatpush1.msra.mxu0 0.0
    %2099 = vmatprep.subr.mxu0 0.0
    %2100 = vmatpush1.msra.mxu0 0.0
    %2101 = vmatprep.subr.mxu0 0.0
    %2102 = vmatpush1.msra.mxu0 0.0
    %2103 = vmatprep.subr.mxu0 0.0
    %2104 = vmatpush1.msra.mxu0 0.0
    %2105 = vmatprep.subr.mxu0 0.0
    %2106 = vmatpush1.msra.mxu0 0.0
    %2107 = vmatprep.subr.mxu0 0.0
    %2108 = vmatpush1.msra.mxu0 0.0
    %2109 = vmatprep.subr.mxu0 0.0
    %2110 = vmatpush1.msra.mxu0 0.0
    %2111 = vmatprep.subr.mxu0 0.0
    %2112 = vmatpush1.msra.mxu0 0.0
    %2113 = vmatprep.subr.mxu0 0.0
    %2114 = vmatpush1.msra.mxu0 0.0
    %2115 = vmatprep.subr.mxu0 0.0
    %2116 = vmatpush1.msra.mxu0 0.0
    %2117 = vmatprep.subr.mxu0 0.0
    %2118 = vmatpush1.msra.mxu0 0.0
    %2119 = vmatprep.subr.mxu0 0.0
    %2120 = vmatpush1.msra.mxu0 0.0
    %2121 = vmatprep.subr.mxu0 0.0
    %2122 = vmatpush1.msra.mxu0 0.0
    %2123 = vmatprep.subr.mxu0 0.0
    %2124 = vmatpush1.msra.mxu0 0.0
    %2125 = vmatprep.subr.mxu0 0.0
    %2126 = vmatpush1.msra.mxu0 0.0
    %2127 = vmatprep.subr.mxu0 0.0
    %2128 = vmatpush1.msra.mxu0 0.0
    %2129 = vmatprep.subr.mxu0 0.0
    %2130 = vmatpush1.msra.mxu0 0.0
    %2131 = vmatprep.subr.mxu0 0.0
    %2132 = vmatpush1.msra.mxu0 0.0
    %2133 = vmatprep.subr.mxu0 0.0
    %2134 = vmatpush1.msra.mxu0 0.0
    %2135 = vmatprep.subr.mxu0 0.0
    %2136 = vmatpush1.msra.mxu0 0.0
    %2137 = vmatprep.subr.mxu0 0.0
    %2138 = vmatpush1.msra.mxu0 0.0
    %2139 = vmatprep.subr.mxu0 0.0
    %2140 = vmatpush1.msra.mxu0 0.0
    %2141 = vmatprep.subr.mxu0 0.0
    %2142 = vmatpush1.msra.mxu0 0.0
    %2143 = vmatprep.subr.mxu0 0.0
    %2144 = vmatpush1.msra.mxu0 0.0
    %2145 = vmatprep.subr.mxu0 0.0
    %2146 = vmatpush1.msra.mxu0 0.0
    %2147 = vmatprep.subr.mxu0 0.0
    %2148 = vmatpush1.msra.mxu0 0.0
    %2149 = vmatprep.subr.mxu0 0.0
    %2150 = vmatpush1.msra.mxu0 0.0
    %2151 = vmatprep.subr.mxu0 0.0
    %2152 = vmatpush1.msra.mxu0 0.0
    %2153 = vmatprep.subr.mxu0 0.0
    %2154 = vmatpush1.msra.mxu0 0.0
    %2155 = vmatprep.mubr.f32.mxu0 0.0
    %v2156 = vand.u32 %v160, 4294901760
    %v2157 = vsub.f32 %v160, %v2156
    %v2158 = vand.u32 %v2157, 4294901760
    %v2159 = vsub.f32 %v2157, %v2158
    %v2160 = vand.u32 %v2159, 4294901760
    %2161 = vmatmul.mubr.f32.gmra.mrb[0].mxu0 %v2160
    %v2162 = vpop.f32.mrb[0].mxu0
    %v2163 = vadd.f32 %v141, %v2162
    %v2164 = vpop.f32.mrb[0].mxu0
    %2165 = vmatprep.mubr.f32.mxu0 0.0
    %v2166 = vand.u32 %v163, 4294901760
    %v2167 = vsub.f32 %v163, %v2166
    %v2168 = vand.u32 %v2167, 4294901760
    %v2169 = vsub.f32 %v2167, %v2168
    %v2170 = vand.u32 %v2169, 4294901760
    %2171 = vmatmul.mubr.f32.gmra.mrb[0].mxu0 %v2170
    %v2172 = vpop.f32.mrb[0].mxu0
    %v2173 = vadd.f32 %v146, %v2172
    %v2174 = vpop.f32.mrb[0].mxu0
    %2175 = vmatprep.mubr.f32.mxu0 0.0
    %v2176 = vand.u32 %v166, 4294901760
    %v2177 = vsub.f32 %v166, %v2176
    %v2178 = vand.u32 %v2177, 4294901760
    %v2179 = vsub.f32 %v2177, %v2178
    %v2180 = vand.u32 %v2179, 4294901760
    %2181 = vmatmul.mubr.f32.gmra.mrb[0].mxu0 %v2180
    %v2182 = vpop.f32.mrb[0].mxu0
    %v2183 = vadd.f32 %v151, %v2182
    %v2184 = vpop.f32.mrb[0].mxu0
    %2185 = vmatprep.mubr.f32.mxu0 0.0
    %v2186 = vand.u32 %v169, 4294901760
    %v2187 = vsub.f32 %v169, %v2186
    %v2188 = vand.u32 %v2187, 4294901760
    %v2189 = vsub.f32 %v2187, %v2188
    %v2190 = vand.u32 %v2189, 4294901760
    %2191 = vmatmul.mubr.f32.gmra.mrb[0].mxu0 %v2190
    %v2192 = vpop.f32.mrb[0].mxu0
    %v2193 = vadd.f32 %v156, %v2192
    %v2194 = vpop.f32.mrb[0].mxu0
    %2195 = vdwg.mxu0
    %2196 = vmatprep.subr.mxu0 0.0
    %v2197 = vand.u32 %v2088, 4294901760
    %v2198 = vsub.f32 %v2088, %v2197
    %v2199 = vand.u32 %v2198, 4294901760
    %v2200 = vsub.f32 %v2198, %v2199
    %v2201 = vand.u32 %v2200, 4294901760
    %2202 = vmatpush1.msra.mxu0 %v2201
    %2203 = vmatprep.subr.mxu0 0.0
    %2204 = vmatpush1.msra.mxu0 0.0
    %2205 = vmatprep.subr.mxu0 0.0
    %2206 = vmatpush1.msra.mxu0 0.0
    %2207 = vmatprep.subr.mxu0 0.0
    %2208 = vmatpush1.msra.mxu0 0.0
    %2209 = vmatprep.subr.mxu0 0.0
    %2210 = vmatpush1.msra.mxu0 0.0
    %2211 = vmatprep.subr.mxu0 0.0
    %2212 = vmatpush1.msra.mxu0 0.0
    %2213 = vmatprep.subr.mxu0 0.0
    %2214 = vmatpush1.msra.mxu0 0.0
    %2215 = vmatprep.subr.mxu0 0.0
    %2216 = vmatpush1.msra.mxu0 0.0
    %2217 = vmatprep.subr.mxu0 0.0
    %2218 = vmatpush1.msra.mxu0 0.0
    %2219 = vmatprep.subr.mxu0 0.0
    %2220 = vmatpush1.msra.mxu0 0.0
    %2221 = vmatprep.subr.mxu0 0.0
    %2222 = vmatpush1.msra.mxu0 0.0
    %2223 = vmatprep.subr.mxu0 0.0
    %2224 = vmatpush1.msra.mxu0 0.0
    %2225 = vmatprep.subr.mxu0 0.0
    %2226 = vmatpush1.msra.mxu0 0.0
    %2227 = vmatprep.subr.mxu0 0.0
    %2228 = vmatpush1.msra.mxu0 0.0
    %2229 = vmatprep.subr.mxu0 0.0
    %2230 = vmatpush1.msra.mxu0 0.0
    %2231 = vmatprep.subr.mxu0 0.0
    %2232 = vmatpush1.msra.mxu0 0.0
    %2233 = vmatprep.subr.mxu0 0.0
    %2234 = vmatpush1.msra.mxu0 0.0
    %2235 = vmatprep.subr.mxu0 0.0
    %2236 = vmatpush1.msra.mxu0 0.0
    %2237 = vmatprep.subr.mxu0 0.0
    %2238 = vmatpush1.msra.mxu0 0.0
    %2239 = vmatprep.subr.mxu0 0.0
    %2240 = vmatpush1.msra.mxu0 0.0
    %2241 = vmatprep.subr.mxu0 0.0
    %2242 = vmatpush1.msra.mxu0 0.0
    %2243 = vmatprep.subr.mxu0 0.0
    %2244 = vmatpush1.msra.mxu0 0.0
    %2245 = vmatprep.subr.mxu0 0.0
    %2246 = vmatpush1.msra.mxu0 0.0
    %2247 = vmatprep.subr.mxu0 0.0
    %2248 = vmatpush1.msra.mxu0 0.0
    %2249 = vmatprep.subr.mxu0 0.0
    %2250 = vmatpush1.msra.mxu0 0.0
    %2251 = vmatprep.subr.mxu0 0.0
    %2252 = vmatpush1.msra.mxu0 0.0
    %2253 = vmatprep.subr.mxu0 0.0
    %2254 = vmatpush1.msra.mxu0 0.0
    %2255 = vmatprep.subr.mxu0 0.0
    %2256 = vmatpush1.msra.mxu0 0.0
    %2257 = vmatprep.subr.mxu0 0.0
    %2258 = vmatpush1.msra.mxu0 0.0
    %2259 = vmatprep.subr.mxu0 0.0
    %2260 = vmatpush1.msra.mxu0 0.0
    %2261 = vmatprep.subr.mxu0 0.0
    %2262 = vmatpush1.msra.mxu0 0.0
    %2263 = vmatprep.subr.mxu0 0.0
    %2264 = vmatpush1.msra.mxu0 0.0
    %2265 = vmatprep.mubr.f32.mxu0 0.0
    %v2266 = vand.u32 %v160, 4294901760
    %2267 = vmatmul.mubr.f32.gmra.mrb[0].mxu0 %v2266
    %v2268 = vpop.f32.mrb[0].mxu0
    %v2269 = vadd.f32 %v2163, %v2268
    %v2270 = vpop.f32.mrb[0].mxu0
    %2271 = vmatprep.mubr.f32.mxu0 0.0
    %v2272 = vand.u32 %v163, 4294901760
    %2273 = vmatmul.mubr.f32.gmra.mrb[0].mxu0 %v2272
    %v2274 = vpop.f32.mrb[0].mxu0
    %v2275 = vadd.f32 %v2173, %v2274
    %v2276 = vpop.f32.mrb[0].mxu0
    %2277 = vmatprep.mubr.f32.mxu0 0.0
    %v2278 = vand.u32 %v166, 4294901760
    %2279 = vmatmul.mubr.f32.gmra.mrb[0].mxu0 %v2278
    %v2280 = vpop.f32.mrb[0].mxu0
    %v2281 = vadd.f32 %v2183, %v2280
    %v2282 = vpop.f32.mrb[0].mxu0
    %2283 = vmatprep.mubr.f32.mxu0 0.0
    %v2284 = vand.u32 %v169, 4294901760
    %2285 = vmatmul.mubr.f32.gmra.mrb[0].mxu0 %v2284
    %v2286 = vpop.f32.mrb[0].mxu0
    %v2287 = vadd.f32 %v2193, %v2286
    %v2288 = vpop.f32.mrb[0].mxu0
    %2289 = vdwg.mxu0
    %2290 = vmatprep.subr.mxu0 0.0
    %v2291 = vand.u32 %v2088, 4294901760
    %v2292 = vsub.f32 %v2088, %v2291
    %2293 = vmatpush1.msra.mxu0 %v2292
    %2294 = vmatprep.subr.mxu0 0.0
    %2295 = vmatpush1.msra.mxu0 0.0
    %2296 = vmatprep.subr.mxu0 0.0
    %2297 = vmatpush1.msra.mxu0 0.0
    %2298 = vmatprep.subr.mxu0 0.0
    %2299 = vmatpush1.msra.mxu0 0.0
    %2300 = vmatprep.subr.mxu0 0.0
    %2301 = vmatpush1.msra.mxu0 0.0
    %2302 = vmatprep.subr.mxu0 0.0
    %2303 = vmatpush1.msra.mxu0 0.0
    %2304 = vmatprep.subr.mxu0 0.0
    %2305 = vmatpush1.msra.mxu0 0.0
    %2306 = vmatprep.subr.mxu0 0.0
    %2307 = vmatpush1.msra.mxu0 0.0
    %2308 = vmatprep.subr.mxu0 0.0
    %2309 = vmatpush1.msra.mxu0 0.0
    %2310 = vmatprep.subr.mxu0 0.0
    %2311 = vmatpush1.msra.mxu0 0.0
    %2312 = vmatprep.subr.mxu0 0.0
    %2313 = vmatpush1.msra.mxu0 0.0
    %2314 = vmatprep.subr.mxu0 0.0
    %2315 = vmatpush1.msra.mxu0 0.0
    %2316 = vmatprep.subr.mxu0 0.0
    %2317 = vmatpush1.msra.mxu0 0.0
    %2318 = vmatprep.subr.mxu0 0.0
    %2319 = vmatpush1.msra.mxu0 0.0
    %2320 = vmatprep.subr.mxu0 0.0
    %2321 = vmatpush1.msra.mxu0 0.0
    %2322 = vmatprep.subr.mxu0 0.0
    %2323 = vmatpush1.msra.mxu0 0.0
    %2324 = vmatprep.subr.mxu0 0.0
    %2325 = vmatpush1.msra.mxu0 0.0
    %2326 = vmatprep.subr.mxu0 0.0
    %2327 = vmatpush1.msra.mxu0 0.0
    %2328 = vmatprep.subr.mxu0 0.0
    %2329 = vmatpush1.msra.mxu0 0.0
    %2330 = vmatprep.subr.mxu0 0.0
    %2331 = vmatpush1.msra.mxu0 0.0
    %2332 = vmatprep.subr.mxu0 0.0
    %2333 = vmatpush1.msra.mxu0 0.0
    %2334 = vmatprep.subr.mxu0 0.0
    %2335 = vmatpush1.msra.mxu0 0.0
    %2336 = vmatprep.subr.mxu0 0.0
    %2337 = vmatpush1.msra.mxu0 0.0
    %2338 = vmatprep.subr.mxu0 0.0
    %2339 = vmatpush1.msra.mxu0 0.0
    %2340 = vmatprep.subr.mxu0 0.0
    %2341 = vmatpush1.msra.mxu0 0.0
    %2342 = vmatprep.subr.mxu0 0.0
    %2343 = vmatpush1.msra.mxu0 0.0
    %2344 = vmatprep.subr.mxu0 0.0
    %2345 = vmatpush1.msra.mxu0 0.0
    %2346 = vmatprep.subr.mxu0 0.0
    %2347 = vmatpush1.msra.mxu0 0.0
    %2348 = vmatprep.subr.mxu0 0.0
    %2349 = vmatpush1.msra.mxu0 0.0
    %2350 = vmatprep.subr.mxu0 0.0
    %2351 = vmatpush1.msra.mxu0 0.0
    %2352 = vmatprep.subr.mxu0 0.0
    %2353 = vmatpush1.msra.mxu0 0.0
    %2354 = vmatprep.subr.mxu0 0.0
    %2355 = vmatpush1.msra.mxu0 0.0
    %2356 = vmatprep.mubr.f32.mxu0 0.0
    %v2357 = vand.u32 %v160, 4294901760
    %v2358 = vsub.f32 %v160, %v2357
    %2359 = vmatmul.mubr.f32.gmra.mrb[0].mxu0 %v2358
    %v2360 = vpop.f32.mrb[0].mxu0
    %v2361 = vadd.f32 %v2269, %v2360
    %v2362 = vpop.f32.mrb[0].mxu0
    %2363 = vmatprep.mubr.f32.mxu0 0.0
    %v2364 = vand.u32 %v163, 4294901760
    %v2365 = vsub.f32 %v163, %v2364
    %2366 = vmatmul.mubr.f32.gmra.mrb[0].mxu0 %v2365
    %v2367 = vpop.f32.mrb[0].mxu0
    %v2368 = vadd.f32 %v2275, %v2367
    %v2369 = vpop.f32.mrb[0].mxu0
    %2370 = vmatprep.mubr.f32.mxu0 0.0
    %v2371 = vand.u32 %v166, 4294901760
    %v2372 = vsub.f32 %v166, %v2371
    %2373 = vmatmul.mubr.f32.gmra.mrb[0].mxu0 %v2372
    %v2374 = vpop.f32.mrb[0].mxu0
    %v2375 = vadd.f32 %v2281, %v2374
    %v2376 = vpop.f32.mrb[0].mxu0
    %2377 = vmatprep.mubr.f32.mxu0 0.0
    %v2378 = vand.u32 %v169, 4294901760
    %v2379 = vsub.f32 %v169, %v2378
    %2380 = vmatmul.mubr.f32.gmra.mrb[0].mxu0 %v2379
    %v2381 = vpop.f32.mrb[0].mxu0
    %v2382 = vadd.f32 %v2287, %v2381
    %v2383 = vpop.f32.mrb[0].mxu0
    %2384 = vdwg.mxu0
    %2385 = vmatprep.subr.mxu0 0.0
    %v2386 = vand.u32 %v2088, 4294901760
    %2387 = vmatpush1.msra.mxu0 %v2386
    %2388 = vmatprep.subr.mxu0 0.0
    %2389 = vmatpush1.msra.mxu0 0.0
    %2390 = vmatprep.subr.mxu0 0.0
    %2391 = vmatpush1.msra.mxu0 0.0
    %2392 = vmatprep.subr.mxu0 0.0
    %2393 = vmatpush1.msra.mxu0 0.0
    %2394 = vmatprep.subr.mxu0 0.0
    %2395 = vmatpush1.msra.mxu0 0.0
    %2396 = vmatprep.subr.mxu0 0.0
    %2397 = vmatpush1.msra.mxu0 0.0
    %2398 = vmatprep.subr.mxu0 0.0
    %2399 = vmatpush1.msra.mxu0 0.0
    %2400 = vmatprep.subr.mxu0 0.0
    %2401 = vmatpush1.msra.mxu0 0.0
    %2402 = vmatprep.subr.mxu0 0.0
    %2403 = vmatpush1.msra.mxu0 0.0
    %2404 = vmatprep.subr.mxu0 0.0
    %2405 = vmatpush1.msra.mxu0 0.0
    %2406 = vmatprep.subr.mxu0 0.0
    %2407 = vmatpush1.msra.mxu0 0.0
    %2408 = vmatprep.subr.mxu0 0.0
    %2409 = vmatpush1.msra.mxu0 0.0
    %2410 = vmatprep.subr.mxu0 0.0
    %2411 = vmatpush1.msra.mxu0 0.0
    %2412 = vmatprep.subr.mxu0 0.0
    %2413 = vmatpush1.msra.mxu0 0.0
    %2414 = vmatprep.subr.mxu0 0.0
    %2415 = vmatpush1.msra.mxu0 0.0
    %2416 = vmatprep.subr.mxu0 0.0
    %2417 = vmatpush1.msra.mxu0 0.0
    %2418 = vmatprep.subr.mxu0 0.0
    %2419 = vmatpush1.msra.mxu0 0.0
    %2420 = vmatprep.subr.mxu0 0.0
    %2421 = vmatpush1.msra.mxu0 0.0
    %2422 = vmatprep.subr.mxu0 0.0
    %2423 = vmatpush1.msra.mxu0 0.0
    %2424 = vmatprep.subr.mxu0 0.0
    %2425 = vmatpush1.msra.mxu0 0.0
    %2426 = vmatprep.subr.mxu0 0.0
    %2427 = vmatpush1.msra.mxu0 0.0
    %2428 = vmatprep.subr.mxu0 0.0
    %2429 = vmatpush1.msra.mxu0 0.0
    %2430 = vmatprep.subr.mxu0 0.0
    %2431 = vmatpush1.msra.mxu0 0.0
    %2432 = vmatprep.subr.mxu0 0.0
    %2433 = vmatpush1.msra.mxu0 0.0
    %2434 = vmatprep.subr.mxu0 0.0
    %2435 = vmatpush1.msra.mxu0 0.0
    %2436 = vmatprep.subr.mxu0 0.0
    %2437 = vmatpush1.msra.mxu0 0.0
    %2438 = vmatprep.subr.mxu0 0.0
    %2439 = vmatpush1.msra.mxu0 0.0
    %2440 = vmatprep.subr.mxu0 0.0
    %2441 = vmatpush1.msra.mxu0 0.0
    %2442 = vmatprep.subr.mxu0 0.0
    %2443 = vmatpush1.msra.mxu0 0.0
    %2444 = vmatprep.subr.mxu0 0.0
    %2445 = vmatpush1.msra.mxu0 0.0
    %2446 = vmatprep.subr.mxu0 0.0
    %2447 = vmatpush1.msra.mxu0 0.0
    %2448 = vmatprep.subr.mxu0 0.0
    %2449 = vmatpush1.msra.mxu0 0.0
    %2450 = vmatprep.mubr.f32.mxu0 0.0
    %v2451 = vand.u32 %v160, 4294901760
    %v2452 = vsub.f32 %v160, %v2451
    %v2453 = vand.u32 %v2452, 4294901760
    %2454 = vmatmul.mubr.f32.gmra.mrb[0].mxu0 %v2453
    %v2455 = vpop.f32.mrb[0].mxu0
    %v2456 = vadd.f32 %v2361, %v2455
    %v2457 = vpop.f32.mrb[0].mxu0
    %2458 = vmatprep.mubr.f32.mxu0 0.0
    %v2459 = vand.u32 %v163, 4294901760
    %v2460 = vsub.f32 %v163, %v2459
    %v2461 = vand.u32 %v2460, 4294901760
    %2462 = vmatmul.mubr.f32.gmra.mrb[0].mxu0 %v2461
    %v2463 = vpop.f32.mrb[0].mxu0
    %v2464 = vadd.f32 %v2368, %v2463
    %v2465 = vpop.f32.mrb[0].mxu0
    %2466 = vmatprep.mubr.f32.mxu0 0.0
    %v2467 = vand.u32 %v166, 4294901760
    %v2468 = vsub.f32 %v166, %v2467
    %v2469 = vand.u32 %v2468, 4294901760
    %2470 = vmatmul.mubr.f32.gmra.mrb[0].mxu0 %v2469
    %v2471 = vpop.f32.mrb[0].mxu0
    %v2472 = vadd.f32 %v2375, %v2471
    %v2473 = vpop.f32.mrb[0].mxu0
    %2474 = vmatprep.mubr.f32.mxu0 0.0
    %v2475 = vand.u32 %v169, 4294901760
    %v2476 = vsub.f32 %v169, %v2475
    %v2477 = vand.u32 %v2476, 4294901760
    %2478 = vmatmul.mubr.f32.gmra.mrb[0].mxu0 %v2477
    %v2479 = vpop.f32.mrb[0].mxu0
    %v2480 = vadd.f32 %v2382, %v2479
    %v2481 = vpop.f32.mrb[0].mxu0
    %2482 = vdwg.mxu0
    %2483 = vmatprep.subr.mxu0 0.0
    %v2484 = vand.u32 %v2088, 4294901760
    %v2485 = vsub.f32 %v2088, %v2484
    %v2486 = vand.u32 %v2485, 4294901760
    %2487 = vmatpush1.msra.mxu0 %v2486
    %2488 = vmatprep.subr.mxu0 0.0
    %2489 = vmatpush1.msra.mxu0 0.0
    %2490 = vmatprep.subr.mxu0 0.0
    %2491 = vmatpush1.msra.mxu0 0.0
    %2492 = vmatprep.subr.mxu0 0.0
    %2493 = vmatpush1.msra.mxu0 0.0
    %2494 = vmatprep.subr.mxu0 0.0
    %2495 = vmatpush1.msra.mxu0 0.0
    %2496 = vmatprep.subr.mxu0 0.0
    %2497 = vmatpush1.msra.mxu0 0.0
    %2498 = vmatprep.subr.mxu0 0.0
    %2499 = vmatpush1.msra.mxu0 0.0
    %2500 = vmatprep.subr.mxu0 0.0
    %2501 = vmatpush1.msra.mxu0 0.0
    %2502 = vmatprep.subr.mxu0 0.0
    %2503 = vmatpush1.msra.mxu0 0.0
    %2504 = vmatprep.subr.mxu0 0.0
    %2505 = vmatpush1.msra.mxu0 0.0
    %2506 = vmatprep.subr.mxu0 0.0
    %2507 = vmatpush1.msra.mxu0 0.0
    %2508 = vmatprep.subr.mxu0 0.0
    %2509 = vmatpush1.msra.mxu0 0.0
    %2510 = vmatprep.subr.mxu0 0.0
    %2511 = vmatpush1.msra.mxu0 0.0
    %2512 = vmatprep.subr.mxu0 0.0
    %2513 = vmatpush1.msra.mxu0 0.0
    %2514 = vmatprep.subr.mxu0 0.0
    %2515 = vmatpush1.msra.mxu0 0.0
    %2516 = vmatprep.subr.mxu0 0.0
    %2517 = vmatpush1.msra.mxu0 0.0
    %2518 = vmatprep.subr.mxu0 0.0
    %2519 = vmatpush1.msra.mxu0 0.0
    %2520 = vmatprep.subr.mxu0 0.0
    %2521 = vmatpush1.msra.mxu0 0.0
    %2522 = vmatprep.subr.mxu0 0.0
    %2523 = vmatpush1.msra.mxu0 0.0
    %2524 = vmatprep.subr.mxu0 0.0
    %2525 = vmatpush1.msra.mxu0 0.0
    %2526 = vmatprep.subr.mxu0 0.0
    %2527 = vmatpush1.msra.mxu0 0.0
    %2528 = vmatprep.subr.mxu0 0.0
    %2529 = vmatpush1.msra.mxu0 0.0
    %2530 = vmatprep.subr.mxu0 0.0
    %2531 = vmatpush1.msra.mxu0 0.0
    %2532 = vmatprep.subr.mxu0 0.0
    %2533 = vmatpush1.msra.mxu0 0.0
    %2534 = vmatprep.subr.mxu0 0.0
    %2535 = vmatpush1.msra.mxu0 0.0
    %2536 = vmatprep.subr.mxu0 0.0
    %2537 = vmatpush1.msra.mxu0 0.0
    %2538 = vmatprep.subr.mxu0 0.0
    %2539 = vmatpush1.msra.mxu0 0.0
    %2540 = vmatprep.subr.mxu0 0.0
    %2541 = vmatpush1.msra.mxu0 0.0
    %2542 = vmatprep.subr.mxu0 0.0
    %2543 = vmatpush1.msra.mxu0 0.0
    %2544 = vmatprep.subr.mxu0 0.0
    %2545 = vmatpush1.msra.mxu0 0.0
    %2546 = vmatprep.subr.mxu0 0.0
    %2547 = vmatpush1.msra.mxu0 0.0
    %2548 = vmatprep.subr.mxu0 0.0
    %2549 = vmatpush1.msra.mxu0 0.0
    %2550 = vmatprep.mubr.f32.mxu0 0.0
    %v2551 = vand.u32 %v160, 4294901760
    %2552 = vmatmul.mubr.f32.gmra.mrb[0].mxu0 %v2551
    %v2553 = vpop.f32.mrb[0].mxu0
    %v2554 = vadd.f32 %v2456, %v2553
    %v2555 = vpop.f32.mrb[0].mxu0
    %2556 = vmatprep.mubr.f32.mxu0 0.0
    %v2557 = vand.u32 %v163, 4294901760
    %2558 = vmatmul.mubr.f32.gmra.mrb[0].mxu0 %v2557
    %v2559 = vpop.f32.mrb[0].mxu0
    %v2560 = vadd.f32 %v2464, %v2559
    %v2561 = vpop.f32.mrb[0].mxu0
    %2562 = vmatprep.mubr.f32.mxu0 0.0
    %v2563 = vand.u32 %v166, 4294901760
    %2564 = vmatmul.mubr.f32.gmra.mrb[0].mxu0 %v2563
    %v2565 = vpop.f32.mrb[0].mxu0
    %v2566 = vadd.f32 %v2472, %v2565
    %v2567 = vpop.f32.mrb[0].mxu0
    %2568 = vmatprep.mubr.f32.mxu0 0.0
    %v2569 = vand.u32 %v169, 4294901760
    %2570 = vmatmul.mubr.f32.gmra.mrb[0].mxu0 %v2569
    %v2571 = vpop.f32.mrb[0].mxu0
    %v2572 = vadd.f32 %v2480, %v2571
    %v2573 = vpop.f32.mrb[0].mxu0
    %2574 = vdwg.mxu0
    %2575 = vmatprep.subr.mxu0 0.0
    %v2576 = vand.u32 %v2088, 4294901760
    %2577 = vmatpush1.msra.mxu0 %v2576
    %2578 = vmatprep.subr.mxu0 0.0
    %2579 = vmatpush1.msra.mxu0 0.0
    %2580 = vmatprep.subr.mxu0 0.0
    %2581 = vmatpush1.msra.mxu0 0.0
    %2582 = vmatprep.subr.mxu0 0.0
    %2583 = vmatpush1.msra.mxu0 0.0
    %2584 = vmatprep.subr.mxu0 0.0
    %2585 = vmatpush1.msra.mxu0 0.0
    %2586 = vmatprep.subr.mxu0 0.0
    %2587 = vmatpush1.msra.mxu0 0.0
    %2588 = vmatprep.subr.mxu0 0.0
    %2589 = vmatpush1.msra.mxu0 0.0
    %2590 = vmatprep.subr.mxu0 0.0
    %2591 = vmatpush1.msra.mxu0 0.0
    %2592 = vmatprep.subr.mxu0 0.0
    %2593 = vmatpush1.msra.mxu0 0.0
    %2594 = vmatprep.subr.mxu0 0.0
    %2595 = vmatpush1.msra.mxu0 0.0
    %2596 = vmatprep.subr.mxu0 0.0
    %2597 = vmatpush1.msra.mxu0 0.0
    %2598 = vmatprep.subr.mxu0 0.0
    %2599 = vmatpush1.msra.mxu0 0.0
    %2600 = vmatprep.subr.mxu0 0.0
    %2601 = vmatpush1.msra.mxu0 0.0
    %2602 = vmatprep.subr.mxu0 0.0
    %2603 = vmatpush1.msra.mxu0 0.0
    %2604 = vmatprep.subr.mxu0 0.0
    %2605 = vmatpush1.msra.mxu0 0.0
    %2606 = vmatprep.subr.mxu0 0.0
    %2607 = vmatpush1.msra.mxu0 0.0
    %2608 = vmatprep.subr.mxu0 0.0
    %2609 = vmatpush1.msra.mxu0 0.0
    %2610 = vmatprep.subr.mxu0 0.0
    %2611 = vmatpush1.msra.mxu0 0.0
    %2612 = vmatprep.subr.mxu0 0.0
    %2613 = vmatpush1.msra.mxu0 0.0
    %2614 = vmatprep.subr.mxu0 0.0
    %2615 = vmatpush1.msra.mxu0 0.0
    %2616 = vmatprep.subr.mxu0 0.0
    %2617 = vmatpush1.msra.mxu0 0.0
    %2618 = vmatprep.subr.mxu0 0.0
    %2619 = vmatpush1.msra.mxu0 0.0
    %2620 = vmatprep.subr.mxu0 0.0
    %2621 = vmatpush1.msra.mxu0 0.0
    %2622 = vmatprep.subr.mxu0 0.0
    %2623 = vmatpush1.msra.mxu0 0.0
    %2624 = vmatprep.subr.mxu0 0.0
    %2625 = vmatpush1.msra.mxu0 0.0
    %2626 = vmatprep.subr.mxu0 0.0
    %2627 = vmatpush1.msra.mxu0 0.0
    %2628 = vmatprep.subr.mxu0 0.0
    %2629 = vmatpush1.msra.mxu0 0.0
    %2630 = vmatprep.subr.mxu0 0.0
    %2631 = vmatpush1.msra.mxu0 0.0
    %2632 = vmatprep.subr.mxu0 0.0
    %2633 = vmatpush1.msra.mxu0 0.0
    %2634 = vmatprep.subr.mxu0 0.0
    %2635 = vmatpush1.msra.mxu0 0.0
    %2636 = vmatprep.subr.mxu0 0.0
    %2637 = vmatpush1.msra.mxu0 0.0
    %2638 = vmatprep.subr.mxu0 0.0
    %2639 = vmatpush1.msra.mxu0 0.0
    %2640 = vmatprep.mubr.f32.mxu0 0.0
    %v2641 = vand.u32 %v160, 4294901760
    %2642 = vmatmul.mubr.f32.gmra.mrb[0].mxu0 %v2641
    %v2643 = vpop.f32.mrb[0].mxu0
    %v2644 = vadd.f32 %v2554, %v2643
    %v2645 = vpop.f32.mrb[0].mxu0
    %2646 = vmatprep.mubr.f32.mxu0 0.0
    %v2647 = vand.u32 %v163, 4294901760
    %2648 = vmatmul.mubr.f32.gmra.mrb[0].mxu0 %v2647
    %v2649 = vpop.f32.mrb[0].mxu0
    %v2650 = vadd.f32 %v2560, %v2649
    %v2651 = vpop.f32.mrb[0].mxu0
    %2652 = vmatprep.mubr.f32.mxu0 0.0
    %v2653 = vand.u32 %v166, 4294901760
    %2654 = vmatmul.mubr.f32.gmra.mrb[0].mxu0 %v2653
    %v2655 = vpop.f32.mrb[0].mxu0
    %v2656 = vadd.f32 %v2566, %v2655
    %v2657 = vpop.f32.mrb[0].mxu0
    %2658 = vmatprep.mubr.f32.mxu0 0.0
    %v2659 = vand.u32 %v169, 4294901760
    %2660 = vmatmul.mubr.f32.gmra.mrb[0].mxu0 %v2659
    %v2661 = vpop.f32.mrb[0].mxu0
    %v2662 = vadd.f32 %v2572, %v2661
    %v2663 = vpop.f32.mrb[0].mxu0
    %2664 = vdwg.mxu0
    %v2665 = vadd.f32 %v2644, %v2650
    %v2666 = vadd.f32 %v2665, %v2656
    %v2667 = vadd.f32 %v2666, %v2662
    %v2668 = vrot.slane %v2667, 4
    %v2669 = vadd.f32 %v2667, %v2668
    %v2670 = vrot.slane %v2669, 2
    %v2671 = vadd.f32 %v2669, %v2670
    %v2672 = vrot.slane %v2671, 1
    %v2673 = vadd.f32 %v2671, %v2672
    %v2674 = vmul.f32 %v2673, %v759
    %v2675 = vmul.f32 %v2644, %v2644
    %v2676 = vmul.f32 %v2650, %v2650
    %v2677 = vmul.f32 %v2656, %v2656
    %v2678 = vmul.f32 %v2662, %v2662
    %v2679 = vadd.f32 %v2675, %v2676
    %v2680 = vadd.f32 %v2679, %v2677
    %v2681 = vadd.f32 %v2680, %v2678
    %v2682 = vrot.slane %v2681, 4
    %v2683 = vadd.f32 %v2681, %v2682
    %v2684 = vrot.slane %v2683, 2
    %v2685 = vadd.f32 %v2683, %v2684
    %v2686 = vrot.slane %v2685, 1
    %v2687 = vadd.f32 %v2685, %v2686
    %v2688 = vmul.f32 %v2687, %v759
    %v2689 = vmul.f32 %v2674, %v2674
    %v2690 = vsub.f32 %v2688, %v2689
    %v2691 = vsub.f32 %v2644, %v2674
    %v2692 = vsub.f32 %v2650, %v2674
    %v2693 = vsub.f32 %v2656, %v2674
    %v2694 = vsub.f32 %v2662, %v2674
    %v2695 = vadd.f32 %v2690, 1e-05
    %v2696 = vrsqrt.pop %v2695
    %v2697 = vmul.f32 %v2691, %v2696
    %v2698 = vmul.f32 %v2692, %v2696
    %v2699 = vmul.f32 %v2693, %v2696
    %v2700 = vmul.f32 %v2694, %v2696
    %v2701 = vmul.f32 %v2697, %v789
    %v2702 = vmul.f32 %v2698, %v793
    %v2703 = vmul.f32 %v2699, %v797
    %v2704 = vmul.f32 %v2700, %v801
    %v2705 = vadd.f32 %v2701, %v809
    %v2706 = vadd.f32 %v2702, %v813
    %v2707 = vadd.f32 %v2703, %v817
    %v2708 = vadd.f32 %v2704, %v821
    %v2709 = vmax.f32 %v2705, 0.0
    %v2710 = vmax.f32 %v2706, 0.0
    %v2711 = vmax.f32 %v2707, 0.0
    %v2712 = vmax.f32 %v2708, 0.0
    %2713 = vmatprep.subr.mxu0 0.0
    %v2714 = vand.u32 %v2709, 4294901760
    %2715 = vmatpush1.msra.mxu0 %v2714
    %2716 = vmatprep.subr.mxu0 0.0
    %v2717 = vand.u32 %v2710, 4294901760
    %2718 = vmatpush1.msra.mxu0 %v2717
    %2719 = vmatprep.subr.mxu0 0.0
    %v2720 = vand.u32 %v2711, 4294901760
    %2721 = vmatpush1.msra.mxu0 %v2720
    %2722 = vmatprep.subr.mxu0 0.0
    %v2723 = vand.u32 %v2712, 4294901760
    %2724 = vmatpush1.msra.mxu0 %v2723
    %2725 = vmatprep.subr.mxu0 0.0
    %2726 = vmatpush1.msra.mxu0 0.0
    %2727 = vmatprep.subr.mxu0 0.0
    %2728 = vmatpush1.msra.mxu0 0.0
    %2729 = vmatprep.subr.mxu0 0.0
    %2730 = vmatpush1.msra.mxu0 0.0
    %2731 = vmatprep.subr.mxu0 0.0
    %2732 = vmatpush1.msra.mxu0 0.0
    %2733 = vmatprep.subr.mxu0 0.0
    %2734 = vmatpush1.msra.mxu0 0.0
    %2735 = vmatprep.subr.mxu0 0.0
    %2736 = vmatpush1.msra.mxu0 0.0
    %2737 = vmatprep.subr.mxu0 0.0
    %2738 = vmatpush1.msra.mxu0 0.0
    %2739 = vmatprep.subr.mxu0 0.0
    %2740 = vmatpush1.msra.mxu0 0.0
    %2741 = vmatprep.subr.mxu0 0.0
    %2742 = vmatpush1.msra.mxu0 0.0
    %2743 = vmatprep.subr.mxu0 0.0
    %2744 = vmatpush1.msra.mxu0 0.0
    %2745 = vmatprep.subr.mxu0 0.0
    %2746 = vmatpush1.msra.mxu0 0.0
    %2747 = vmatprep.subr.mxu0 0.0
    %2748 = vmatpush1.msra.mxu0 0.0
    %2749 = vmatprep.subr.mxu0 0.0
    %2750 = vmatpush1.msra.mxu0 0.0
    %2751 = vmatprep.subr.mxu0 0.0
    %2752 = vmatpush1.msra.mxu0 0.0
    %2753 = vmatprep.subr.mxu0 0.0
    %2754 = vmatpush1.msra.mxu0 0.0
    %2755 = vmatprep.subr.mxu0 0.0
    %2756 = vmatpush1.msra.mxu0 0.0
    %2757 = vmatprep.subr.mxu0 0.0
    %2758 = vmatpush1.msra.mxu0 0.0
    %2759 = vmatprep.subr.mxu0 0.0
    %2760 = vmatpush1.msra.mxu0 0.0
    %2761 = vmatprep.subr.mxu0 0.0
    %2762 = vmatpush1.msra.mxu0 0.0
    %2763 = vmatprep.subr.mxu0 0.0
    %2764 = vmatpush1.msra.mxu0 0.0
    %2765 = vmatprep.subr.mxu0 0.0
    %2766 = vmatpush1.msra.mxu0 0.0
    %2767 = vmatprep.subr.mxu0 0.0
    %2768 = vmatpush1.msra.mxu0 0.0
    %2769 = vmatprep.subr.mxu0 0.0
    %2770 = vmatpush1.msra.mxu0 0.0
    %2771 = vmatprep.subr.mxu0 0.0
    %2772 = vmatpush1.msra.mxu0 0.0
    %2773 = vmatprep.subr.mxu0 0.0
    %2774 = vmatpush1.msra.mxu0 0.0
    %2775 = vmatprep.subr.mxu0 0.0
    %2776 = vmatpush1.msra.mxu0 0.0
    %2777 = vmatprep.subr.mxu0 0.0
    %2778 = vmatpush1.msra.mxu0 0.0
    %2779 = vmatprep.subr.mxu0 0.0
    %2780 = vmatpush1.msra.mxu0 0.0
    %2781 = vmatprep.mubr.f32.mxu0 0.0
    %v2782 = vand.u32 %v853, 4294901760
    %v2783 = vsub.f32 %v853, %v2782
    %v2784 = vand.u32 %v2783, 4294901760
    %v2785 = vsub.f32 %v2783, %v2784
    %v2786 = vand.u32 %v2785, 4294901760
    %2787 = vmatmul.mubr.f32.gmra.mrb[0].mxu0 %v2786
    %v2788 = vpop.f32.mrb[0].mxu0
    %v2789 = vadd.f32 %v837, %v2788
    %v2790 = vpop.f32.mrb[0].mxu0
    %2791 = vmatprep.mubr.f32.mxu0 0.0
    %v2792 = vand.u32 %v856, 4294901760
    %v2793 = vsub.f32 %v856, %v2792
    %v2794 = vand.u32 %v2793, 4294901760
    %v2795 = vsub.f32 %v2793, %v2794
    %v2796 = vand.u32 %v2795, 4294901760
    %2797 = vmatmul.mubr.f32.gmra.mrb[0].mxu0 %v2796
    %v2798 = vpop.f32.mrb[0].mxu0
    %v2799 = vadd.f32 %v841, %v2798
    %v2800 = vpop.f32.mrb[0].mxu0
    %2801 = vmatprep.mubr.f32.mxu0 0.0
    %v2802 = vand.u32 %v859, 4294901760
    %v2803 = vsub.f32 %v859, %v2802
    %v2804 = vand.u32 %v2803, 4294901760
    %v2805 = vsub.f32 %v2803, %v2804
    %v2806 = vand.u32 %v2805, 4294901760
    %2807 = vmatmul.mubr.f32.gmra.mrb[0].mxu0 %v2806
    %v2808 = vpop.f32.mrb[0].mxu0
    %v2809 = vadd.f32 %v845, %v2808
    %v2810 = vpop.f32.mrb[0].mxu0
    %2811 = vmatprep.mubr.f32.mxu0 0.0
    %v2812 = vand.u32 %v862, 4294901760
    %v2813 = vsub.f32 %v862, %v2812
    %v2814 = vand.u32 %v2813, 4294901760
    %v2815 = vsub.f32 %v2813, %v2814
    %v2816 = vand.u32 %v2815, 4294901760
    %2817 = vmatmul.mubr.f32.gmra.mrb[0].mxu0 %v2816
    %v2818 = vpop.f32.mrb[0].mxu0
    %v2819 = vadd.f32 %v849, %v2818
    %v2820 = vpop.f32.mrb[0].mxu0
    %2821 = vdwg.mxu0
    %2822 = vmatprep.subr.mxu0 0.0
    %v2823 = vand.u32 %v2709, 4294901760
    %v2824 = vsub.f32 %v2709, %v2823
    %v2825 = vand.u32 %v2824, 4294901760
    %v2826 = vsub.f32 %v2824, %v2825
    %v2827 = vand.u32 %v2826, 4294901760
    %2828 = vmatpush1.msra.mxu0 %v2827
    %2829 = vmatprep.subr.mxu0 0.0
    %v2830 = vand.u32 %v2710, 4294901760
    %v2831 = vsub.f32 %v2710, %v2830
    %v2832 = vand.u32 %v2831, 4294901760
    %v2833 = vsub.f32 %v2831, %v2832
    %v2834 = vand.u32 %v2833, 4294901760
    %2835 = vmatpush1.msra.mxu0 %v2834
    %2836 = vmatprep.subr.mxu0 0.0
    %v2837 = vand.u32 %v2711, 4294901760
    %v2838 = vsub.f32 %v2711, %v2837
    %v2839 = vand.u32 %v2838, 4294901760
    %v2840 = vsub.f32 %v2838, %v2839
    %v2841 = vand.u32 %v2840, 4294901760
    %2842 = vmatpush1.msra.mxu0 %v2841
    %2843 = vmatprep.subr.mxu0 0.0
    %v2844 = vand.u32 %v2712, 4294901760
    %v2845 = vsub.f32 %v2712, %v2844
    %v2846 = vand.u32 %v2845, 4294901760
    %v2847 = vsub.f32 %v2845, %v2846
    %v2848 = vand.u32 %v2847, 4294901760
    %2849 = vmatpush1.msra.mxu0 %v2848
    %2850 = vmatprep.subr.mxu0 0.0
    %2851 = vmatpush1.msra.mxu0 0.0
    %2852 = vmatprep.subr.mxu0 0.0
    %2853 = vmatpush1.msra.mxu0 0.0
    %2854 = vmatprep.subr.mxu0 0.0
    %2855 = vmatpush1.msra.mxu0 0.0
    %2856 = vmatprep.subr.mxu0 0.0
    %2857 = vmatpush1.msra.mxu0 0.0
    %2858 = vmatprep.subr.mxu0 0.0
    %2859 = vmatpush1.msra.mxu0 0.0
    %2860 = vmatprep.subr.mxu0 0.0
    %2861 = vmatpush1.msra.mxu0 0.0
    %2862 = vmatprep.subr.mxu0 0.0
    %2863 = vmatpush1.msra.mxu0 0.0
    %2864 = vmatprep.subr.mxu0 0.0
    %2865 = vmatpush1.msra.mxu0 0.0
    %2866 = vmatprep.subr.mxu0 0.0
    %2867 = vmatpush1.msra.mxu0 0.0
    %2868 = vmatprep.subr.mxu0 0.0
    %2869 = vmatpush1.msra.mxu0 0.0
    %2870 = vmatprep.subr.mxu0 0.0
    %2871 = vmatpush1.msra.mxu0 0.0
    %2872 = vmatprep.subr.mxu0 0.0
    %2873 = vmatpush1.msra.mxu0 0.0
    %2874 = vmatprep.subr.mxu0 0.0
    %2875 = vmatpush1.msra.mxu0 0.0
    %2876 = vmatprep.subr.mxu0 0.0
    %2877 = vmatpush1.msra.mxu0 0.0
    %2878 = vmatprep.subr.mxu0 0.0
    %2879 = vmatpush1.msra.mxu0 0.0
    %2880 = vmatprep.subr.mxu0 0.0
    %2881 = vmatpush1.msra.mxu0 0.0
    %2882 = vmatprep.subr.mxu0 0.0
    %2883 = vmatpush1.msra.mxu0 0.0
    %2884 = vmatprep.subr.mxu0 0.0
    %2885 = vmatpush1.msra.mxu0 0.0
    %2886 = vmatprep.subr.mxu0 0.0
    %2887 = vmatpush1.msra.mxu0 0.0
    %2888 = vmatprep.subr.mxu0 0.0
    %2889 = vmatpush1.msra.mxu0 0.0
    %2890 = vmatprep.subr.mxu0 0.0
    %2891 = vmatpush1.msra.mxu0 0.0
    %2892 = vmatprep.subr.mxu0 0.0
    %2893 = vmatpush1.msra.mxu0 0.0
    %2894 = vmatprep.subr.mxu0 0.0
    %2895 = vmatpush1.msra.mxu0 0.0
    %2896 = vmatprep.subr.mxu0 0.0
    %2897 = vmatpush1.msra.mxu0 0.0
    %2898 = vmatprep.subr.mxu0 0.0
    %2899 = vmatpush1.msra.mxu0 0.0
    %2900 = vmatprep.subr.mxu0 0.0
    %2901 = vmatpush1.msra.mxu0 0.0
    %2902 = vmatprep.subr.mxu0 0.0
    %2903 = vmatpush1.msra.mxu0 0.0
    %2904 = vmatprep.subr.mxu0 0.0
    %2905 = vmatpush1.msra.mxu0 0.0
    %2906 = vmatprep.mubr.f32.mxu0 0.0
    %v2907 = vand.u32 %v853, 4294901760
    %2908 = vmatmul.mubr.f32.gmra.mrb[0].mxu0 %v2907
    %v2909 = vpop.f32.mrb[0].mxu0
    %v2910 = vadd.f32 %v2789, %v2909
    %v2911 = vpop.f32.mrb[0].mxu0
    %2912 = vmatprep.mubr.f32.mxu0 0.0
    %v2913 = vand.u32 %v856, 4294901760
    %2914 = vmatmul.mubr.f32.gmra.mrb[0].mxu0 %v2913
    %v2915 = vpop.f32.mrb[0].mxu0
    %v2916 = vadd.f32 %v2799, %v2915
    %v2917 = vpop.f32.mrb[0].mxu0
    %2918 = vmatprep.mubr.f32.mxu0 0.0
    %v2919 = vand.u32 %v859, 4294901760
    %2920 = vmatmul.mubr.f32.gmra.mrb[0].mxu0 %v2919
    %v2921 = vpop.f32.mrb[0].mxu0
    %v2922 = vadd.f32 %v2809, %v2921
    %v2923 = vpop.f32.mrb[0].mxu0
    %2924 = vmatprep.mubr.f32.mxu0 0.0
    %v2925 = vand.u32 %v862, 4294901760
    %2926 = vmatmul.mubr.f32.gmra.mrb[0].mxu0 %v2925
    %v2927 = vpop.f32.mrb[0].mxu0
    %v2928 = vadd.f32 %v2819, %v2927
    %v2929 = vpop.f32.mrb[0].mxu0
    %2930 = vdwg.mxu0
    %2931 = vmatprep.subr.mxu0 0.0
    %v2932 = vand.u32 %v2709, 4294901760
    %v2933 = vsub.f32 %v2709, %v2932
    %2934 = vmatpush1.msra.mxu0 %v2933
    %2935 = vmatprep.subr.mxu0 0.0
    %v2936 = vand.u32 %v2710, 4294901760
    %v2937 = vsub.f32 %v2710, %v2936
    %2938 = vmatpush1.msra.mxu0 %v2937
    %2939 = vmatprep.subr.mxu0 0.0
    %v2940 = vand.u32 %v2711, 4294901760
    %v2941 = vsub.f32 %v2711, %v2940
    %2942 = vmatpush1.msra.mxu0 %v2941
    %2943 = vmatprep.subr.mxu0 0.0
    %v2944 = vand.u32 %v2712, 4294901760
    %v2945 = vsub.f32 %v2712, %v2944
    %2946 = vmatpush1.msra.mxu0 %v2945
    %2947 = vmatprep.subr.mxu0 0.0
    %2948 = vmatpush1.msra.mxu0 0.0
    %2949 = vmatprep.subr.mxu0 0.0
    %2950 = vmatpush1.msra.mxu0 0.0
    %2951 = vmatprep.subr.mxu0 0.0
    %2952 = vmatpush1.msra.mxu0 0.0
    %2953 = vmatprep.subr.mxu0 0.0
    %2954 = vmatpush1.msra.mxu0 0.0
    %2955 = vmatprep.subr.mxu0 0.0
    %2956 = vmatpush1.msra.mxu0 0.0
    %2957 = vmatprep.subr.mxu0 0.0
    %2958 = vmatpush1.msra.mxu0 0.0
    %2959 = vmatprep.subr.mxu0 0.0
    %2960 = vmatpush1.msra.mxu0 0.0
    %2961 = vmatprep.subr.mxu0 0.0
    %2962 = vmatpush1.msra.mxu0 0.0
    %2963 = vmatprep.subr.mxu0 0.0
    %2964 = vmatpush1.msra.mxu0 0.0
    %2965 = vmatprep.subr.mxu0 0.0
    %2966 = vmatpush1.msra.mxu0 0.0
    %2967 = vmatprep.subr.mxu0 0.0
    %2968 = vmatpush1.msra.mxu0 0.0
    %2969 = vmatprep.subr.mxu0 0.0
    %2970 = vmatpush1.msra.mxu0 0.0
    %2971 = vmatprep.subr.mxu0 0.0
    %2972 = vmatpush1.msra.mxu0 0.0
    %2973 = vmatprep.subr.mxu0 0.0
    %2974 = vmatpush1.msra.mxu0 0.0
    %2975 = vmatprep.subr.mxu0 0.0
    %2976 = vmatpush1.msra.mxu0 0.0
    %2977 = vmatprep.subr.mxu0 0.0
    %2978 = vmatpush1.msra.mxu0 0.0
    %2979 = vmatprep.subr.mxu0 0.0
    %2980 = vmatpush1.msra.mxu0 0.0
    %2981 = vmatprep.subr.mxu0 0.0
    %2982 = vmatpush1.msra.mxu0 0.0
    %2983 = vmatprep.subr.mxu0 0.0
    %2984 = vmatpush1.msra.mxu0 0.0
    %2985 = vmatprep.subr.mxu0 0.0
    %2986 = vmatpush1.msra.mxu0 0.0
    %2987 = vmatprep.subr.mxu0 0.0
    %2988 = vmatpush1.msra.mxu0 0.0
    %2989 = vmatprep.subr.mxu0 0.0
    %2990 = vmatpush1.msra.mxu0 0.0
    %2991 = vmatprep.subr.mxu0 0.0
    %2992 = vmatpush1.msra.mxu0 0.0
    %2993 = vmatprep.subr.mxu0 0.0
    %2994 = vmatpush1.msra.mxu0 0.0
    %2995 = vmatprep.subr.mxu0 0.0
    %2996 = vmatpush1.msra.mxu0 0.0
    %2997 = vmatprep.subr.mxu0 0.0
    %2998 = vmatpush1.msra.mxu0 0.0
    %2999 = vmatprep.subr.mxu0 0.0
    %3000 = vmatpush1.msra.mxu0 0.0
    %3001 = vmatprep.subr.mxu0 0.0
    %3002 = vmatpush1.msra.mxu0 0.0
    %3003 = vmatprep.mubr.f32.mxu0 0.0
    %v3004 = vand.u32 %v853, 4294901760
    %v3005 = vsub.f32 %v853, %v3004
    %3006 = vmatmul.mubr.f32.gmra.mrb[0].mxu0 %v3005
    %v3007 = vpop.f32.mrb[0].mxu0
    %v3008 = vadd.f32 %v2910, %v3007
    %v3009 = vpop.f32.mrb[0].mxu0
    %3010 = vmatprep.mubr.f32.mxu0 0.0
    %v3011 = vand.u32 %v856, 4294901760
    %v3012 = vsub.f32 %v856, %v3011
    %3013 = vmatmul.mubr.f32.gmra.mrb[0].mxu0 %v3012
    %v3014 = vpop.f32.mrb[0].mxu0
    %v3015 = vadd.f32 %v2916, %v3014
    %v3016 = vpop.f32.mrb[0].mxu0
    %3017 = vmatprep.mubr.f32.mxu0 0.0
    %v3018 = vand.u32 %v859, 4294901760
    %v3019 = vsub.f32 %v859, %v3018
    %3020 = vmatmul.mubr.f32.gmra.mrb[0].mxu0 %v3019
    %v3021 = vpop.f32.mrb[0].mxu0
    %v3022 = vadd.f32 %v2922, %v3021
    %v3023 = vpop.f32.mrb[0].mxu0
    %3024 = vmatprep.mubr.f32.mxu0 0.0
    %v3025 = vand.u32 %v862, 4294901760
    %v3026 = vsub.f32 %v862, %v3025
    %3027 = vmatmul.mubr.f32.gmra.mrb[0].mxu0 %v3026
    %v3028 = vpop.f32.mrb[0].mxu0
    %v3029 = vadd.f32 %v2928, %v3028
    %v3030 = vpop.f32.mrb[0].mxu0
    %3031 = vdwg.mxu0
    %3032 = vmatprep.subr.mxu0 0.0
    %v3033 = vand.u32 %v2709, 4294901760
    %3034 = vmatpush1.msra.mxu0 %v3033
    %3035 = vmatprep.subr.mxu0 0.0
    %v3036 = vand.u32 %v2710, 4294901760
    %3037 = vmatpush1.msra.mxu0 %v3036
    %3038 = vmatprep.subr.mxu0 0.0
    %v3039 = vand.u32 %v2711, 4294901760
    %3040 = vmatpush1.msra.mxu0 %v3039
    %3041 = vmatprep.subr.mxu0 0.0
    %v3042 = vand.u32 %v2712, 4294901760
    %3043 = vmatpush1.msra.mxu0 %v3042
    %3044 = vmatprep.subr.mxu0 0.0
    %3045 = vmatpush1.msra.mxu0 0.0
    %3046 = vmatprep.subr.mxu0 0.0
    %3047 = vmatpush1.msra.mxu0 0.0
    %3048 = vmatprep.subr.mxu0 0.0
    %3049 = vmatpush1.msra.mxu0 0.0
    %3050 = vmatprep.subr.mxu0 0.0
    %3051 = vmatpush1.msra.mxu0 0.0
    %3052 = vmatprep.subr.mxu0 0.0
    %3053 = vmatpush1.msra.mxu0 0.0
    %3054 = vmatprep.subr.mxu0 0.0
    %3055 = vmatpush1.msra.mxu0 0.0
    %3056 = vmatprep.subr.mxu0 0.0
    %3057 = vmatpush1.msra.mxu0 0.0
    %3058 = vmatprep.subr.mxu0 0.0
    %3059 = vmatpush1.msra.mxu0 0.0
    %3060 = vmatprep.subr.mxu0 0.0
    %3061 = vmatpush1.msra.mxu0 0.0
    %3062 = vmatprep.subr.mxu0 0.0
    %3063 = vmatpush1.msra.mxu0 0.0
    %3064 = vmatprep.subr.mxu0 0.0
    %3065 = vmatpush1.msra.mxu0 0.0
    %3066 = vmatprep.subr.mxu0 0.0
    %3067 = vmatpush1.msra.mxu0 0.0
    %3068 = vmatprep.subr.mxu0 0.0
    %3069 = vmatpush1.msra.mxu0 0.0
    %3070 = vmatprep.subr.mxu0 0.0
    %3071 = vmatpush1.msra.mxu0 0.0
    %3072 = vmatprep.subr.mxu0 0.0
    %3073 = vmatpush1.msra.mxu0 0.0
    %3074 = vmatprep.subr.mxu0 0.0
    %3075 = vmatpush1.msra.mxu0 0.0
    %3076 = vmatprep.subr.mxu0 0.0
    %3077 = vmatpush1.msra.mxu0 0.0
    %3078 = vmatprep.subr.mxu0 0.0
    %3079 = vmatpush1.msra.mxu0 0.0
    %3080 = vmatprep.subr.mxu0 0.0
    %3081 = vmatpush1.msra.mxu0 0.0
    %3082 = vmatprep.subr.mxu0 0.0
    %3083 = vmatpush1.msra.mxu0 0.0
    %3084 = vmatprep.subr.mxu0 0.0
    %3085 = vmatpush1.msra.mxu0 0.0
    %3086 = vmatprep.subr.mxu0 0.0
    %3087 = vmatpush1.msra.mxu0 0.0
    %3088 = vmatprep.subr.mxu0 0.0
    %3089 = vmatpush1.msra.mxu0 0.0
    %3090 = vmatprep.subr.mxu0 0.0
    %3091 = vmatpush1.msra.mxu0 0.0
    %3092 = vmatprep.subr.mxu0 0.0
    %3093 = vmatpush1.msra.mxu0 0.0
    %3094 = vmatprep.subr.mxu0 0.0
    %3095 = vmatpush1.msra.mxu0 0.0
    %3096 = vmatprep.subr.mxu0 0.0
    %3097 = vmatpush1.msra.mxu0 0.0
    %3098 = vmatprep.subr.mxu0 0.0
    %3099 = vmatpush1.msra.mxu0 0.0
    %3100 = vmatprep.mubr.f32.mxu0 0.0
    %v3101 = vand.u32 %v853, 4294901760
    %v3102 = vsub.f32 %v853, %v3101
    %v3103 = vand.u32 %v3102, 4294901760
    %3104 = vmatmul.mubr.f32.gmra.mrb[0].mxu0 %v3103
    %v3105 = vpop.f32.mrb[0].mxu0
    %v3106 = vadd.f32 %v3008, %v3105
    %v3107 = vpop.f32.mrb[0].mxu0
    %3108 = vmatprep.mubr.f32.mxu0 0.0
    %v3109 = vand.u32 %v856, 4294901760
    %v3110 = vsub.f32 %v856, %v3109
    %v3111 = vand.u32 %v3110, 4294901760
    %3112 = vmatmul.mubr.f32.gmra.mrb[0].mxu0 %v3111
    %v3113 = vpop.f32.mrb[0].mxu0
    %v3114 = vadd.f32 %v3015, %v3113
    %v3115 = vpop.f32.mrb[0].mxu0
    %3116 = vmatprep.mubr.f32.mxu0 0.0
    %v3117 = vand.u32 %v859, 4294901760
    %v3118 = vsub.f32 %v859, %v3117
    %v3119 = vand.u32 %v3118, 4294901760
    %3120 = vmatmul.mubr.f32.gmra.mrb[0].mxu0 %v3119
    %v3121 = vpop.f32.mrb[0].mxu0
    %v3122 = vadd.f32 %v3022, %v3121
    %v3123 = vpop.f32.mrb[0].mxu0
    %3124 = vmatprep.mubr.f32.mxu0 0.0
    %v3125 = vand.u32 %v862, 4294901760
    %v3126 = vsub.f32 %v862, %v3125
    %v3127 = vand.u32 %v3126, 4294901760
    %3128 = vmatmul.mubr.f32.gmra.mrb[0].mxu0 %v3127
    %v3129 = vpop.f32.mrb[0].mxu0
    %v3130 = vadd.f32 %v3029, %v3129
    %v3131 = vpop.f32.mrb[0].mxu0
    %3132 = vdwg.mxu0
    %3133 = vmatprep.subr.mxu0 0.0
    %v3134 = vand.u32 %v2709, 4294901760
    %v3135 = vsub.f32 %v2709, %v3134
    %v3136 = vand.u32 %v3135, 4294901760
    %3137 = vmatpush1.msra.mxu0 %v3136
    %3138 = vmatprep.subr.mxu0 0.0
    %v3139 = vand.u32 %v2710, 4294901760
    %v3140 = vsub.f32 %v2710, %v3139
    %v3141 = vand.u32 %v3140, 4294901760
    %3142 = vmatpush1.msra.mxu0 %v3141
    %3143 = vmatprep.subr.mxu0 0.0
    %v3144 = vand.u32 %v2711, 4294901760
    %v3145 = vsub.f32 %v2711, %v3144
    %v3146 = vand.u32 %v3145, 4294901760
    %3147 = vmatpush1.msra.mxu0 %v3146
    %3148 = vmatprep.subr.mxu0 0.0
    %v3149 = vand.u32 %v2712, 4294901760
    %v3150 = vsub.f32 %v2712, %v3149
    %v3151 = vand.u32 %v3150, 4294901760
    %3152 = vmatpush1.msra.mxu0 %v3151
    %3153 = vmatprep.subr.mxu0 0.0
    %3154 = vmatpush1.msra.mxu0 0.0
    %3155 = vmatprep.subr.mxu0 0.0
    %3156 = vmatpush1.msra.mxu0 0.0
    %3157 = vmatprep.subr.mxu0 0.0
    %3158 = vmatpush1.msra.mxu0 0.0
    %3159 = vmatprep.subr.mxu0 0.0
    %3160 = vmatpush1.msra.mxu0 0.0
    %3161 = vmatprep.subr.mxu0 0.0
    %3162 = vmatpush1.msra.mxu0 0.0
    %3163 = vmatprep.subr.mxu0 0.0
    %3164 = vmatpush1.msra.mxu0 0.0
    %3165 = vmatprep.subr.mxu0 0.0
    %3166 = vmatpush1.msra.mxu0 0.0
    %3167 = vmatprep.subr.mxu0 0.0
    %3168 = vmatpush1.msra.mxu0 0.0
    %3169 = vmatprep.subr.mxu0 0.0
    %3170 = vmatpush1.msra.mxu0 0.0
    %3171 = vmatprep.subr.mxu0 0.0
    %3172 = vmatpush1.msra.mxu0 0.0
    %3173 = vmatprep.subr.mxu0 0.0
    %3174 = vmatpush1.msra.mxu0 0.0
    %3175 = vmatprep.subr.mxu0 0.0
    %3176 = vmatpush1.msra.mxu0 0.0
    %3177 = vmatprep.subr.mxu0 0.0
    %3178 = vmatpush1.msra.mxu0 0.0
    %3179 = vmatprep.subr.mxu0 0.0
    %3180 = vmatpush1.msra.mxu0 0.0
    %3181 = vmatprep.subr.mxu0 0.0
    %3182 = vmatpush1.msra.mxu0 0.0
    %3183 = vmatprep.subr.mxu0 0.0
    %3184 = vmatpush1.msra.mxu0 0.0
    %3185 = vmatprep.subr.mxu0 0.0
    %3186 = vmatpush1.msra.mxu0 0.0
    %3187 = vmatprep.subr.mxu0 0.0
    %3188 = vmatpush1.msra.mxu0 0.0
    %3189 = vmatprep.subr.mxu0 0.0
    %3190 = vmatpush1.msra.mxu0 0.0
    %3191 = vmatprep.subr.mxu0 0.0
    %3192 = vmatpush1.msra.mxu0 0.0
    %3193 = vmatprep.subr.mxu0 0.0
    %3194 = vmatpush1.msra.mxu0 0.0
    %3195 = vmatprep.subr.mxu0 0.0
    %3196 = vmatpush1.msra.mxu0 0.0
    %3197 = vmatprep.subr.mxu0 0.0
    %3198 = vmatpush1.msra.mxu0 0.0
    %3199 = vmatprep.subr.mxu0 0.0
    %3200 = vmatpush1.msra.mxu0 0.0
    %3201 = vmatprep.subr.mxu0 0.0
    %3202 = vmatpush1.msra.mxu0 0.0
    %3203 = vmatprep.subr.mxu0 0.0
    %3204 = vmatpush1.msra.mxu0 0.0
    %3205 = vmatprep.subr.mxu0 0.0
    %3206 = vmatpush1.msra.mxu0 0.0
    %3207 = vmatprep.subr.mxu0 0.0
    %3208 = vmatpush1.msra.mxu0 0.0
    %3209 = vmatprep.mubr.f32.mxu0 0.0
    %v3210 = vand.u32 %v853, 4294901760
    %3211 = vmatmul.mubr.f32.gmra.mrb[0].mxu0 %v3210
    %v3212 = vpop.f32.mrb[0].mxu0
    %v3213 = vadd.f32 %v3106, %v3212
    %v3214 = vpop.f32.mrb[0].mxu0
    %3215 = vmatprep.mubr.f32.mxu0 0.0
    %v3216 = vand.u32 %v856, 4294901760
    %3217 = vmatmul.mubr.f32.gmra.mrb[0].mxu0 %v3216
    %v3218 = vpop.f32.mrb[0].mxu0
    %v3219 = vadd.f32 %v3114, %v3218
    %v3220 = vpop.f32.mrb[0].mxu0
    %3221 = vmatprep.mubr.f32.mxu0 0.0
    %v3222 = vand.u32 %v859, 4294901760
    %3223 = vmatmul.mubr.f32.gmra.mrb[0].mxu0 %v3222
    %v3224 = vpop.f32.mrb[0].mxu0
    %v3225 = vadd.f32 %v3122, %v3224
    %v3226 = vpop.f32.mrb[0].mxu0
    %3227 = vmatprep.mubr.f32.mxu0 0.0
    %v3228 = vand.u32 %v862, 4294901760
    %3229 = vmatmul.mubr.f32.gmra.mrb[0].mxu0 %v3228
    %v3230 = vpop.f32.mrb[0].mxu0
    %v3231 = vadd.f32 %v3130, %v3230
    %v3232 = vpop.f32.mrb[0].mxu0
    %3233 = vdwg.mxu0
    %3234 = vmatprep.subr.mxu0 0.0
    %v3235 = vand.u32 %v2709, 4294901760
    %3236 = vmatpush1.msra.mxu0 %v3235
    %3237 = vmatprep.subr.mxu0 0.0
    %v3238 = vand.u32 %v2710, 4294901760
    %3239 = vmatpush1.msra.mxu0 %v3238
    %3240 = vmatprep.subr.mxu0 0.0
    %v3241 = vand.u32 %v2711, 4294901760
    %3242 = vmatpush1.msra.mxu0 %v3241
    %3243 = vmatprep.subr.mxu0 0.0
    %v3244 = vand.u32 %v2712, 4294901760
    %3245 = vmatpush1.msra.mxu0 %v3244
    %3246 = vmatprep.subr.mxu0 0.0
    %3247 = vmatpush1.msra.mxu0 0.0
    %3248 = vmatprep.subr.mxu0 0.0
    %3249 = vmatpush1.msra.mxu0 0.0
    %3250 = vmatprep.subr.mxu0 0.0
    %3251 = vmatpush1.msra.mxu0 0.0
    %3252 = vmatprep.subr.mxu0 0.0
    %3253 = vmatpush1.msra.mxu0 0.0
    %3254 = vmatprep.subr.mxu0 0.0
    %3255 = vmatpush1.msra.mxu0 0.0
    %3256 = vmatprep.subr.mxu0 0.0
    %3257 = vmatpush1.msra.mxu0 0.0
    %3258 = vmatprep.subr.mxu0 0.0
    %3259 = vmatpush1.msra.mxu0 0.0
    %3260 = vmatprep.subr.mxu0 0.0
    %3261 = vmatpush1.msra.mxu0 0.0
    %3262 = vmatprep.subr.mxu0 0.0
    %3263 = vmatpush1.msra.mxu0 0.0
    %3264 = vmatprep.subr.mxu0 0.0
    %3265 = vmatpush1.msra.mxu0 0.0
    %3266 = vmatprep.subr.mxu0 0.0
    %3267 = vmatpush1.msra.mxu0 0.0
    %3268 = vmatprep.subr.mxu0 0.0
    %3269 = vmatpush1.msra.mxu0 0.0
    %3270 = vmatprep.subr.mxu0 0.0
    %3271 = vmatpush1.msra.mxu0 0.0
    %3272 = vmatprep.subr.mxu0 0.0
    %3273 = vmatpush1.msra.mxu0 0.0
    %3274 = vmatprep.subr.mxu0 0.0
    %3275 = vmatpush1.msra.mxu0 0.0
    %3276 = vmatprep.subr.mxu0 0.0
    %3277 = vmatpush1.msra.mxu0 0.0
    %3278 = vmatprep.subr.mxu0 0.0
    %3279 = vmatpush1.msra.mxu0 0.0
    %3280 = vmatprep.subr.mxu0 0.0
    %3281 = vmatpush1.msra.mxu0 0.0
    %3282 = vmatprep.subr.mxu0 0.0
    %3283 = vmatpush1.msra.mxu0 0.0
    %3284 = vmatprep.subr.mxu0 0.0
    %3285 = vmatpush1.msra.mxu0 0.0
    %3286 = vmatprep.subr.mxu0 0.0
    %3287 = vmatpush1.msra.mxu0 0.0
    %3288 = vmatprep.subr.mxu0 0.0
    %3289 = vmatpush1.msra.mxu0 0.0
    %3290 = vmatprep.subr.mxu0 0.0
    %3291 = vmatpush1.msra.mxu0 0.0
    %3292 = vmatprep.subr.mxu0 0.0
    %3293 = vmatpush1.msra.mxu0 0.0
    %3294 = vmatprep.subr.mxu0 0.0
    %3295 = vmatpush1.msra.mxu0 0.0
    %3296 = vmatprep.subr.mxu0 0.0
    %3297 = vmatpush1.msra.mxu0 0.0
    %3298 = vmatprep.subr.mxu0 0.0
    %3299 = vmatpush1.msra.mxu0 0.0
    %3300 = vmatprep.subr.mxu0 0.0
    %3301 = vmatpush1.msra.mxu0 0.0
    %3302 = vmatprep.mubr.f32.mxu0 0.0
    %v3303 = vand.u32 %v853, 4294901760
    %3304 = vmatmul.mubr.f32.gmra.mrb[0].mxu0 %v3303
    %v3305 = vpop.f32.mrb[0].mxu0
    %v3306 = vadd.f32 %v3213, %v3305
    %v3307 = vpop.f32.mrb[0].mxu0
    %3308 = vmatprep.mubr.f32.mxu0 0.0
    %v3309 = vand.u32 %v856, 4294901760
    %3310 = vmatmul.mubr.f32.gmra.mrb[0].mxu0 %v3309
    %v3311 = vpop.f32.mrb[0].mxu0
    %v3312 = vadd.f32 %v3219, %v3311
    %v3313 = vpop.f32.mrb[0].mxu0
    %3314 = vmatprep.mubr.f32.mxu0 0.0
    %v3315 = vand.u32 %v859, 4294901760
    %3316 = vmatmul.mubr.f32.gmra.mrb[0].mxu0 %v3315
    %v3317 = vpop.f32.mrb[0].mxu0
    %v3318 = vadd.f32 %v3225, %v3317
    %v3319 = vpop.f32.mrb[0].mxu0
    %3320 = vmatprep.mubr.f32.mxu0 0.0
    %v3321 = vand.u32 %v862, 4294901760
    %3322 = vmatmul.mubr.f32.gmra.mrb[0].mxu0 %v3321
    %v3323 = vpop.f32.mrb[0].mxu0
    %v3324 = vadd.f32 %v3231, %v3323
    %v3325 = vpop.f32.mrb[0].mxu0
    %3326 = vdwg.mxu0
    %v3327 = vadd.f32 %v3306, %v3312
    %v3328 = vadd.f32 %v3327, %v3318
    %v3329 = vadd.f32 %v3328, %v3324
    %v3330 = vrot.slane %v3329, 4
    %v3331 = vadd.f32 %v3329, %v3330
    %v3332 = vrot.slane %v3331, 2
    %v3333 = vadd.f32 %v3331, %v3332
    %v3334 = vrot.slane %v3333, 1
    %v3335 = vadd.f32 %v3333, %v3334
    %v3336 = vmul.f32 %v3335, %v759
    %v3337 = vmul.f32 %v3306, %v3306
    %v3338 = vmul.f32 %v3312, %v3312
    %v3339 = vmul.f32 %v3318, %v3318
    %v3340 = vmul.f32 %v3324, %v3324
    %v3341 = vadd.f32 %v3337, %v3338
    %v3342 = vadd.f32 %v3341, %v3339
    %v3343 = vadd.f32 %v3342, %v3340
    %v3344 = vrot.slane %v3343, 4
    %v3345 = vadd.f32 %v3343, %v3344
    %v3346 = vrot.slane %v3345, 2
    %v3347 = vadd.f32 %v3345, %v3346
    %v3348 = vrot.slane %v3347, 1
    %v3349 = vadd.f32 %v3347, %v3348
    %v3350 = vmul.f32 %v3349, %v759
    %v3351 = vmul.f32 %v3336, %v3336
    %v3352 = vsub.f32 %v3350, %v3351
    %v3353 = vsub.f32 %v3306, %v3336
    %v3354 = vsub.f32 %v3312, %v3336
    %v3355 = vsub.f32 %v3318, %v3336
    %v3356 = vsub.f32 %v3324, %v3336
    %v3357 = vadd.f32 %v3352, 1e-05
    %v3358 = vrsqrt.pop %v3357
    %v3359 = vmul.f32 %v3353, %v3358
    %v3360 = vmul.f32 %v3354, %v3358
    %v3361 = vmul.f32 %v3355, %v3358
    %v3362 = vmul.f32 %v3356, %v3358
    %v3363 = vmul.f32 %v3359, %v1516
    %v3364 = vmul.f32 %v3360, %v1520
    %v3365 = vmul.f32 %v3361, %v1524
    %v3366 = vmul.f32 %v3362, %v1528
    %v3367 = vadd.f32 %v3363, %v1536
    %v3368 = vadd.f32 %v3364, %v1540
    %v3369 = vadd.f32 %v3365, %v1544
    %v3370 = vadd.f32 %v3366, %v1548
    %v3371 = vmax.f32 %v3367, 0.0
    %v3372 = vmax.f32 %v3368, 0.0
    %v3373 = vmax.f32 %v3369, 0.0
    %v3374 = vmax.f32 %v3370, 0.0
    %3375 = vmatprep.subr.mxu0 0.0
    %v3376 = vand.u32 %v3371, 4294901760
    %3377 = vmatpush1.msra.mxu0 %v3376
    %3378 = vmatprep.subr.mxu0 0.0
    %v3379 = vand.u32 %v3372, 4294901760
    %3380 = vmatpush1.msra.mxu0 %v3379
    %3381 = vmatprep.subr.mxu0 0.0
    %v3382 = vand.u32 %v3373, 4294901760
    %3383 = vmatpush1.msra.mxu0 %v3382
    %3384 = vmatprep.subr.mxu0 0.0
    %v3385 = vand.u32 %v3374, 4294901760
    %3386 = vmatpush1.msra.mxu0 %v3385
    %3387 = vmatprep.subr.mxu0 0.0
    %3388 = vmatpush1.msra.mxu0 0.0
    %3389 = vmatprep.subr.mxu0 0.0
    %3390 = vmatpush1.msra.mxu0 0.0
    %3391 = vmatprep.subr.mxu0 0.0
    %3392 = vmatpush1.msra.mxu0 0.0
    %3393 = vmatprep.subr.mxu0 0.0
    %3394 = vmatpush1.msra.mxu0 0.0
    %3395 = vmatprep.subr.mxu0 0.0
    %3396 = vmatpush1.msra.mxu0 0.0
    %3397 = vmatprep.subr.mxu0 0.0
    %3398 = vmatpush1.msra.mxu0 0.0
    %3399 = vmatprep.subr.mxu0 0.0
    %3400 = vmatpush1.msra.mxu0 0.0
    %3401 = vmatprep.subr.mxu0 0.0
    %3402 = vmatpush1.msra.mxu0 0.0
    %3403 = vmatprep.subr.mxu0 0.0
    %3404 = vmatpush1.msra.mxu0 0.0
    %3405 = vmatprep.subr.mxu0 0.0
    %3406 = vmatpush1.msra.mxu0 0.0
    %3407 = vmatprep.subr.mxu0 0.0
    %3408 = vmatpush1.msra.mxu0 0.0
    %3409 = vmatprep.subr.mxu0 0.0
    %3410 = vmatpush1.msra.mxu0 0.0
    %3411 = vmatprep.subr.mxu0 0.0
    %3412 = vmatpush1.msra.mxu0 0.0
    %3413 = vmatprep.subr.mxu0 0.0
    %3414 = vmatpush1.msra.mxu0 0.0
    %3415 = vmatprep.subr.mxu0 0.0
    %3416 = vmatpush1.msra.mxu0 0.0
    %3417 = vmatprep.subr.mxu0 0.0
    %3418 = vmatpush1.msra.mxu0 0.0
    %3419 = vmatprep.subr.mxu0 0.0
    %3420 = vmatpush1.msra.mxu0 0.0
    %3421 = vmatprep.subr.mxu0 0.0
    %3422 = vmatpush1.msra.mxu0 0.0
    %3423 = vmatprep.subr.mxu0 0.0
    %3424 = vmatpush1.msra.mxu0 0.0
    %3425 = vmatprep.subr.mxu0 0.0
    %3426 = vmatpush1.msra.mxu0 0.0
    %3427 = vmatprep.subr.mxu0 0.0
    %3428 = vmatpush1.msra.mxu0 0.0
    %3429 = vmatprep.subr.mxu0 0.0
    %3430 = vmatpush1.msra.mxu0 0.0
    %3431 = vmatprep.subr.mxu0 0.0
    %3432 = vmatpush1.msra.mxu0 0.0
    %3433 = vmatprep.subr.mxu0 0.0
    %3434 = vmatpush1.msra.mxu0 0.0
    %3435 = vmatprep.subr.mxu0 0.0
    %3436 = vmatpush1.msra.mxu0 0.0
    %3437 = vmatprep.subr.mxu0 0.0
    %3438 = vmatpush1.msra.mxu0 0.0
    %3439 = vmatprep.subr.mxu0 0.0
    %3440 = vmatpush1.msra.mxu0 0.0
    %3441 = vmatprep.subr.mxu0 0.0
    %3442 = vmatpush1.msra.mxu0 0.0
    %3443 = vmatprep.mubr.f32.mxu0 0.0
    %v3444 = vand.u32 %v1565, 4294901760
    %v3445 = vsub.f32 %v1565, %v3444
    %v3446 = vand.u32 %v3445, 4294901760
    %v3447 = vsub.f32 %v3445, %v3446
    %v3448 = vand.u32 %v3447, 4294901760
    %3449 = vmatmul.mubr.f32.gmra.mrb[0].mxu0 %v3448
    %v3450 = vpop.f32.mrb[0].mxu0
    %v3451 = vadd.f32 %v1562, %v3450
    %v3452 = vpop.f32.mrb[0].mxu0
    %3453 = vdwg.mxu0
    %3454 = vmatprep.subr.mxu0 0.0
    %v3455 = vand.u32 %v3371, 4294901760
    %v3456 = vsub.f32 %v3371, %v3455
    %v3457 = vand.u32 %v3456, 4294901760
    %v3458 = vsub.f32 %v3456, %v3457
    %v3459 = vand.u32 %v3458, 4294901760
    %3460 = vmatpush1.msra.mxu0 %v3459
    %3461 = vmatprep.subr.mxu0 0.0
    %v3462 = vand.u32 %v3372, 4294901760
    %v3463 = vsub.f32 %v3372, %v3462
    %v3464 = vand.u32 %v3463, 4294901760
    %v3465 = vsub.f32 %v3463, %v3464
    %v3466 = vand.u32 %v3465, 4294901760
    %3467 = vmatpush1.msra.mxu0 %v3466
    %3468 = vmatprep.subr.mxu0 0.0
    %v3469 = vand.u32 %v3373, 4294901760
    %v3470 = vsub.f32 %v3373, %v3469
    %v3471 = vand.u32 %v3470, 4294901760
    %v3472 = vsub.f32 %v3470, %v3471
    %v3473 = vand.u32 %v3472, 4294901760
    %3474 = vmatpush1.msra.mxu0 %v3473
    %3475 = vmatprep.subr.mxu0 0.0
    %v3476 = vand.u32 %v3374, 4294901760
    %v3477 = vsub.f32 %v3374, %v3476
    %v3478 = vand.u32 %v3477, 4294901760
    %v3479 = vsub.f32 %v3477, %v3478
    %v3480 = vand.u32 %v3479, 4294901760
    %3481 = vmatpush1.msra.mxu0 %v3480
    %3482 = vmatprep.subr.mxu0 0.0
    %3483 = vmatpush1.msra.mxu0 0.0
    %3484 = vmatprep.subr.mxu0 0.0
    %3485 = vmatpush1.msra.mxu0 0.0
    %3486 = vmatprep.subr.mxu0 0.0
    %3487 = vmatpush1.msra.mxu0 0.0
    %3488 = vmatprep.subr.mxu0 0.0
    %3489 = vmatpush1.msra.mxu0 0.0
    %3490 = vmatprep.subr.mxu0 0.0
    %3491 = vmatpush1.msra.mxu0 0.0
    %3492 = vmatprep.subr.mxu0 0.0
    %3493 = vmatpush1.msra.mxu0 0.0
    %3494 = vmatprep.subr.mxu0 0.0
    %3495 = vmatpush1.msra.mxu0 0.0
    %3496 = vmatprep.subr.mxu0 0.0
    %3497 = vmatpush1.msra.mxu0 0.0
    %3498 = vmatprep.subr.mxu0 0.0
    %3499 = vmatpush1.msra.mxu0 0.0
    %3500 = vmatprep.subr.mxu0 0.0
    %3501 = vmatpush1.msra.mxu0 0.0
    %3502 = vmatprep.subr.mxu0 0.0
    %3503 = vmatpush1.msra.mxu0 0.0
    %3504 = vmatprep.subr.mxu0 0.0
    %3505 = vmatpush1.msra.mxu0 0.0
    %3506 = vmatprep.subr.mxu0 0.0
    %3507 = vmatpush1.msra.mxu0 0.0
    %3508 = vmatprep.subr.mxu0 0.0
    %3509 = vmatpush1.msra.mxu0 0.0
    %3510 = vmatprep.subr.mxu0 0.0
    %3511 = vmatpush1.msra.mxu0 0.0
    %3512 = vmatprep.subr.mxu0 0.0
    %3513 = vmatpush1.msra.mxu0 0.0
    %3514 = vmatprep.subr.mxu0 0.0
    %3515 = vmatpush1.msra.mxu0 0.0
    %3516 = vmatprep.subr.mxu0 0.0
    %3517 = vmatpush1.msra.mxu0 0.0
    %3518 = vmatprep.subr.mxu0 0.0
    %3519 = vmatpush1.msra.mxu0 0.0
    %3520 = vmatprep.subr.mxu0 0.0
    %3521 = vmatpush1.msra.mxu0 0.0
    %3522 = vmatprep.subr.mxu0 0.0
    %3523 = vmatpush1.msra.mxu0 0.0
    %3524 = vmatprep.subr.mxu0 0.0
    %3525 = vmatpush1.msra.mxu0 0.0
    %3526 = vmatprep.subr.mxu0 0.0
    %3527 = vmatpush1.msra.mxu0 0.0
    %3528 = vmatprep.subr.mxu0 0.0
    %3529 = vmatpush1.msra.mxu0 0.0
    %3530 = vmatprep.subr.mxu0 0.0
    %3531 = vmatpush1.msra.mxu0 0.0
    %3532 = vmatprep.subr.mxu0 0.0
    %3533 = vmatpush1.msra.mxu0 0.0
    %3534 = vmatprep.subr.mxu0 0.0
    %3535 = vmatpush1.msra.mxu0 0.0
    %3536 = vmatprep.subr.mxu0 0.0
    %3537 = vmatpush1.msra.mxu0 0.0
    %3538 = vmatprep.mubr.f32.mxu0 0.0
    %v3539 = vand.u32 %v1565, 4294901760
    %3540 = vmatmul.mubr.f32.gmra.mrb[0].mxu0 %v3539
    %v3541 = vpop.f32.mrb[0].mxu0
    %v3542 = vadd.f32 %v3451, %v3541
    %v3543 = vpop.f32.mrb[0].mxu0
    %3544 = vdwg.mxu0
    %3545 = vmatprep.subr.mxu0 0.0
    %v3546 = vand.u32 %v3371, 4294901760
    %v3547 = vsub.f32 %v3371, %v3546
    %3548 = vmatpush1.msra.mxu0 %v3547
    %3549 = vmatprep.subr.mxu0 0.0
    %v3550 = vand.u32 %v3372, 4294901760
    %v3551 = vsub.f32 %v3372, %v3550
    %3552 = vmatpush1.msra.mxu0 %v3551
    %3553 = vmatprep.subr.mxu0 0.0
    %v3554 = vand.u32 %v3373, 4294901760
    %v3555 = vsub.f32 %v3373, %v3554
    %3556 = vmatpush1.msra.mxu0 %v3555
    %3557 = vmatprep.subr.mxu0 0.0
    %v3558 = vand.u32 %v3374, 4294901760
    %v3559 = vsub.f32 %v3374, %v3558
    %3560 = vmatpush1.msra.mxu0 %v3559
    %3561 = vmatprep.subr.mxu0 0.0
    %3562 = vmatpush1.msra.mxu0 0.0
    %3563 = vmatprep.subr.mxu0 0.0
    %3564 = vmatpush1.msra.mxu0 0.0
    %3565 = vmatprep.subr.mxu0 0.0
    %3566 = vmatpush1.msra.mxu0 0.0
    %3567 = vmatprep.subr.mxu0 0.0
    %3568 = vmatpush1.msra.mxu0 0.0
    %3569 = vmatprep.subr.mxu0 0.0
    %3570 = vmatpush1.msra.mxu0 0.0
    %3571 = vmatprep.subr.mxu0 0.0
    %3572 = vmatpush1.msra.mxu0 0.0
    %3573 = vmatprep.subr.mxu0 0.0
    %3574 = vmatpush1.msra.mxu0 0.0
    %3575 = vmatprep.subr.mxu0 0.0
    %3576 = vmatpush1.msra.mxu0 0.0
    %3577 = vmatprep.subr.mxu0 0.0
    %3578 = vmatpush1.msra.mxu0 0.0
    %3579 = vmatprep.subr.mxu0 0.0
    %3580 = vmatpush1.msra.mxu0 0.0
    %3581 = vmatprep.subr.mxu0 0.0
    %3582 = vmatpush1.msra.mxu0 0.0
    %3583 = vmatprep.subr.mxu0 0.0
    %3584 = vmatpush1.msra.mxu0 0.0
    %3585 = vmatprep.subr.mxu0 0.0
    %3586 = vmatpush1.msra.mxu0 0.0
    %3587 = vmatprep.subr.mxu0 0.0
    %3588 = vmatpush1.msra.mxu0 0.0
    %3589 = vmatprep.subr.mxu0 0.0
    %3590 = vmatpush1.msra.mxu0 0.0
    %3591 = vmatprep.subr.mxu0 0.0
    %3592 = vmatpush1.msra.mxu0 0.0
    %3593 = vmatprep.subr.mxu0 0.0
    %3594 = vmatpush1.msra.mxu0 0.0
    %3595 = vmatprep.subr.mxu0 0.0
    %3596 = vmatpush1.msra.mxu0 0.0
    %3597 = vmatprep.subr.mxu0 0.0
    %3598 = vmatpush1.msra.mxu0 0.0
    %3599 = vmatprep.subr.mxu0 0.0
    %3600 = vmatpush1.msra.mxu0 0.0
    %3601 = vmatprep.subr.mxu0 0.0
    %3602 = vmatpush1.msra.mxu0 0.0
    %3603 = vmatprep.subr.mxu0 0.0
    %3604 = vmatpush1.msra.mxu0 0.0
    %3605 = vmatprep.subr.mxu0 0.0
    %3606 = vmatpush1.msra.mxu0 0.0
    %3607 = vmatprep.subr.mxu0 0.0
    %3608 = vmatpush1.msra.mxu0 0.0
    %3609 = vmatprep.subr.mxu0 0.0
    %3610 = vmatpush1.msra.mxu0 0.0
    %3611 = vmatprep.subr.mxu0 0.0
    %3612 = vmatpush1.msra.mxu0 0.0
    %3613 = vmatprep.subr.mxu0 0.0
    %3614 = vmatpush1.msra.mxu0 0.0
    %3615 = vmatprep.subr.mxu0 0.0
    %3616 = vmatpush1.msra.mxu0 0.0
    %3617 = vmatprep.mubr.f32.mxu0 0.0
    %v3618 = vand.u32 %v1565, 4294901760
    %v3619 = vsub.f32 %v1565, %v3618
    %3620 = vmatmul.mubr.f32.gmra.mrb[0].mxu0 %v3619
    %v3621 = vpop.f32.mrb[0].mxu0
    %v3622 = vadd.f32 %v3542, %v3621
    %v3623 = vpop.f32.mrb[0].mxu0
    %3624 = vdwg.mxu0
    %3625 = vmatprep.subr.mxu0 0.0
    %v3626 = vand.u32 %v3371, 4294901760
    %3627 = vmatpush1.msra.mxu0 %v3626
    %3628 = vmatprep.subr.mxu0 0.0
    %v3629 = vand.u32 %v3372, 4294901760
    %3630 = vmatpush1.msra.mxu0 %v3629
    %3631 = vmatprep.subr.mxu0 0.0
    %v3632 = vand.u32 %v3373, 4294901760
    %3633 = vmatpush1.msra.mxu0 %v3632
    %3634 = vmatprep.subr.mxu0 0.0
    %v3635 = vand.u32 %v3374, 4294901760
    %3636 = vmatpush1.msra.mxu0 %v3635
    %3637 = vmatprep.subr.mxu0 0.0
    %3638 = vmatpush1.msra.mxu0 0.0
    %3639 = vmatprep.subr.mxu0 0.0
    %3640 = vmatpush1.msra.mxu0 0.0
    %3641 = vmatprep.subr.mxu0 0.0
    %3642 = vmatpush1.msra.mxu0 0.0
    %3643 = vmatprep.subr.mxu0 0.0
    %3644 = vmatpush1.msra.mxu0 0.0
    %3645 = vmatprep.subr.mxu0 0.0
    %3646 = vmatpush1.msra.mxu0 0.0
    %3647 = vmatprep.subr.mxu0 0.0
    %3648 = vmatpush1.msra.mxu0 0.0
    %3649 = vmatprep.subr.mxu0 0.0
    %3650 = vmatpush1.msra.mxu0 0.0
    %3651 = vmatprep.subr.mxu0 0.0
    %3652 = vmatpush1.msra.mxu0 0.0
    %3653 = vmatprep.subr.mxu0 0.0
    %3654 = vmatpush1.msra.mxu0 0.0
    %3655 = vmatprep.subr.mxu0 0.0
    %3656 = vmatpush1.msra.mxu0 0.0
    %3657 = vmatprep.subr.mxu0 0.0
    %3658 = vmatpush1.msra.mxu0 0.0
    %3659 = vmatprep.subr.mxu0 0.0
    %3660 = vmatpush1.msra.mxu0 0.0
    %3661 = vmatprep.subr.mxu0 0.0
    %3662 = vmatpush1.msra.mxu0 0.0
    %3663 = vmatprep.subr.mxu0 0.0
    %3664 = vmatpush1.msra.mxu0 0.0
    %3665 = vmatprep.subr.mxu0 0.0
    %3666 = vmatpush1.msra.mxu0 0.0
    %3667 = vmatprep.subr.mxu0 0.0
    %3668 = vmatpush1.msra.mxu0 0.0
    %3669 = vmatprep.subr.mxu0 0.0
    %3670 = vmatpush1.msra.mxu0 0.0
    %3671 = vmatprep.subr.mxu0 0.0
    %3672 = vmatpush1.msra.mxu0 0.0
    %3673 = vmatprep.subr.mxu0 0.0
    %3674 = vmatpush1.msra.mxu0 0.0
    %3675 = vmatprep.subr.mxu0 0.0
    %3676 = vmatpush1.msra.mxu0 0.0
    %3677 = vmatprep.subr.mxu0 0.0
    %3678 = vmatpush1.msra.mxu0 0.0
    %3679 = vmatprep.subr.mxu0 0.0
    %3680 = vmatpush1.msra.mxu0 0.0
    %3681 = vmatprep.subr.mxu0 0.0
    %3682 = vmatpush1.msra.mxu0 0.0
    %3683 = vmatprep.subr.mxu0 0.0
    %3684 = vmatpush1.msra.mxu0 0.0
    %3685 = vmatprep.subr.mxu0 0.0
    %3686 = vmatpush1.msra.mxu0 0.0
    %3687 = vmatprep.subr.mxu0 0.0
    %3688 = vmatpush1.msra.mxu0 0.0
    %3689 = vmatprep.subr.mxu0 0.0
    %3690 = vmatpush1.msra.mxu0 0.0
    %3691 = vmatprep.subr.mxu0 0.0
    %3692 = vmatpush1.msra.mxu0 0.0
    %3693 = vmatprep.mubr.f32.mxu0 0.0
    %v3694 = vand.u32 %v1565, 4294901760
    %v3695 = vsub.f32 %v1565, %v3694
    %v3696 = vand.u32 %v3695, 4294901760
    %3697 = vmatmul.mubr.f32.gmra.mrb[0].mxu0 %v3696
    %v3698 = vpop.f32.mrb[0].mxu0
    %v3699 = vadd.f32 %v3622, %v3698
    %v3700 = vpop.f32.mrb[0].mxu0
    %3701 = vdwg.mxu0
    %3702 = vmatprep.subr.mxu0 0.0
    %v3703 = vand.u32 %v3371, 4294901760
    %v3704 = vsub.f32 %v3371, %v3703
    %v3705 = vand.u32 %v3704, 4294901760
    %3706 = vmatpush1.msra.mxu0 %v3705
    %3707 = vmatprep.subr.mxu0 0.0
    %v3708 = vand.u32 %v3372, 4294901760
    %v3709 = vsub.f32 %v3372, %v3708
    %v3710 = vand.u32 %v3709, 4294901760
    %3711 = vmatpush1.msra.mxu0 %v3710
    %3712 = vmatprep.subr.mxu0 0.0
    %v3713 = vand.u32 %v3373, 4294901760
    %v3714 = vsub.f32 %v3373, %v3713
    %v3715 = vand.u32 %v3714, 4294901760
    %3716 = vmatpush1.msra.mxu0 %v3715
    %3717 = vmatprep.subr.mxu0 0.0
    %v3718 = vand.u32 %v3374, 4294901760
    %v3719 = vsub.f32 %v3374, %v3718
    %v3720 = vand.u32 %v3719, 4294901760
    %3721 = vmatpush1.msra.mxu0 %v3720
    %3722 = vmatprep.subr.mxu0 0.0
    %3723 = vmatpush1.msra.mxu0 0.0
    %3724 = vmatprep.subr.mxu0 0.0
    %3725 = vmatpush1.msra.mxu0 0.0
    %3726 = vmatprep.subr.mxu0 0.0
    %3727 = vmatpush1.msra.mxu0 0.0
    %3728 = vmatprep.subr.mxu0 0.0
    %3729 = vmatpush1.msra.mxu0 0.0
    %3730 = vmatprep.subr.mxu0 0.0
    %3731 = vmatpush1.msra.mxu0 0.0
    %3732 = vmatprep.subr.mxu0 0.0
    %3733 = vmatpush1.msra.mxu0 0.0
    %3734 = vmatprep.subr.mxu0 0.0
    %3735 = vmatpush1.msra.mxu0 0.0
    %3736 = vmatprep.subr.mxu0 0.0
    %3737 = vmatpush1.msra.mxu0 0.0
    %3738 = vmatprep.subr.mxu0 0.0
    %3739 = vmatpush1.msra.mxu0 0.0
    %3740 = vmatprep.subr.mxu0 0.0
    %3741 = vmatpush1.msra.mxu0 0.0
    %3742 = vmatprep.subr.mxu0 0.0
    %3743 = vmatpush1.msra.mxu0 0.0
    %3744 = vmatprep.subr.mxu0 0.0
    %3745 = vmatpush1.msra.mxu0 0.0
    %3746 = vmatprep.subr.mxu0 0.0
    %3747 = vmatpush1.msra.mxu0 0.0
    %3748 = vmatprep.subr.mxu0 0.0
    %3749 = vmatpush1.msra.mxu0 0.0
    %3750 = vmatprep.subr.mxu0 0.0
    %3751 = vmatpush1.msra.mxu0 0.0
    %3752 = vmatprep.subr.mxu0 0.0
    %3753 = vmatpush1.msra.mxu0 0.0
    %3754 = vmatprep.subr.mxu0 0.0
    %3755 = vmatpush1.msra.mxu0 0.0
    %3756 = vmatprep.subr.mxu0 0.0
    %3757 = vmatpush1.msra.mxu0 0.0
    %3758 = vmatprep.subr.mxu0 0.0
    %3759 = vmatpush1.msra.mxu0 0.0
    %3760 = vmatprep.subr.mxu0 0.0
    %3761 = vmatpush1.msra.mxu0 0.0
    %3762 = vmatprep.subr.mxu0 0.0
    %3763 = vmatpush1.msra.mxu0 0.0
    %3764 = vmatprep.subr.mxu0 0.0
    %3765 = vmatpush1.msra.mxu0 0.0
    %3766 = vmatprep.subr.mxu0 0.0
    %3767 = vmatpush1.msra.mxu0 0.0
    %3768 = vmatprep.subr.mxu0 0.0
    %3769 = vmatpush1.msra.mxu0 0.0
    %3770 = vmatprep.subr.mxu0 0.0
    %3771 = vmatpush1.msra.mxu0 0.0
    %3772 = vmatprep.subr.mxu0 0.0
    %3773 = vmatpush1.msra.mxu0 0.0
    %3774 = vmatprep.subr.mxu0 0.0
    %3775 = vmatpush1.msra.mxu0 0.0
    %3776 = vmatprep.subr.mxu0 0.0
    %3777 = vmatpush1.msra.mxu0 0.0
    %3778 = vmatprep.mubr.f32.mxu0 0.0
    %v3779 = vand.u32 %v1565, 4294901760
    %3780 = vmatmul.mubr.f32.gmra.mrb[0].mxu0 %v3779
    %v3781 = vpop.f32.mrb[0].mxu0
    %v3782 = vadd.f32 %v3699, %v3781
    %v3783 = vpop.f32.mrb[0].mxu0
    %3784 = vdwg.mxu0
    %3785 = vmatprep.subr.mxu0 0.0
    %v3786 = vand.u32 %v3371, 4294901760
    %3787 = vmatpush1.msra.mxu0 %v3786
    %3788 = vmatprep.subr.mxu0 0.0
    %v3789 = vand.u32 %v3372, 4294901760
    %3790 = vmatpush1.msra.mxu0 %v3789
    %3791 = vmatprep.subr.mxu0 0.0
    %v3792 = vand.u32 %v3373, 4294901760
    %3793 = vmatpush1.msra.mxu0 %v3792
    %3794 = vmatprep.subr.mxu0 0.0
    %v3795 = vand.u32 %v3374, 4294901760
    %3796 = vmatpush1.msra.mxu0 %v3795
    %3797 = vmatprep.subr.mxu0 0.0
    %3798 = vmatpush1.msra.mxu0 0.0
    %3799 = vmatprep.subr.mxu0 0.0
    %3800 = vmatpush1.msra.mxu0 0.0
    %3801 = vmatprep.subr.mxu0 0.0
    %3802 = vmatpush1.msra.mxu0 0.0
    %3803 = vmatprep.subr.mxu0 0.0
    %3804 = vmatpush1.msra.mxu0 0.0
    %3805 = vmatprep.subr.mxu0 0.0
    %3806 = vmatpush1.msra.mxu0 0.0
    %3807 = vmatprep.subr.mxu0 0.0
    %3808 = vmatpush1.msra.mxu0 0.0
    %3809 = vmatprep.subr.mxu0 0.0
    %3810 = vmatpush1.msra.mxu0 0.0
    %3811 = vmatprep.subr.mxu0 0.0
    %3812 = vmatpush1.msra.mxu0 0.0
    %3813 = vmatprep.subr.mxu0 0.0
    %3814 = vmatpush1.msra.mxu0 0.0
    %3815 = vmatprep.subr.mxu0 0.0
    %3816 = vmatpush1.msra.mxu0 0.0
    %3817 = vmatprep.subr.mxu0 0.0
    %3818 = vmatpush1.msra.mxu0 0.0
    %3819 = vmatprep.subr.mxu0 0.0
    %3820 = vmatpush1.msra.mxu0 0.0
    %3821 = vmatprep.subr.mxu0 0.0
    %3822 = vmatpush1.msra.mxu0 0.0
    %3823 = vmatprep.subr.mxu0 0.0
    %3824 = vmatpush1.msra.mxu0 0.0
    %3825 = vmatprep.subr.mxu0 0.0
    %3826 = vmatpush1.msra.mxu0 0.0
    %3827 = vmatprep.subr.mxu0 0.0
    %3828 = vmatpush1.msra.mxu0 0.0
    %3829 = vmatprep.subr.mxu0 0.0
    %3830 = vmatpush1.msra.mxu0 0.0
    %3831 = vmatprep.subr.mxu0 0.0
    %3832 = vmatpush1.msra.mxu0 0.0
    %3833 = vmatprep.subr.mxu0 0.0
    %3834 = vmatpush1.msra.mxu0 0.0
    %3835 = vmatprep.subr.mxu0 0.0
    %3836 = vmatpush1.msra.mxu0 0.0
    %3837 = vmatprep.subr.mxu0 0.0
    %3838 = vmatpush1.msra.mxu0 0.0
    %3839 = vmatprep.subr.mxu0 0.0
    %3840 = vmatpush1.msra.mxu0 0.0
    %3841 = vmatprep.subr.mxu0 0.0
    %3842 = vmatpush1.msra.mxu0 0.0
    %3843 = vmatprep.subr.mxu0 0.0
    %3844 = vmatpush1.msra.mxu0 0.0
    %3845 = vmatprep.subr.mxu0 0.0
    %3846 = vmatpush1.msra.mxu0 0.0
    %3847 = vmatprep.subr.mxu0 0.0
    %3848 = vmatpush1.msra.mxu0 0.0
    %3849 = vmatprep.subr.mxu0 0.0
    %3850 = vmatpush1.msra.mxu0 0.0
    %3851 = vmatprep.subr.mxu0 0.0
    %3852 = vmatpush1.msra.mxu0 0.0
    %3853 = vmatprep.mubr.f32.mxu0 0.0
    %v3854 = vand.u32 %v1565, 4294901760
    %3855 = vmatmul.mubr.f32.gmra.mrb[0].mxu0 %v3854
    %v3856 = vpop.f32.mrb[0].mxu0
    %v3857 = vadd.f32 %v3782, %v3856
    %v3858 = vpop.f32.mrb[0].mxu0
    %3859 = vdwg.mxu0
    %v3860 = vxor.u32 %v3857, 2147483648
    %v3861 = vmul.f32 %v3860, 1.442695
    %v3862 = vpow.pop %v3861
    %v3863 = vadd.f32 %v3862, 1.0
    %v3864 = vrcp.pop %v3863
    %v3865 = vmul.f32 1.0, %v3864
    %v3866 = vadd.f32 %v3865, 1e-06
    %v3868 = vrot.slane %v3857, 2
    %v3870 = vadd.f32 %v123, %v3868
    %v3872 = vrot.slane %v3866, 4
    %v3874 = vmul.f32 %v3870, %v3872
    %v3875 = vlog2.pop %v3866
    %v3876 = vmul.f32 %v3875, 0.6931472
    %v3877 = vsel %vm129, %v3876, 0.0
    %v3879 = vrot.slane %v3877, 2
    %v3881 = vsel %vm133, %v3879, 0.0
    %3882 = vadd.xlane.f32.xlu0 %v3881
    %v3883 = vpop.xlane.xlu0 %3882
    %v3884 = vrot.slane %v3883, 4
    %v3885 = vadd.f32 %v3883, %v3884
    %v3886 = vrot.slane %v3885, 2
    %v3887 = vadd.f32 %v3885, %v3886
    %v3888 = vrot.slane %v3887, 1
    %v3889 = vadd.f32 %v3887, %v3888
    %s3890 = vtos %v3889
    %v3891 = vstv %s3890
    %v3892 = vsel %vm133, %v123, %v2063
    %vm3893 = vcmask 1043456
    %v3894 = vsel %vm3893, %v3892, %v123
    %v3895 = vsel %vm171, %v3894, %v3874
    %3896 = vst [vmem:[#allocation2] sm:$0xff] %v3895
    %vm3897 = vcmask 1040384
    %v3898 = vsel %vm3897, %v2080, %v3891
    %3899 = vst [vmem:[#allocation4] sm:$0x3] %v3898
    // Predicated region
    $region30: #{tpu_custom_call.1} parent=1 // pred_check
      _
    $region31: #{tpu_custom_call.1} parent=1 // pred_check_branch
      %3901 = sbr.rel (0) target = $region33
    $region32: #{tpu_custom_call.1} parent=1 // pred_region
      %s3903 = ssub.s32 128, 128
      %3904 = vsyncadd [#allocation3], %s3903
      %s3906 = sshll.u32 [#allocation2], 4
      %s3907 = int_to_ptr.vmem [resolvable:$true] %s3906
      %3909 = dma.vmem_to_hbm [thread:$0]  %s3907, 128, %s7, [#allocation3]
    $region33: #{tpu_custom_call.1} parent=1 // pred_fallthru
      _
    // Predicated region
    $region34: #{tpu_custom_call.1} parent=1 // pred_check
      _
    $region35: #{tpu_custom_call.1} parent=1 // pred_check_branch
      %3911 = sbr.rel (0) target = $region37
    $region36: #{tpu_custom_call.1} parent=1 // pred_region
      %s3913 = ssub.s32 32, 32
      %3914 = vsyncadd [#allocation5], %s3913
      %s3916 = sshll.u32 [#allocation4], 4
      %s3917 = int_to_ptr.vmem [resolvable:$true] %s3916
      %3919 = dma.vmem_to_hbm [thread:$0]  %s3917, 32, %s8, [#allocation5]
    $region37: #{tpu_custom_call.1} parent=1 // pred_fallthru
      _
    // Predicated region
    $region38: #{tpu_custom_call.1} parent=1 // pred_check
      _
    $region39: #{tpu_custom_call.1} parent=1 // pred_check_branch
      %3921 = sbr.rel (0) target = $region41
    $region40: #{tpu_custom_call.1} parent=1 // pred_region
      %3922 = dma.done [#allocation3], 128
    $region41: #{tpu_custom_call.1} parent=1 // pred_fallthru
      _
    // Predicated region
    $region42: #{tpu_custom_call.1} parent=1 // pred_check
      _
    $region43: #{tpu_custom_call.1} parent=1 // pred_check_branch
      %3924 = sbr.rel (0) target = $region45
    $region44: #{tpu_custom_call.1} parent=1 // pred_region
      %3925 = dma.done [#allocation5], 32
    $region45: #{tpu_custom_call.1} parent=1 // pred_fallthru
      _
    %3926 = vsyncpa [#allocation3], 1
    %3927 = vsyncpa [#allocation5], 1

</llo_original>
